<compile_context>
chip_gen: v5e
topology: v5e:2x2
jax: 0.10.0
libtpu: 0.0.40
codegen_flags: <defaults>
</compile_context>

<pallas_src>
import functools

import jax
import jax.numpy as jnp
from jax import lax
from jax.experimental import pallas as pl
from jax.experimental.pallas import tpu as pltpu

# Large finite negative instead of -inf: identical under softmax (exp
# underflows to 0) but cannot produce NaN rows if the window is padded.
_MASK_VALUE = -0.7 * float(jnp.finfo(jnp.float32).max)


def _round_up(x: int, m: int) -> int:
    return ((x + m - 1) // m) * m


def _vmem_budget_bytes() -> int:
    """~80% of physical VMEM (≈51 MiB v7x, ≈102 MiB v5e/v6e); safe fallback."""
    try:
        cap = int(pltpu.get_tpu_info().vmem_capacity_bytes)
    except Exception:
        cap = 64 * 1024 * 1024
    return int(0.8 * cap)


def _plan_head_group(BH, TQ, W_pad, D, itemsize, vmem_budget, num_l, bh_tile):
    """Pick head-group size G and K/V pipeline depth under the VMEM budget."""
    def bytes_needed(g, kv_buffers):
        qo = 2 * itemsize * g * 2 * TQ * D          # q + out, double-buffered
        kv = kv_buffers * itemsize * g * 2 * W_pad * D
        temps = 4 * 4 * g * TQ * W_pad              # f32 score-tile temporaries
        return qo + kv + temps

    def kv_buffers_for(g):
        if bytes_needed(g, 2) <= vmem_budget:
            return 2
        # K/V change only once per head-group; single-buffering exposes one
        # DMA per group, amortized over num_l query tiles.
        if num_l > 1 and bytes_needed(g, 1) <= vmem_budget:
            return 1
        return 0                                    # does not fit

    if bh_tile is not None and bh_tile > 0 and BH % bh_tile == 0:
        g = bh_tile
        return g, (kv_buffers_for(g) or 2)

    target = 1 << 20                                # >= ~1 MiB of q+out per step
    divisors = [g for g in range(1, BH + 1) if BH % g == 0]
    best = 1
    for g in divisors:
        if kv_buffers_for(g) == 0:
            break                                   # VMEM cost is monotone in g
        best = g
        if itemsize * g * 2 * TQ * D >= target and BH // g >= 2:
            break
    if best == BH and BH > 1:
        # Keep >= 2 head-groups so megacore (v7x) can split the group axis.
        smaller = [g for g in divisors if g < BH and kv_buffers_for(g) > 0]
        if smaller:
            best = smaller[-1]
    kvb = kv_buffers_for(best)
    return best, (kvb if kvb > 0 else (1 if num_l > 1 else 2))


def _swa_kernel(q_ref, k_ref, v_ref, o_ref, *, training: bool, scale: float,
                tq: int, w_real: int, w_pad: int):
    """One (head-group, query-tile) grid step.

    q_ref: (G, TQ, D)   k_ref/v_ref: (G, W_pad, D)   o_ref: (G, TQ, D)
    """
    # Fold 1/sqrt(D) into q (scales TQ*D elements instead of the TQ*W score
    # tile).  MXU operands are bf16 (no-op casts when inputs already arrive
    # as bf16 at the pallas_call boundary); accumulation stays f32.
    q = (q_ref[...] * scale).astype(jnp.bfloat16)         # (G, TQ, D)
    k = k_ref[...].astype(jnp.bfloat16)                    # (G, Wp, D)
    v = v_ref[...].astype(jnp.bfloat16)                    # (G, Wp, D)

    # Q @ K^T without an explicit k.T (no XLU transpose): contract the shared
    # last (lane) dim, batch over the head-group dim.  -> (G, TQ, Wp) f32.
    s = lax.dot_general(q, k, dimension_numbers=(((2,), (2,)), ((0,), (0,))),
                        preferred_element_type=jnp.float32)

    if w_pad != w_real:
        # Zero-padded window columns must never receive probability mass —
        # in training *and* eval mode.
        col = lax.broadcasted_iota(jnp.int32, (1, 1, w_pad), 2)
        s = jnp.where(col >= w_real, _MASK_VALUE, s)

    def _softmax_pv_store(scores):
        m = jnp.max(scores, axis=-1, keepdims=True)
        e = jnp.exp(scores - m)
        denom = jnp.sum(e, axis=-1, keepdims=True)
        p = (e * pl.reciprocal(denom, approx=True)).astype(jnp.bfloat16)  # EUP
        o = lax.dot_general(p, v, dimension_numbers=(((2,), (1,)), ((0,), (0,))),
                            preferred_element_type=jnp.float32)           # (G,TQ,D)
        o_ref[...] = o.astype(o_ref.dtype)

    if training:
        tile_start = pl.program_id(1) * tq

        # Only tiles whose queries start inside the window need the causal
        # mask; everything at tile_start >= W skips the mask passes entirely.
        @pl.when(tile_start < w_real)
        def _():
            # 2D iotas broadcast over the head-group axis instead of two
            # materialized (G, TQ, Wp) index planes.
            rows = tile_start + lax.broadcasted_iota(jnp.int32, (1, tq, w_pad), 1)
            cols = lax.broadcasted_iota(jnp.int32, (1, tq, w_pad), 2)
            _softmax_pv_store(jnp.where(rows < cols, _MASK_VALUE, s))

        @pl.when(tile_start >= w_real)
        def _():
            _softmax_pv_store(s)
    else:
        _softmax_pv_store(s)


def sliding_window_attention(query, keys, values, *, window_size: int,
                             training: bool = True, tq: int = 256,
                             bh_tile: int | None = None):
    """query/keys/values: (B, H, L, D).  Returns (B, H, L, D) in query dtype.

    This kernel is HBM-bandwidth bound at typical window sizes: hand it bf16
    inputs (and accept bf16 output) to halve HBM traffic — the kernel uses
    them directly on the MXU with f32 accumulation.  Keep TQ large (256-512)
    on all generations, including v5e; D a multiple of 128 keeps the output
    stores lane-dense.  bh_tile=None auto-sizes the head-group.
    """
    B, H, L, D = query.shape
    W = min(window_size, L)
    BH = B * H
    itemsize = jnp.dtype(query.dtype).itemsize

    # Query tile must be a multiple of 8 sublanes (or the full padded dim);
    # pad L so the grid divides evenly.  Pad W to a lane multiple of 128 so
    # the score tile stays lane-dense and the P@V contraction is MXU-aligned.
    TQ = tq if L >= tq else _round_up(L, 8)
    L_pad = _round_up(L, TQ)
    W_pad = _round_up(W, 128)

    q = query.reshape(BH, L, D)
    if L_pad != L:
        # Padded rows sit past the window (pos >= L >= W) so they are never
        # fully masked (no NaN); their outputs are sliced off below.
        q = jnp.pad(q, ((0, 0), (0, L_pad - L), (0, 0)))
    k = keys[:, :, L - W:, :].reshape(BH, W, D)
    v = values[:, :, L - W:, :].reshape(BH, W, D)
    if W_pad != W:
        k = jnp.pad(k, ((0, 0), (0, W_pad - W), (0, 0)))
        v = jnp.pad(v, ((0, 0), (0, W_pad - W), (0, 0)))

    num_l = L_pad // TQ
    vmem_budget = _vmem_budget_bytes()
    G, kv_buffers = _plan_head_group(BH, TQ, W_pad, D, itemsize, vmem_budget,
                                     num_l, bh_tile)
    num_groups = BH // G

    kernel = functools.partial(_swa_kernel, training=training,
                               scale=1.0 / (D ** 0.5), tq=TQ,
                               w_real=W, w_pad=W_pad)

    # K/V only change once per head-group; drop to a single buffer only when
    # double-buffering them would threaten the VMEM budget (matters on v7x).
    kv_pipeline = {} if kv_buffers == 2 else dict(pipeline_mode=pl.Buffered(1))

    cost = pl.CostEstimate(
        flops=4 * BH * L_pad * W_pad * D,                 # QK^T + PV
        transcendentals=BH * L_pad * W_pad,               # exp
        bytes_accessed=itemsize * BH * (2 * L_pad * D + 2 * W_pad * D),
    )

    out = pl.pallas_call(
        kernel,
        out_shape=jax.ShapeDtypeStruct((BH, L_pad, D), query.dtype),
        grid_spec=pltpu.PrefetchScalarGridSpec(
            num_scalar_prefetch=0,
            grid=(num_groups, num_l),                                # L innermost
            in_specs=[
                pl.BlockSpec((G, TQ, D), lambda g, j: (g, j, 0)),    # q streams
                pl.BlockSpec((G, W_pad, D), lambda g, j: (g, 0, 0),  # K resident
                             **kv_pipeline),
                pl.BlockSpec((G, W_pad, D), lambda g, j: (g, 0, 0),  # V resident
                             **kv_pipeline),
            ],
            out_specs=pl.BlockSpec((G, TQ, D), lambda g, j: (g, j, 0)),
        ),
        compiler_params=pltpu.CompilerParams(
            # Megacore splits the head-group axis only; splitting the L-tile
            # axis would duplicate the K/V window DMA on both cores (v7x).
            dimension_semantics=("parallel", "arbitrary"),
            vmem_limit_bytes=vmem_budget),
        cost_estimate=cost,
    )(q, k, v)

    return out[:, :L, :].reshape(B, H, L, D)


def _reference(query, keys, values, *, window_size: int, training: bool = True):
    """Pure-JAX f32 reference mirroring the PyTorch forward exactly."""
    query = query.astype(jnp.float32)
    keys = keys.astype(jnp.float32)
    values = values.astype(jnp.float32)
    B, H, L, D = query.shape
    W = min(window_size, L)
    wk = keys[:, :, L - W:, :]
    wv = values[:, :, L - W:, :]
    scores = jnp.einsum("bhld,bhwd->bhlw", query, wk) / (D ** 0.5)
    if training:
        positions = jnp.arange(L)[:, None]
        window_positions = jnp.arange(W)[None, :]
        mask = positions < window_positions
        scores = jnp.where(mask[None, None], -jnp.inf, scores)
    probs = jax.nn.softmax(scores, axis=-1)
    return jnp.einsum("bhlw,bhwd->bhld", probs, wv)


if __name__ == "__main__":
    # D=128 keeps the output lane-dense; L=512 with tq=256 exercises L-tiling
    # (2 query tiles per head-group) and both the masked and unmasked paths.
    B, H, L, D = 2, 4, 512, 128
    window_size = 128

    key = jax.random.PRNGKey(0)
    kq, kk, kv = jax.random.split(key, 3)
    query = jax.random.normal(kq, (B, H, L, D), dtype=jnp.float32)
    keys = jax.random.normal(kk, (B, H, L, D), dtype=jnp.float32)
    values = jax.random.normal(kv, (B, H, L, D), dtype=jnp.float32)

    # f32-boundary run (matches the PyTorch module's default dtype).
    out = sliding_window_attention(query, keys, values, window_size=window_size,
                                   training=True, tq=256)
    out = jax.block_until_ready(out)
    ref = _reference(query, keys, values, window_size=window_size, training=True)
    assert out.shape == (B, H, L, D)
    # bf16 MXU operands (f32 accumulate) => looser tolerance than a pure-f32 ref.
    assert jnp.allclose(out, ref, atol=3e-2, rtol=3e-2), "f32 mismatch vs reference"

    # bf16-boundary run: halves HBM traffic (the real lever on this
    # memory-bound kernel); compared against an f32 reference on the same
    # bf16-rounded inputs with a correspondingly looser tolerance.
    q_bf, k_bf, v_bf = (x.astype(jnp.bfloat16) for x in (query, keys, values))
    out_bf = sliding_window_attention(q_bf, k_bf, v_bf, window_size=window_size,
                                      training=True, tq=256)
    out_bf = jax.block_until_ready(out_bf)
    ref_bf = _reference(q_bf, k_bf, v_bf, window_size=window_size, training=True)
    assert out_bf.shape == (B, H, L, D) and out_bf.dtype == jnp.bfloat16
    assert bool(jnp.all(jnp.isfinite(out_bf.astype(jnp.float32))))
    assert jnp.allclose(out_bf.astype(jnp.float32), ref_bf, atol=1e-1, rtol=1e-1), \
        "bf16 mismatch vs reference"

    print("KERNEL_OK")
</pallas_src>

<mosaic_0001>
module attributes {stable_mosaic.version = 11 : i64} {
  func.func @_swa_kernel(%arg0: i32, %arg1: i32, %arg2: memref<4x256x128xf32, #tpu.memory_space<vmem>>, %arg3: memref<4x128x128xf32, #tpu.memory_space<vmem>>, %arg4: memref<4x128x128xf32, #tpu.memory_space<vmem>>, %arg5: memref<4x256x128xf32, #tpu.memory_space<vmem>>) attributes {dimension_semantics = [#tpu.dimension_semantics<parallel>, #tpu.dimension_semantics<arbitrary>], iteration_bounds = array<i64: 2, 2>, scalar_prefetch = 0 : i64, scratch_operands = 0 : i64, tpu.core_type = #tpu.core_type<tc>, window_params = [{transform_indices = @transform_0, window_bounds = array<i64: 4, 256, 128>}, {transform_indices = @transform_1, window_bounds = array<i64: 4, 128, 128>}, {transform_indices = @transform_2, window_bounds = array<i64: 4, 128, 128>}, {transform_indices = @transform_3, window_bounds = array<i64: 4, 256, 128>}]} {
    %c0 = arith.constant 0 : index
    %c0_0 = arith.constant 0 : index
    %c0_1 = arith.constant 0 : index
    %0 = vector.load %arg2[%c0, %c0_0, %c0_1] : memref<4x256x128xf32, #tpu.memory_space<vmem>>, vector<4x256x128xf32>
    %cst = arith.constant 0.0883883461 : f32
    %1 = vector.broadcast %cst : f32 to vector<4x256x128xf32>
    %2 = arith.mulf %0, %1 : vector<4x256x128xf32>
    %3 = arith.truncf %2 : vector<4x256x128xf32> to vector<4x256x128xbf16>
    %c0_2 = arith.constant 0 : index
    %c0_3 = arith.constant 0 : index
    %c0_4 = arith.constant 0 : index
    %4 = vector.load %arg3[%c0_2, %c0_3, %c0_4] : memref<4x128x128xf32, #tpu.memory_space<vmem>>, vector<4x128x128xf32>
    %5 = arith.truncf %4 : vector<4x128x128xf32> to vector<4x128x128xbf16>
    %c0_5 = arith.constant 0 : index
    %c0_6 = arith.constant 0 : index
    %c0_7 = arith.constant 0 : index
    %6 = vector.load %arg4[%c0_5, %c0_6, %c0_7] : memref<4x128x128xf32, #tpu.memory_space<vmem>>, vector<4x128x128xf32>
    %7 = arith.truncf %6 : vector<4x128x128xf32> to vector<4x128x128xbf16>
    %cst_8 = arith.constant dense<0.000000e+00> : vector<4x256x128xf32>
    %8 = tpu.matmul %3, %5, %cst_8 {dimension_numbers = #tpu.dot_dimension_numbers<[2], [2], [1], [1], [0, 0, 0, 1, 1, 1], [0], [0]>} : vector<4x256x128xbf16>, vector<4x128x128xbf16>, vector<4x256x128xf32> -> vector<4x256x128xf32>
    %c256_i32 = arith.constant 256 : i32
    %9 = arith.muli %arg1, %c256_i32 : i32
    %c128_i32 = arith.constant 128 : i32
    %10 = arith.cmpi slt, %9, %c128_i32 : i32
    %11 = arith.extui %10 : i1 to i32
    %c0_i32 = arith.constant 0 : i32
    %12 = arith.cmpi ne, %11, %c0_i32 : i32
    scf.if %12 {
      %16 = tpu.iota {dimensions = array<i32: 1>} : vector<1x256x128xi32>
      %17 = vector.broadcast %9 : i32 to vector<1x256x128xi32>
      %18 = arith.addi %17, %16 : vector<1x256x128xi32>
      %19 = tpu.iota {dimensions = array<i32: 2>} : vector<1x256x128xi32>
      %20 = arith.cmpi slt, %18, %19 : vector<1x256x128xi32>
      %cst_11 = arith.constant -2.38197633E+38 : f32
      %21 = vector.shape_cast %20 : vector<1x256x128xi1> to vector<1x256x128xi1>
      %22 = vector.broadcast %21 : vector<1x256x128xi1> to vector<4x256x128xi1>
      %23 = vector.broadcast %cst_11 : f32 to vector<4x256x128xf32>
      %24 = arith.select %22, %23, %8 : vector<4x256x128xi1>, vector<4x256x128xf32>
      %cst_12 = arith.constant dense<0xFF800000> : vector<4x256xf32>
      %25 = vector.multi_reduction <maximumf>, %24, %cst_12 [2] : vector<4x256x128xf32> to vector<4x256xf32>
      %26 = vector.shape_cast %25 : vector<4x256xf32> to vector<4x256x1xf32>
      %27 = vector.broadcast %26 : vector<4x256x1xf32> to vector<4x256x128xf32>
      %28 = arith.subf %24, %27 : vector<4x256x128xf32>
      %29 = math.exp %28 : vector<4x256x128xf32>
      %cst_13 = arith.constant dense<0.000000e+00> : vector<4x256xf32>
      %30 = vector.multi_reduction <add>, %29, %cst_13 [2] : vector<4x256x128xf32> to vector<4x256xf32>
      %31 = vector.shape_cast %30 : vector<4x256xf32> to vector<4x256x1xf32>
      %32 = tpu.reciprocal %31 {approx = true} : vector<4x256x1xf32> -> vector<4x256x1xf32>
      %33 = vector.broadcast %32 : vector<4x256x1xf32> to vector<4x256x128xf32>
      %34 = arith.mulf %29, %33 : vector<4x256x128xf32>
      %35 = arith.truncf %34 : vector<4x256x128xf32> to vector<4x256x128xbf16>
      %cst_14 = arith.constant dense<0.000000e+00> : vector<4x256x128xf32>
      %36 = tpu.matmul %35, %7, %cst_14 {dimension_numbers = #tpu.dot_dimension_numbers<[2], [1], [1], [2], [0, 0, 0, 1, 1, 2], [0], [0]>} : vector<4x256x128xbf16>, vector<4x128x128xbf16>, vector<4x256x128xf32> -> vector<4x256x128xf32>
      %c0_15 = arith.constant 0 : index
      %c0_16 = arith.constant 0 : index
      %c0_17 = arith.constant 0 : index
      %37 = vector.load %arg5[%c0_15, %c0_16, %c0_17] : memref<4x256x128xf32, #tpu.memory_space<vmem>>, vector<4x256x128xf32>
      tpu.vector_store %arg5[%c0_15, %c0_16, %c0_17], %36 {strides = array<i32>} : memref<4x256x128xf32, #tpu.memory_space<vmem>>, vector<4x256x128xf32>,
    } else {
    }
    %c128_i32_9 = arith.constant 128 : i32
    %13 = arith.cmpi sge, %9, %c128_i32_9 : i32
    %14 = arith.extui %13 : i1 to i32
    %c0_i32_10 = arith.constant 0 : i32
    %15 = arith.cmpi ne, %14, %c0_i32_10 : i32
    scf.if %15 {
      %cst_11 = arith.constant dense<0xFF800000> : vector<4x256xf32>
      %16 = vector.multi_reduction <maximumf>, %8, %cst_11 [2] : vector<4x256x128xf32> to vector<4x256xf32>
      %17 = vector.shape_cast %16 : vector<4x256xf32> to vector<4x256x1xf32>
      %18 = vector.broadcast %17 : vector<4x256x1xf32> to vector<4x256x128xf32>
      %19 = arith.subf %8, %18 : vector<4x256x128xf32>
      %20 = math.exp %19 : vector<4x256x128xf32>
      %cst_12 = arith.constant dense<0.000000e+00> : vector<4x256xf32>
      %21 = vector.multi_reduction <add>, %20, %cst_12 [2] : vector<4x256x128xf32> to vector<4x256xf32>
      %22 = vector.shape_cast %21 : vector<4x256xf32> to vector<4x256x1xf32>
      %23 = tpu.reciprocal %22 {approx = true} : vector<4x256x1xf32> -> vector<4x256x1xf32>
      %24 = vector.broadcast %23 : vector<4x256x1xf32> to vector<4x256x128xf32>
      %25 = arith.mulf %20, %24 : vector<4x256x128xf32>
      %26 = arith.truncf %25 : vector<4x256x128xf32> to vector<4x256x128xbf16>
      %cst_13 = arith.constant dense<0.000000e+00> : vector<4x256x128xf32>
      %27 = tpu.matmul %26, %7, %cst_13 {dimension_numbers = #tpu.dot_dimension_numbers<[2], [1], [1], [2], [0, 0, 0, 1, 1, 2], [0], [0]>} : vector<4x256x128xbf16>, vector<4x128x128xbf16>, vector<4x256x128xf32> -> vector<4x256x128xf32>
      %c0_14 = arith.constant 0 : index
      %c0_15 = arith.constant 0 : index
      %c0_16 = arith.constant 0 : index
      %28 = vector.load %arg5[%c0_14, %c0_15, %c0_16] : memref<4x256x128xf32, #tpu.memory_space<vmem>>, vector<4x256x128xf32>
      tpu.vector_store %arg5[%c0_14, %c0_15, %c0_16], %27 {strides = array<i32>} : memref<4x256x128xf32, #tpu.memory_space<vmem>>, vector<4x256x128xf32>,
    } else {
    }
    return
  }
  func.func @transform_0(%arg0: i32, %arg1: i32) -> (i32, i32, i32) {
    %c0_i32 = arith.constant 0 : i32
    %c0_i32_0 = arith.constant 0 : i32
    return %arg0, %arg1, %c0_i32 : i32, i32, i32
  }
  func.func @transform_1(%arg0: i32, %arg1: i32) -> (i32, i32, i32) {
    %c0_i32 = arith.constant 0 : i32
    %c0_i32_0 = arith.constant 0 : i32
    %c0_i32_1 = arith.constant 0 : i32
    return %arg0, %c0_i32, %c0_i32_0 : i32, i32, i32
  }
  func.func @transform_2(%arg0: i32, %arg1: i32) -> (i32, i32, i32) {
    %c0_i32 = arith.constant 0 : i32
    %c0_i32_0 = arith.constant 0 : i32
    %c0_i32_1 = arith.constant 0 : i32
    return %arg0, %c0_i32, %c0_i32_0 : i32, i32, i32
  }
  func.func @transform_3(%arg0: i32, %arg1: i32) -> (i32, i32, i32) {
    %c0_i32 = arith.constant 0 : i32
    %c0_i32_0 = arith.constant 0 : i32
    return %arg0, %arg1, %c0_i32 : i32, i32, i32
  }
}

</mosaic_0001>

<llo_original>
// kernel: tpu_custom_call.1
$region0: #{tpu_custom_call.1}
  #allocation0 [shape = 'u32[]', space=smem, size = 0x4, offset = 0x4, fixed_abs, tag = 'smem constant byte address 0x4 - core index']
  #allocation1 [shape = 'u32[72,128]{1,0:T(1,128)}', space=vmem, size = 0x9000, scoped, tag = 'internal scratch']
  #allocation9 [shape = 's32[]', space=sflag, size = 0x4, offset = 0, fixed_abs, tag = 'sflag constant byte address 0x0 - dummy sync flag']
  #allocation11 [shape = 's32[]', space=sflag, size = 0x4, offset = 0, fixed_abs, tag = 'sflag constant byte address 0x0 - dummy sync flag']
  %s0 = inlined_call_operand.hbm [shape: f32[8,512,128], index: 0, kind: input, shape index: {}]
  %s1 = inlined_call_operand.hbm [shape: f32[8,128,128], index: 1, kind: input, shape index: {}]
  %s2 = inlined_call_operand.hbm [shape: f32[8,128,128], index: 2, kind: input, shape index: {}]
  %s3 = inlined_call_operand.hbm [shape: f32[8,512,128], index: 3, kind: output, shape index: {}]
  %s4 = sld [smem:[#allocation0]]
  $region65: #{tpu_custom_call.1} parent=0
    _
  %s6 = ssub.s32 1, %s4
  %s7 = scalar_select 0, %s6, %s4
  $region1: #{tpu_custom_call.1} parent=0
    #allocation2 [shape = 'u8[1048576]{0}', space=vmem, size = 0x100000, scoped, tag = 'input window, operand 0']
    #allocation3 [shape = 's32[2]{0}', space=sflag, size = 0x8, scoped, tag = 'scoped memory for tpu_custom_call.1']
    #allocation4 [shape = 's32[2]{0}', space=sflag, size = 0x8, scoped, tag = 'scoped memory for tpu_custom_call.1']
    #allocation5 [shape = 'u8[524288]{0}', space=vmem, size = 0x80000, scoped, tag = 'input window, operand 1']
    #allocation6 [shape = 's32[2]{0}', space=sflag, size = 0x8, scoped, tag = 'scoped memory for tpu_custom_call.1']
    #allocation7 [shape = 'u8[524288]{0}', space=vmem, size = 0x80000, scoped, tag = 'input window, operand 2']
    #allocation8 [shape = 'u8[1048576]{0}', space=vmem, size = 0x100000, scoped, tag = 'output window, operand 0']
    %8 = vsyncpa [#allocation3], 0
    %s9 = scalar_lea.sflag [#allocation3], 1
    %10 = vsyncpa %s9, 0
    %11 = vsyncpa [#allocation6], 0
    %s12 = scalar_lea.sflag [#allocation6], 1
    %13 = vsyncpa %s12, 0
    %14 = vsyncpa [#allocation4], 0
    %s15 = scalar_lea.sflag [#allocation4], 1
    %16 = vsyncpa %s15, 0
    loop: start=0, step=1, limit=6
    $region2: #{tpu_custom_call.1} parent=1 // loop_pre_header
      _
    $region3: #{tpu_custom_call.1} parent=1 // loop_header
      %s18 = sphi 0, %s22
      %p19 = scmp.ge.s32.totalorder %s18, 6
      %s25 = sphi 0, %s37
      %s26 = sphi 0, %s33
      %s27 = sphi 0, %s25
      %s28 = sphi 0, %s26
      %s29 = sphi 0, %s27
      %s30 = sphi 0, %s28
      %s42 = sphi 0, %s44
      %s45 = sphi 0, %s42
      %s46 = sphi 0, %s45
      %s62 = sphi 0, %s46
      %s68 = sphi 0, %s70
      %s71 = sphi 0, %s68
      %s72 = sphi 0, %s71
      %s88 = sphi 0, %s72
      %s94 = sphi 0, %s96
      %s97 = sphi 0, %s94
      %s98 = sphi 0, %s97
      %s114 = sphi 0, %s98
      %s122 = sphi 0, %s124
      %s125 = sphi 0, %s122
      %s126 = sphi 0, %s125
      %s142 = sphi 0, %s126
    $region4: #{tpu_custom_call.1} parent=1 // loop_header_branch
      %21 = sbr.rel (%p19) target = $region8
    $region5: #{tpu_custom_call.1} parent=1 // loop_body
      %s23 = ssub.s32 %s18, 1
      %s24 = ssub.s32 %s18, 2
      %s31 = sadd.s32 1, %s26
      %p32 = scmp.ge.s32.totalorder %s31, 2
      %s33 = scalar_select %p32, 0, %s31
      %s34 = sadd.s32 1, %s25
      %s35 = scalar_select %p32, %s34, %s25
      %p36 = scmp.ge.s32.totalorder %s35, 2
      %s37 = scalar_select %p36, 0, %s35
      %s38 = ssub.s32 %s25, %s37
      %s39 = ssub.s32 %s26, %s33
      %s40 = sor.u32 %s38, %s39
      %p41 = scmp.eq.s32.totalorder %s40, 0
      %s43 = sadd.s32 %s42, 1
      %s44 = scalar_select %p41, %s42, %s43
      %p47 = pneg %p41
      %p48 = scmp.eq.s32.totalorder %s18, 3
      %p49 = por %p47, %p48
      %p50 = scmp.ne.s32.totalorder %s42, %s45
      %p51 = scmp.eq.s32.totalorder %s18, 0
      %p52 = por %p50, %p51
      %p53 = scmp.ne.s32.totalorder %s42, %s45
      %p54 = scmp.eq.s32.totalorder %s23, 3
      %p55 = por %p53, %p54
      %p56 = scmp.ne.s32.totalorder %s45, %s46
      %p57 = scmp.eq.s32.totalorder %s23, 0
      %p58 = por %p56, %p57
      %p59 = scmp.ne.s32.totalorder %s45, %s46
      %p60 = scmp.eq.s32.totalorder %s24, 3
      %p61 = por %p59, %p60
      %p63 = scmp.ne.s32.totalorder %s46, %s62
      %p64 = scmp.eq.s32.totalorder %s24, 0
      %p65 = por %p63, %p64
      %s66 = ssub.s32 %s25, %s37
      %p67 = scmp.eq.s32.totalorder %s66, 0
      %s69 = sadd.s32 %s68, 1
      %s70 = scalar_select %p67, %s68, %s69
      %p73 = pneg %p67
      %p74 = scmp.eq.s32.totalorder %s18, 3
      %p75 = por %p73, %p74
      %p76 = scmp.ne.s32.totalorder %s68, %s71
      %p77 = scmp.eq.s32.totalorder %s18, 0
      %p78 = por %p76, %p77
      %p79 = scmp.ne.s32.totalorder %s68, %s71
      %p80 = scmp.eq.s32.totalorder %s23, 3
      %p81 = por %p79, %p80
      %p82 = scmp.ne.s32.totalorder %s71, %s72
      %p83 = scmp.eq.s32.totalorder %s23, 0
      %p84 = por %p82, %p83
      %p85 = scmp.ne.s32.totalorder %s71, %s72
      %p86 = scmp.eq.s32.totalorder %s24, 3
      %p87 = por %p85, %p86
      %p89 = scmp.ne.s32.totalorder %s72, %s88
      %p90 = scmp.eq.s32.totalorder %s24, 0
      %p91 = por %p89, %p90
      %s92 = ssub.s32 %s25, %s37
      %p93 = scmp.eq.s32.totalorder %s92, 0
      %s95 = sadd.s32 %s94, 1
      %s96 = scalar_select %p93, %s94, %s95
      %p99 = pneg %p93
      %p100 = scmp.eq.s32.totalorder %s18, 3
      %p101 = por %p99, %p100
      %p102 = scmp.ne.s32.totalorder %s94, %s97
      %p103 = scmp.eq.s32.totalorder %s18, 0
      %p104 = por %p102, %p103
      %p105 = scmp.ne.s32.totalorder %s94, %s97
      %p106 = scmp.eq.s32.totalorder %s23, 3
      %p107 = por %p105, %p106
      %p108 = scmp.ne.s32.totalorder %s97, %s98
      %p109 = scmp.eq.s32.totalorder %s23, 0
      %p110 = por %p108, %p109
      %p111 = scmp.ne.s32.totalorder %s97, %s98
      %p112 = scmp.eq.s32.totalorder %s24, 3
      %p113 = por %p111, %p112
      %p115 = scmp.ne.s32.totalorder %s98, %s114
      %p116 = scmp.eq.s32.totalorder %s24, 0
      %p117 = por %p115, %p116
      %s118 = ssub.s32 %s25, %s37
      %s119 = ssub.s32 %s26, %s33
      %s120 = sor.u32 %s118, %s119
      %p121 = scmp.eq.s32.totalorder %s120, 0
      %s123 = sadd.s32 %s122, 1
      %s124 = scalar_select %p121, %s122, %s123
      %p127 = pneg %p121
      %p128 = scmp.eq.s32.totalorder %s18, 3
      %p129 = por %p127, %p128
      %p130 = scmp.ne.s32.totalorder %s122, %s125
      %p131 = scmp.eq.s32.totalorder %s18, 0
      %p132 = por %p130, %p131
      %p133 = scmp.ne.s32.totalorder %s122, %s125
      %p134 = scmp.eq.s32.totalorder %s23, 3
      %p135 = por %p133, %p134
      %p136 = scmp.ne.s32.totalorder %s125, %s126
      %p137 = scmp.eq.s32.totalorder %s23, 0
      %p138 = por %p136, %p137
      %p139 = scmp.ne.s32.totalorder %s125, %s126
      %p140 = scmp.eq.s32.totalorder %s24, 3
      %p141 = por %p139, %p140
      %p143 = scmp.ne.s32.totalorder %s126, %s142
      %p144 = scmp.eq.s32.totalorder %s24, 0
      %p145 = por %p143, %p144
      %p146 = scmp.le.s32.totalorder 1, %s18
      %p147 = scmp.lt.s32.totalorder %s18, 5
      %p148 = pnand %p146, %p147
      %p149 = pneg %p148
      // Predicated region
      $region9: #{tpu_custom_call.1} parent=5 // pred_check
        _
      $region10: #{tpu_custom_call.1} parent=5 // pred_check_branch
        %151 = sbr.rel (%p148) target = $region12
      $region11: #{tpu_custom_call.1} parent=5 // pred_region
        %s152 = ssub.s32 %s18, 1
      $region12: #{tpu_custom_call.1} parent=5 // pred_fallthru
        _
      %p153 = scmp.lt.s32.totalorder %s18, 4
      // Predicated region
      $region13: #{tpu_custom_call.1} parent=5 // pred_check
        %p154 = pneg %p153
      $region14: #{tpu_custom_call.1} parent=5 // pred_check_branch
        %156 = sbr.rel (%p154) target = $region16
      $region15: #{tpu_custom_call.1} parent=5 // pred_region
        // Predicated region
        $region17: #{tpu_custom_call.1} parent=15 // pred_check
          %p157 = pneg %p52
        $region18: #{tpu_custom_call.1} parent=15 // pred_check_branch
          %159 = sbr.rel (%p157) target = $region20
        $region19: #{tpu_custom_call.1} parent=15 // pred_region
          #allocation10 [shape = 'u32[6]{0}', space=smem, size = 0x18, scoped, tag = 'DMA stride descriptor']
          %s160 = sand.u32 %s42, 1
          %s161 = scalar_lea.sflag [#allocation3], %s160
          %s162 = sand.u32 %s42, 1
          %s163 = smul.addr %s162, 1024
          %s164 = scalar_lea.vmem [#allocation2], %s163
          %s165 = smul.u32 4, %s25
          %s166 = smul.u32 32, %s26
          %168 = vsyncadd %s161, 0
          %s169 = smul.addr %s165, 64
          %s170 = sadd.s32 %s166, %s169
          %s171 = smul.addr %s170, 8
          %s172 = scalar_lea.hbm %s0, %s171
          %s174 = sshll.u32 1, 14
          %s175 = sxor.u32 4294967295, %s174
          %s177 = sld [smem:[#allocation0]]
          %s178 = sadd.s32 2, %s177
          %s180 = sshll.u32 7, 26
          %s181 = sxor.u32 4294967295, %s180
          %s182 = sand.u32 0, %s181
          %s183 = sshll.u32 %s178, 26
          %s184 = sor.u32 %s182, %s183
          %s185 = sshll.u32 %s172, 4
          %s186 = int_to_ptr.hbm [resolvable:$true] %s185
          %s187 = sshll.u32 %s164, 4
          %s188 = int_to_ptr.vmem [resolvable:$true] %s187
          %194 = sst [smem:[#allocation10]] 8192
          %s195 = scalar_lea.smem [#allocation10], 1
          %196 = sst [smem:[%s195]] 4096
          %s197 = scalar_lea.smem [#allocation10], 2
          %198 = sst [smem:[%s197]] 32
          %s199 = scalar_lea.smem [#allocation10], 3
          %200 = sst [smem:[%s199]] 128
          %s201 = scalar_lea.smem [#allocation10], 4
          %202 = sst [smem:[%s201]] 128
          %s203 = scalar_lea.smem [#allocation10], 5
          %204 = sst [smem:[%s203]] 8
          %206 = dma.general %s186, 16384, %s188, %s161, [#allocation9], [#allocation10], %s184, 0
        $region20: #{tpu_custom_call.1} parent=15 // pred_fallthru
          _
        // Predicated region
        $region21: #{tpu_custom_call.1} parent=15 // pred_check
          %p207 = pneg %p78
        $region22: #{tpu_custom_call.1} parent=15 // pred_check_branch
          %209 = sbr.rel (%p207) target = $region24
        $region23: #{tpu_custom_call.1} parent=15 // pred_region
          %s210 = sand.u32 %s18, 1
          %s211 = scalar_lea.sflag [#allocation6], %s210
          %s212 = sand.u32 %s68, 1
          %s213 = smul.addr %s212, 512
          %s214 = scalar_lea.vmem [#allocation5], %s213
          %s215 = smul.u32 4, %s25
          %217 = vsyncadd %s211, 0
          %s218 = smul.addr %s215, 16
          %s219 = smul.addr %s218, 8
          %s220 = scalar_lea.hbm %s1, %s219
          %s221 = sshll.u32 %s220, 4
          %s222 = int_to_ptr.hbm [resolvable:$true] %s221
          %s223 = sshll.u32 %s214, 4
          %s224 = int_to_ptr.vmem [resolvable:$true] %s223
          %229 = dma.hbm_to_vmem [thread:$0]  %s222, 8192, %s224, %s211, 128, 128, 8
        $region24: #{tpu_custom_call.1} parent=15 // pred_fallthru
          _
        // Predicated region
        $region25: #{tpu_custom_call.1} parent=15 // pred_check
          %p230 = pneg %p104
        $region26: #{tpu_custom_call.1} parent=15 // pred_check_branch
          %232 = sbr.rel (%p230) target = $region28
        $region27: #{tpu_custom_call.1} parent=15 // pred_region
          %s233 = sand.u32 %s18, 1
          %s234 = scalar_lea.sflag [#allocation6], %s233
          %s235 = sand.u32 %s94, 1
          %s236 = smul.addr %s235, 512
          %s237 = scalar_lea.vmem [#allocation7], %s236
          %s238 = smul.u32 4, %s25
          %240 = vsyncadd %s234, 0
          %s241 = smul.addr %s238, 16
          %s242 = smul.addr %s241, 8
          %s243 = scalar_lea.hbm %s2, %s242
          %s244 = sshll.u32 %s243, 4
          %s245 = int_to_ptr.hbm [resolvable:$true] %s244
          %s246 = sshll.u32 %s237, 4
          %s247 = int_to_ptr.vmem [resolvable:$true] %s246
          %252 = dma.hbm_to_vmem [thread:$0]  %s245, 8192, %s247, %s234, 128, 128, 8
        $region28: #{tpu_custom_call.1} parent=15 // pred_fallthru
          _
      $region16: #{tpu_custom_call.1} parent=5 // pred_fallthru
        _
      %p253 = scmp.le.s32.totalorder 1, %s18
      %p254 = scmp.lt.s32.totalorder %s18, 5
      %p255 = pnand %p253, %p254
      %p256 = pneg %p255
      // Predicated region
      $region29: #{tpu_custom_call.1} parent=5 // pred_check
        _
      $region30: #{tpu_custom_call.1} parent=5 // pred_check_branch
        %258 = sbr.rel (%p255) target = $region32
      $region31: #{tpu_custom_call.1} parent=5 // pred_region
        %s259 = ssub.s32 %s18, 1
        %s260 = sand.u32 %s45, 1
        %s261 = scalar_lea.sflag [#allocation3], %s260
        %s262 = sand.u32 %s45, 1
        %s263 = smul.addr %s262, 1024
        %s264 = scalar_lea.vmem [#allocation2], %s263
        // Predicated region
        $region33: #{tpu_custom_call.1} parent=31 // pred_check
          %p265 = pneg %p58
        $region34: #{tpu_custom_call.1} parent=31 // pred_check_branch
          %267 = sbr.rel (%p265) target = $region36
        $region35: #{tpu_custom_call.1} parent=31 // pred_region
          %269 = dma.done %s261, 16384
        $region36: #{tpu_custom_call.1} parent=31 // pred_fallthru
          _
        %s270 = sand.u32 %s23, 1
        %s271 = scalar_lea.sflag [#allocation6], %s270
        %s272 = sand.u32 %s71, 1
        %s273 = smul.addr %s272, 512
        %s274 = scalar_lea.vmem [#allocation5], %s273
        // Predicated region
        $region37: #{tpu_custom_call.1} parent=31 // pred_check
          %p275 = pneg %p84
        $region38: #{tpu_custom_call.1} parent=31 // pred_check_branch
          %277 = sbr.rel (%p275) target = $region40
        $region39: #{tpu_custom_call.1} parent=31 // pred_region
          %279 = dma.done %s271, 8192
        $region40: #{tpu_custom_call.1} parent=31 // pred_fallthru
          _
        %s280 = sand.u32 %s23, 1
        %s281 = scalar_lea.sflag [#allocation6], %s280
        %s282 = sand.u32 %s97, 1
        %s283 = smul.addr %s282, 512
        %s284 = scalar_lea.vmem [#allocation7], %s283
        // Predicated region
        $region41: #{tpu_custom_call.1} parent=31 // pred_check
          %p285 = pneg %p110
        $region42: #{tpu_custom_call.1} parent=31 // pred_check_branch
          %287 = sbr.rel (%p285) target = $region44
        $region43: #{tpu_custom_call.1} parent=31 // pred_region
          %289 = dma.done %s281, 8192
        $region44: #{tpu_custom_call.1} parent=31 // pred_fallthru
          _
        %s290 = sand.u32 %s45, 1
        %s291 = scalar_lea.sflag [#allocation3], %s290
        %s292 = sand.u32 %s45, 1
        %s293 = smul.addr %s292, 1024
        %s294 = scalar_lea.vmem [#allocation2], %s293
        %p295 = pneg %p58
        %p296 = pneg %p55
        %s297 = sand.u32 %s23, 1
        %s298 = scalar_lea.sflag [#allocation6], %s297
        %s299 = sand.u32 %s71, 1
        %s300 = smul.addr %s299, 512
        %s301 = scalar_lea.vmem [#allocation5], %s300
        %p302 = pneg %p84
        %p303 = pneg %p81
        %s304 = sand.u32 %s23, 1
        %s305 = scalar_lea.sflag [#allocation6], %s304
        %s306 = sand.u32 %s97, 1
        %s307 = smul.addr %s306, 512
        %s308 = scalar_lea.vmem [#allocation7], %s307
        %p309 = pneg %p110
        %p310 = pneg %p107
        %p311 = pneg %p138
        %p312 = pneg %p135
        %s313 = sand.u32 %s125, 1
        %s314 = scalar_lea.sflag [#allocation4], %s313
        %s315 = sand.u32 %s125, 1
        %s316 = smul.addr %s315, 1024
        %s317 = scalar_lea.vmem [#allocation8], %s316
        %s318 = smul.u32 4, %s27
        %s319 = smul.u32 32, %s28
        %s320 = smul.u32 4, %s27
        %s321 = smul.u32 4, %s27
        %s322 = smul.u32 4, %s27
        %s323 = smul.u32 32, %s28
        %v324 = vld [vmem:[%s264] sm:$0xff]
        %v325 = vld [vmem:[%s264 + $0x8] sm:$0xff]
        %v326 = vld [vmem:[%s264 + $0x10] sm:$0xff]
        %v327 = vld [vmem:[%s264 + $0x18] sm:$0xff]
        %v328 = vld [vmem:[%s264 + $0x20] sm:$0xff]
        %v329 = vld [vmem:[%s264 + $0x28] sm:$0xff]
        %v330 = vld [vmem:[%s264 + $0x30] sm:$0xff]
        %v331 = vld [vmem:[%s264 + $0x38] sm:$0xff]
        %v332 = vld [vmem:[%s264 + $0x40] sm:$0xff]
        %v333 = vld [vmem:[%s264 + $0x48] sm:$0xff]
        %v334 = vld [vmem:[%s264 + $0x50] sm:$0xff]
        %v335 = vld [vmem:[%s264 + $0x58] sm:$0xff]
        %v336 = vld [vmem:[%s264 + $0x60] sm:$0xff]
        %v337 = vld [vmem:[%s264 + $0x68] sm:$0xff]
        %v338 = vld [vmem:[%s264 + $0x70] sm:$0xff]
        %v339 = vld [vmem:[%s264 + $0x78] sm:$0xff]
        %v340 = vld [vmem:[%s264 + $0x80] sm:$0xff]
        %v341 = vld [vmem:[%s264 + $0x88] sm:$0xff]
        %v342 = vld [vmem:[%s264 + $0x90] sm:$0xff]
        %v343 = vld [vmem:[%s264 + $0x98] sm:$0xff]
        %v344 = vld [vmem:[%s264 + $0xa0] sm:$0xff]
        %v345 = vld [vmem:[%s264 + $0xa8] sm:$0xff]
        %v346 = vld [vmem:[%s264 + $0xb0] sm:$0xff]
        %v347 = vld [vmem:[%s264 + $0xb8] sm:$0xff]
        %v348 = vld [vmem:[%s264 + $0xc0] sm:$0xff]
        %v349 = vld [vmem:[%s264 + $0xc8] sm:$0xff]
        %v350 = vld [vmem:[%s264 + $0xd0] sm:$0xff]
        %v351 = vld [vmem:[%s264 + $0xd8] sm:$0xff]
        %v352 = vld [vmem:[%s264 + $0xe0] sm:$0xff]
        %v353 = vld [vmem:[%s264 + $0xe8] sm:$0xff]
        %v354 = vld [vmem:[%s264 + $0xf0] sm:$0xff]
        %v355 = vld [vmem:[%s264 + $0xf8] sm:$0xff]
        %v356 = vld [vmem:[%s264 + $0x100] sm:$0xff]
        %v357 = vld [vmem:[%s264 + $0x108] sm:$0xff]
        %v358 = vld [vmem:[%s264 + $0x110] sm:$0xff]
        %v359 = vld [vmem:[%s264 + $0x118] sm:$0xff]
        %v360 = vld [vmem:[%s264 + $0x120] sm:$0xff]
        %v361 = vld [vmem:[%s264 + $0x128] sm:$0xff]
        %v362 = vld [vmem:[%s264 + $0x130] sm:$0xff]
        %v363 = vld [vmem:[%s264 + $0x138] sm:$0xff]
        %v364 = vld [vmem:[%s264 + $0x140] sm:$0xff]
        %v365 = vld [vmem:[%s264 + $0x148] sm:$0xff]
        %v366 = vld [vmem:[%s264 + $0x150] sm:$0xff]
        %v367 = vld [vmem:[%s264 + $0x158] sm:$0xff]
        %v368 = vld [vmem:[%s264 + $0x160] sm:$0xff]
        %v369 = vld [vmem:[%s264 + $0x168] sm:$0xff]
        %v370 = vld [vmem:[%s264 + $0x170] sm:$0xff]
        %v371 = vld [vmem:[%s264 + $0x178] sm:$0xff]
        %v372 = vld [vmem:[%s264 + $0x180] sm:$0xff]
        %v373 = vld [vmem:[%s264 + $0x188] sm:$0xff]
        %v374 = vld [vmem:[%s264 + $0x190] sm:$0xff]
        %v375 = vld [vmem:[%s264 + $0x198] sm:$0xff]
        %v376 = vld [vmem:[%s264 + $0x1a0] sm:$0xff]
        %v377 = vld [vmem:[%s264 + $0x1a8] sm:$0xff]
        %v378 = vld [vmem:[%s264 + $0x1b0] sm:$0xff]
        %v379 = vld [vmem:[%s264 + $0x1b8] sm:$0xff]
        %v380 = vld [vmem:[%s264 + $0x1c0] sm:$0xff]
        %v381 = vld [vmem:[%s264 + $0x1c8] sm:$0xff]
        %v382 = vld [vmem:[%s264 + $0x1d0] sm:$0xff]
        %v383 = vld [vmem:[%s264 + $0x1d8] sm:$0xff]
        %v384 = vld [vmem:[%s264 + $0x1e0] sm:$0xff]
        %v385 = vld [vmem:[%s264 + $0x1e8] sm:$0xff]
        %v386 = vld [vmem:[%s264 + $0x1f0] sm:$0xff]
        %v387 = vld [vmem:[%s264 + $0x1f8] sm:$0xff]
        %v388 = vld [vmem:[%s264 + $0x200] sm:$0xff]
        %v389 = vld [vmem:[%s264 + $0x208] sm:$0xff]
        %v390 = vld [vmem:[%s264 + $0x210] sm:$0xff]
        %v391 = vld [vmem:[%s264 + $0x218] sm:$0xff]
        %v392 = vld [vmem:[%s264 + $0x220] sm:$0xff]
        %v393 = vld [vmem:[%s264 + $0x228] sm:$0xff]
        %v394 = vld [vmem:[%s264 + $0x230] sm:$0xff]
        %v395 = vld [vmem:[%s264 + $0x238] sm:$0xff]
        %v396 = vld [vmem:[%s264 + $0x240] sm:$0xff]
        %v397 = vld [vmem:[%s264 + $0x248] sm:$0xff]
        %v398 = vld [vmem:[%s264 + $0x250] sm:$0xff]
        %v399 = vld [vmem:[%s264 + $0x258] sm:$0xff]
        %v400 = vld [vmem:[%s264 + $0x260] sm:$0xff]
        %v401 = vld [vmem:[%s264 + $0x268] sm:$0xff]
        %v402 = vld [vmem:[%s264 + $0x270] sm:$0xff]
        %v403 = vld [vmem:[%s264 + $0x278] sm:$0xff]
        %v404 = vld [vmem:[%s264 + $0x280] sm:$0xff]
        %v405 = vld [vmem:[%s264 + $0x288] sm:$0xff]
        %v406 = vld [vmem:[%s264 + $0x290] sm:$0xff]
        %v407 = vld [vmem:[%s264 + $0x298] sm:$0xff]
        %v408 = vld [vmem:[%s264 + $0x2a0] sm:$0xff]
        %v409 = vld [vmem:[%s264 + $0x2a8] sm:$0xff]
        %v410 = vld [vmem:[%s264 + $0x2b0] sm:$0xff]
        %v411 = vld [vmem:[%s264 + $0x2b8] sm:$0xff]
        %v412 = vld [vmem:[%s264 + $0x2c0] sm:$0xff]
        %v413 = vld [vmem:[%s264 + $0x2c8] sm:$0xff]
        %v414 = vld [vmem:[%s264 + $0x2d0] sm:$0xff]
        %v415 = vld [vmem:[%s264 + $0x2d8] sm:$0xff]
        %v416 = vld [vmem:[%s264 + $0x2e0] sm:$0xff]
        %v417 = vld [vmem:[%s264 + $0x2e8] sm:$0xff]
        %v418 = vld [vmem:[%s264 + $0x2f0] sm:$0xff]
        %v419 = vld [vmem:[%s264 + $0x2f8] sm:$0xff]
        %v420 = vld [vmem:[%s264 + $0x300] sm:$0xff]
        %v421 = vld [vmem:[%s264 + $0x308] sm:$0xff]
        %v422 = vld [vmem:[%s264 + $0x310] sm:$0xff]
        %v423 = vld [vmem:[%s264 + $0x318] sm:$0xff]
        %v424 = vld [vmem:[%s264 + $0x320] sm:$0xff]
        %v425 = vld [vmem:[%s264 + $0x328] sm:$0xff]
        %v426 = vld [vmem:[%s264 + $0x330] sm:$0xff]
        %v427 = vld [vmem:[%s264 + $0x338] sm:$0xff]
        %v428 = vld [vmem:[%s264 + $0x340] sm:$0xff]
        %v429 = vld [vmem:[%s264 + $0x348] sm:$0xff]
        %v430 = vld [vmem:[%s264 + $0x350] sm:$0xff]
        %v431 = vld [vmem:[%s264 + $0x358] sm:$0xff]
        %v432 = vld [vmem:[%s264 + $0x360] sm:$0xff]
        %v433 = vld [vmem:[%s264 + $0x368] sm:$0xff]
        %v434 = vld [vmem:[%s264 + $0x370] sm:$0xff]
        %v435 = vld [vmem:[%s264 + $0x378] sm:$0xff]
        %v436 = vld [vmem:[%s264 + $0x380] sm:$0xff]
        %v437 = vld [vmem:[%s264 + $0x388] sm:$0xff]
        %v438 = vld [vmem:[%s264 + $0x390] sm:$0xff]
        %v439 = vld [vmem:[%s264 + $0x398] sm:$0xff]
        %v440 = vld [vmem:[%s264 + $0x3a0] sm:$0xff]
        %v441 = vld [vmem:[%s264 + $0x3a8] sm:$0xff]
        %v442 = vld [vmem:[%s264 + $0x3b0] sm:$0xff]
        %v443 = vld [vmem:[%s264 + $0x3b8] sm:$0xff]
        %v444 = vld [vmem:[%s264 + $0x3c0] sm:$0xff]
        %v445 = vld [vmem:[%s264 + $0x3c8] sm:$0xff]
        %v446 = vld [vmem:[%s264 + $0x3d0] sm:$0xff]
        %v447 = vld [vmem:[%s264 + $0x3d8] sm:$0xff]
        %v448 = vld [vmem:[%s264 + $0x3e0] sm:$0xff]
        %v449 = vld [vmem:[%s264 + $0x3e8] sm:$0xff]
        %v450 = vld [vmem:[%s264 + $0x3f0] sm:$0xff]
        %v451 = vld [vmem:[%s264 + $0x3f8] sm:$0xff]
        %v452 = vmul.f32 %v324, 0.088388346
        %v453 = vmul.f32 %v325, 0.088388346
        %v454 = vmul.f32 %v326, 0.088388346
        %v455 = vmul.f32 %v327, 0.088388346
        %v456 = vmul.f32 %v328, 0.088388346
        %v457 = vmul.f32 %v329, 0.088388346
        %v458 = vmul.f32 %v330, 0.088388346
        %v459 = vmul.f32 %v331, 0.088388346
        %v460 = vmul.f32 %v332, 0.088388346
        %v461 = vmul.f32 %v333, 0.088388346
        %v462 = vmul.f32 %v334, 0.088388346
        %v463 = vmul.f32 %v335, 0.088388346
        %v464 = vmul.f32 %v336, 0.088388346
        %v465 = vmul.f32 %v337, 0.088388346
        %v466 = vmul.f32 %v338, 0.088388346
        %v467 = vmul.f32 %v339, 0.088388346
        %v468 = vmul.f32 %v340, 0.088388346
        %v469 = vmul.f32 %v341, 0.088388346
        %v470 = vmul.f32 %v342, 0.088388346
        %v471 = vmul.f32 %v343, 0.088388346
        %v472 = vmul.f32 %v344, 0.088388346
        %v473 = vmul.f32 %v345, 0.088388346
        %v474 = vmul.f32 %v346, 0.088388346
        %v475 = vmul.f32 %v347, 0.088388346
        %v476 = vmul.f32 %v348, 0.088388346
        %v477 = vmul.f32 %v349, 0.088388346
        %v478 = vmul.f32 %v350, 0.088388346
        %v479 = vmul.f32 %v351, 0.088388346
        %v480 = vmul.f32 %v352, 0.088388346
        %v481 = vmul.f32 %v353, 0.088388346
        %v482 = vmul.f32 %v354, 0.088388346
        %v483 = vmul.f32 %v355, 0.088388346
        %v484 = vmul.f32 %v356, 0.088388346
        %v485 = vmul.f32 %v357, 0.088388346
        %v486 = vmul.f32 %v358, 0.088388346
        %v487 = vmul.f32 %v359, 0.088388346
        %v488 = vmul.f32 %v360, 0.088388346
        %v489 = vmul.f32 %v361, 0.088388346
        %v490 = vmul.f32 %v362, 0.088388346
        %v491 = vmul.f32 %v363, 0.088388346
        %v492 = vmul.f32 %v364, 0.088388346
        %v493 = vmul.f32 %v365, 0.088388346
        %v494 = vmul.f32 %v366, 0.088388346
        %v495 = vmul.f32 %v367, 0.088388346
        %v496 = vmul.f32 %v368, 0.088388346
        %v497 = vmul.f32 %v369, 0.088388346
        %v498 = vmul.f32 %v370, 0.088388346
        %v499 = vmul.f32 %v371, 0.088388346
        %v500 = vmul.f32 %v372, 0.088388346
        %v501 = vmul.f32 %v373, 0.088388346
        %v502 = vmul.f32 %v374, 0.088388346
        %v503 = vmul.f32 %v375, 0.088388346
        %v504 = vmul.f32 %v376, 0.088388346
        %v505 = vmul.f32 %v377, 0.088388346
        %v506 = vmul.f32 %v378, 0.088388346
        %v507 = vmul.f32 %v379, 0.088388346
        %v508 = vmul.f32 %v380, 0.088388346
        %v509 = vmul.f32 %v381, 0.088388346
        %v510 = vmul.f32 %v382, 0.088388346
        %v511 = vmul.f32 %v383, 0.088388346
        %v512 = vmul.f32 %v384, 0.088388346
        %v513 = vmul.f32 %v385, 0.088388346
        %v514 = vmul.f32 %v386, 0.088388346
        %v515 = vmul.f32 %v387, 0.088388346
        %v516 = vmul.f32 %v388, 0.088388346
        %v517 = vmul.f32 %v389, 0.088388346
        %v518 = vmul.f32 %v390, 0.088388346
        %v519 = vmul.f32 %v391, 0.088388346
        %v520 = vmul.f32 %v392, 0.088388346
        %v521 = vmul.f32 %v393, 0.088388346
        %v522 = vmul.f32 %v394, 0.088388346
        %v523 = vmul.f32 %v395, 0.088388346
        %v524 = vmul.f32 %v396, 0.088388346
        %v525 = vmul.f32 %v397, 0.088388346
        %v526 = vmul.f32 %v398, 0.088388346
        %v527 = vmul.f32 %v399, 0.088388346
        %v528 = vmul.f32 %v400, 0.088388346
        %v529 = vmul.f32 %v401, 0.088388346
        %v530 = vmul.f32 %v402, 0.088388346
        %v531 = vmul.f32 %v403, 0.088388346
        %v532 = vmul.f32 %v404, 0.088388346
        %v533 = vmul.f32 %v405, 0.088388346
        %v534 = vmul.f32 %v406, 0.088388346
        %v535 = vmul.f32 %v407, 0.088388346
        %v536 = vmul.f32 %v408, 0.088388346
        %v537 = vmul.f32 %v409, 0.088388346
        %v538 = vmul.f32 %v410, 0.088388346
        %v539 = vmul.f32 %v411, 0.088388346
        %v540 = vmul.f32 %v412, 0.088388346
        %v541 = vmul.f32 %v413, 0.088388346
        %v542 = vmul.f32 %v414, 0.088388346
        %v543 = vmul.f32 %v415, 0.088388346
        %v544 = vmul.f32 %v416, 0.088388346
        %v545 = vmul.f32 %v417, 0.088388346
        %v546 = vmul.f32 %v418, 0.088388346
        %v547 = vmul.f32 %v419, 0.088388346
        %v548 = vmul.f32 %v420, 0.088388346
        %v549 = vmul.f32 %v421, 0.088388346
        %v550 = vmul.f32 %v422, 0.088388346
        %v551 = vmul.f32 %v423, 0.088388346
        %v552 = vmul.f32 %v424, 0.088388346
        %v553 = vmul.f32 %v425, 0.088388346
        %v554 = vmul.f32 %v426, 0.088388346
        %v555 = vmul.f32 %v427, 0.088388346
        %v556 = vmul.f32 %v428, 0.088388346
        %v557 = vmul.f32 %v429, 0.088388346
        %v558 = vmul.f32 %v430, 0.088388346
        %v559 = vmul.f32 %v431, 0.088388346
        %v560 = vmul.f32 %v432, 0.088388346
        %v561 = vmul.f32 %v433, 0.088388346
        %v562 = vmul.f32 %v434, 0.088388346
        %v563 = vmul.f32 %v435, 0.088388346
        %v564 = vmul.f32 %v436, 0.088388346
        %v565 = vmul.f32 %v437, 0.088388346
        %v566 = vmul.f32 %v438, 0.088388346
        %v567 = vmul.f32 %v439, 0.088388346
        %v568 = vmul.f32 %v440, 0.088388346
        %v569 = vmul.f32 %v441, 0.088388346
        %v570 = vmul.f32 %v442, 0.088388346
        %v571 = vmul.f32 %v443, 0.088388346
        %v572 = vmul.f32 %v444, 0.088388346
        %v573 = vmul.f32 %v445, 0.088388346
        %v574 = vmul.f32 %v446, 0.088388346
        %v575 = vmul.f32 %v447, 0.088388346
        %v576 = vmul.f32 %v448, 0.088388346
        %v577 = vmul.f32 %v449, 0.088388346
        %v578 = vmul.f32 %v450, 0.088388346
        %v579 = vmul.f32 %v451, 0.088388346
        %v580 = vpack.c.bf16 %v452, %v452
        %v581 = vpack.c.bf16 %v453, %v453
        %v582 = vpack.c.bf16 %v454, %v454
        %v583 = vpack.c.bf16 %v455, %v455
        %v584 = vpack.c.bf16 %v456, %v456
        %v585 = vpack.c.bf16 %v457, %v457
        %v586 = vpack.c.bf16 %v458, %v458
        %v587 = vpack.c.bf16 %v459, %v459
        %v588 = vpack.c.bf16 %v460, %v460
        %v589 = vpack.c.bf16 %v461, %v461
        %v590 = vpack.c.bf16 %v462, %v462
        %v591 = vpack.c.bf16 %v463, %v463
        %v592 = vpack.c.bf16 %v464, %v464
        %v593 = vpack.c.bf16 %v465, %v465
        %v594 = vpack.c.bf16 %v466, %v466
        %v595 = vpack.c.bf16 %v467, %v467
        %v596 = vpack.c.bf16 %v468, %v468
        %v597 = vpack.c.bf16 %v469, %v469
        %v598 = vpack.c.bf16 %v470, %v470
        %v599 = vpack.c.bf16 %v471, %v471
        %v600 = vpack.c.bf16 %v472, %v472
        %v601 = vpack.c.bf16 %v473, %v473
        %v602 = vpack.c.bf16 %v474, %v474
        %v603 = vpack.c.bf16 %v475, %v475
        %v604 = vpack.c.bf16 %v476, %v476
        %v605 = vpack.c.bf16 %v477, %v477
        %v606 = vpack.c.bf16 %v478, %v478
        %v607 = vpack.c.bf16 %v479, %v479
        %v608 = vpack.c.bf16 %v480, %v480
        %v609 = vpack.c.bf16 %v481, %v481
        %v610 = vpack.c.bf16 %v482, %v482
        %v611 = vpack.c.bf16 %v483, %v483
        %v612 = vpack.c.bf16 %v484, %v484
        %v613 = vpack.c.bf16 %v485, %v485
        %v614 = vpack.c.bf16 %v486, %v486
        %v615 = vpack.c.bf16 %v487, %v487
        %v616 = vpack.c.bf16 %v488, %v488
        %v617 = vpack.c.bf16 %v489, %v489
        %v618 = vpack.c.bf16 %v490, %v490
        %v619 = vpack.c.bf16 %v491, %v491
        %v620 = vpack.c.bf16 %v492, %v492
        %v621 = vpack.c.bf16 %v493, %v493
        %v622 = vpack.c.bf16 %v494, %v494
        %v623 = vpack.c.bf16 %v495, %v495
        %v624 = vpack.c.bf16 %v496, %v496
        %v625 = vpack.c.bf16 %v497, %v497
        %v626 = vpack.c.bf16 %v498, %v498
        %v627 = vpack.c.bf16 %v499, %v499
        %v628 = vpack.c.bf16 %v500, %v500
        %v629 = vpack.c.bf16 %v501, %v501
        %v630 = vpack.c.bf16 %v502, %v502
        %v631 = vpack.c.bf16 %v503, %v503
        %v632 = vpack.c.bf16 %v504, %v504
        %v633 = vpack.c.bf16 %v505, %v505
        %v634 = vpack.c.bf16 %v506, %v506
        %v635 = vpack.c.bf16 %v507, %v507
        %v636 = vpack.c.bf16 %v508, %v508
        %v637 = vpack.c.bf16 %v509, %v509
        %v638 = vpack.c.bf16 %v510, %v510
        %v639 = vpack.c.bf16 %v511, %v511
        %v640 = vpack.c.bf16 %v512, %v512
        %v641 = vpack.c.bf16 %v513, %v513
        %v642 = vpack.c.bf16 %v514, %v514
        %v643 = vpack.c.bf16 %v515, %v515
        %v644 = vpack.c.bf16 %v516, %v516
        %v645 = vpack.c.bf16 %v517, %v517
        %v646 = vpack.c.bf16 %v518, %v518
        %v647 = vpack.c.bf16 %v519, %v519
        %v648 = vpack.c.bf16 %v520, %v520
        %v649 = vpack.c.bf16 %v521, %v521
        %v650 = vpack.c.bf16 %v522, %v522
        %v651 = vpack.c.bf16 %v523, %v523
        %v652 = vpack.c.bf16 %v524, %v524
        %v653 = vpack.c.bf16 %v525, %v525
        %v654 = vpack.c.bf16 %v526, %v526
        %v655 = vpack.c.bf16 %v527, %v527
        %v656 = vpack.c.bf16 %v528, %v528
        %v657 = vpack.c.bf16 %v529, %v529
        %v658 = vpack.c.bf16 %v530, %v530
        %v659 = vpack.c.bf16 %v531, %v531
        %v660 = vpack.c.bf16 %v532, %v532
        %v661 = vpack.c.bf16 %v533, %v533
        %v662 = vpack.c.bf16 %v534, %v534
        %v663 = vpack.c.bf16 %v535, %v535
        %v664 = vpack.c.bf16 %v536, %v536
        %v665 = vpack.c.bf16 %v537, %v537
        %v666 = vpack.c.bf16 %v538, %v538
        %v667 = vpack.c.bf16 %v539, %v539
        %v668 = vpack.c.bf16 %v540, %v540
        %v669 = vpack.c.bf16 %v541, %v541
        %v670 = vpack.c.bf16 %v542, %v542
        %v671 = vpack.c.bf16 %v543, %v543
        %v672 = vpack.c.bf16 %v544, %v544
        %v673 = vpack.c.bf16 %v545, %v545
        %v674 = vpack.c.bf16 %v546, %v546
        %v675 = vpack.c.bf16 %v547, %v547
        %v676 = vpack.c.bf16 %v548, %v548
        %v677 = vpack.c.bf16 %v549, %v549
        %v678 = vpack.c.bf16 %v550, %v550
        %v679 = vpack.c.bf16 %v551, %v551
        %v680 = vpack.c.bf16 %v552, %v552
        %v681 = vpack.c.bf16 %v553, %v553
        %v682 = vpack.c.bf16 %v554, %v554
        %v683 = vpack.c.bf16 %v555, %v555
        %v684 = vpack.c.bf16 %v556, %v556
        %v685 = vpack.c.bf16 %v557, %v557
        %v686 = vpack.c.bf16 %v558, %v558
        %v687 = vpack.c.bf16 %v559, %v559
        %v688 = vpack.c.bf16 %v560, %v560
        %v689 = vpack.c.bf16 %v561, %v561
        %v690 = vpack.c.bf16 %v562, %v562
        %v691 = vpack.c.bf16 %v563, %v563
        %v692 = vpack.c.bf16 %v564, %v564
        %v693 = vpack.c.bf16 %v565, %v565
        %v694 = vpack.c.bf16 %v566, %v566
        %v695 = vpack.c.bf16 %v567, %v567
        %v696 = vpack.c.bf16 %v568, %v568
        %v697 = vpack.c.bf16 %v569, %v569
        %v698 = vpack.c.bf16 %v570, %v570
        %v699 = vpack.c.bf16 %v571, %v571
        %v700 = vpack.c.bf16 %v572, %v572
        %v701 = vpack.c.bf16 %v573, %v573
        %v702 = vpack.c.bf16 %v574, %v574
        %v703 = vpack.c.bf16 %v575, %v575
        %v704 = vpack.c.bf16 %v576, %v576
        %v705 = vpack.c.bf16 %v577, %v577
        %v706 = vpack.c.bf16 %v578, %v578
        %v707 = vpack.c.bf16 %v579, %v579
        %v708 = vld [vmem:[%s274] sm:$0xff]
        %v709 = vld [vmem:[%s274 + $0x8] sm:$0xff]
        %v710 = vld [vmem:[%s274 + $0x10] sm:$0xff]
        %v711 = vld [vmem:[%s274 + $0x18] sm:$0xff]
        %v712 = vld [vmem:[%s274 + $0x20] sm:$0xff]
        %v713 = vld [vmem:[%s274 + $0x28] sm:$0xff]
        %v714 = vld [vmem:[%s274 + $0x30] sm:$0xff]
        %v715 = vld [vmem:[%s274 + $0x38] sm:$0xff]
        %v716 = vld [vmem:[%s274 + $0x40] sm:$0xff]
        %v717 = vld [vmem:[%s274 + $0x48] sm:$0xff]
        %v718 = vld [vmem:[%s274 + $0x50] sm:$0xff]
        %v719 = vld [vmem:[%s274 + $0x58] sm:$0xff]
        %v720 = vld [vmem:[%s274 + $0x60] sm:$0xff]
        %v721 = vld [vmem:[%s274 + $0x68] sm:$0xff]
        %v722 = vld [vmem:[%s274 + $0x70] sm:$0xff]
        %v723 = vld [vmem:[%s274 + $0x78] sm:$0xff]
        %v724 = vld [vmem:[%s274 + $0x80] sm:$0xff]
        %v725 = vld [vmem:[%s274 + $0x88] sm:$0xff]
        %v726 = vld [vmem:[%s274 + $0x90] sm:$0xff]
        %v727 = vld [vmem:[%s274 + $0x98] sm:$0xff]
        %v728 = vld [vmem:[%s274 + $0xa0] sm:$0xff]
        %v729 = vld [vmem:[%s274 + $0xa8] sm:$0xff]
        %v730 = vld [vmem:[%s274 + $0xb0] sm:$0xff]
        %v731 = vld [vmem:[%s274 + $0xb8] sm:$0xff]
        %v732 = vld [vmem:[%s274 + $0xc0] sm:$0xff]
        %v733 = vld [vmem:[%s274 + $0xc8] sm:$0xff]
        %v734 = vld [vmem:[%s274 + $0xd0] sm:$0xff]
        %v735 = vld [vmem:[%s274 + $0xd8] sm:$0xff]
        %v736 = vld [vmem:[%s274 + $0xe0] sm:$0xff]
        %v737 = vld [vmem:[%s274 + $0xe8] sm:$0xff]
        %v738 = vld [vmem:[%s274 + $0xf0] sm:$0xff]
        %v739 = vld [vmem:[%s274 + $0xf8] sm:$0xff]
        %v740 = vld [vmem:[%s274 + $0x100] sm:$0xff]
        %v741 = vld [vmem:[%s274 + $0x108] sm:$0xff]
        %v742 = vld [vmem:[%s274 + $0x110] sm:$0xff]
        %v743 = vld [vmem:[%s274 + $0x118] sm:$0xff]
        %v744 = vld [vmem:[%s274 + $0x120] sm:$0xff]
        %v745 = vld [vmem:[%s274 + $0x128] sm:$0xff]
        %v746 = vld [vmem:[%s274 + $0x130] sm:$0xff]
        %v747 = vld [vmem:[%s274 + $0x138] sm:$0xff]
        %v748 = vld [vmem:[%s274 + $0x140] sm:$0xff]
        %v749 = vld [vmem:[%s274 + $0x148] sm:$0xff]
        %v750 = vld [vmem:[%s274 + $0x150] sm:$0xff]
        %v751 = vld [vmem:[%s274 + $0x158] sm:$0xff]
        %v752 = vld [vmem:[%s274 + $0x160] sm:$0xff]
        %v753 = vld [vmem:[%s274 + $0x168] sm:$0xff]
        %v754 = vld [vmem:[%s274 + $0x170] sm:$0xff]
        %v755 = vld [vmem:[%s274 + $0x178] sm:$0xff]
        %v756 = vld [vmem:[%s274 + $0x180] sm:$0xff]
        %v757 = vld [vmem:[%s274 + $0x188] sm:$0xff]
        %v758 = vld [vmem:[%s274 + $0x190] sm:$0xff]
        %v759 = vld [vmem:[%s274 + $0x198] sm:$0xff]
        %v760 = vld [vmem:[%s274 + $0x1a0] sm:$0xff]
        %v761 = vld [vmem:[%s274 + $0x1a8] sm:$0xff]
        %v762 = vld [vmem:[%s274 + $0x1b0] sm:$0xff]
        %v763 = vld [vmem:[%s274 + $0x1b8] sm:$0xff]
        %v764 = vld [vmem:[%s274 + $0x1c0] sm:$0xff]
        %v765 = vld [vmem:[%s274 + $0x1c8] sm:$0xff]
        %v766 = vld [vmem:[%s274 + $0x1d0] sm:$0xff]
        %v767 = vld [vmem:[%s274 + $0x1d8] sm:$0xff]
        %v768 = vld [vmem:[%s274 + $0x1e0] sm:$0xff]
        %v769 = vld [vmem:[%s274 + $0x1e8] sm:$0xff]
        %v770 = vld [vmem:[%s274 + $0x1f0] sm:$0xff]
        %v771 = vld [vmem:[%s274 + $0x1f8] sm:$0xff]
        %v772 = vpack.c.bf16 %v708, %v708
        %v773 = vpack.c.bf16 %v709, %v709
        %v774 = vpack.c.bf16 %v710, %v710
        %v775 = vpack.c.bf16 %v711, %v711
        %v776 = vpack.c.bf16 %v712, %v712
        %v777 = vpack.c.bf16 %v713, %v713
        %v778 = vpack.c.bf16 %v714, %v714
        %v779 = vpack.c.bf16 %v715, %v715
        %v780 = vpack.c.bf16 %v716, %v716
        %v781 = vpack.c.bf16 %v717, %v717
        %v782 = vpack.c.bf16 %v718, %v718
        %v783 = vpack.c.bf16 %v719, %v719
        %v784 = vpack.c.bf16 %v720, %v720
        %v785 = vpack.c.bf16 %v721, %v721
        %v786 = vpack.c.bf16 %v722, %v722
        %v787 = vpack.c.bf16 %v723, %v723
        %v788 = vpack.c.bf16 %v724, %v724
        %v789 = vpack.c.bf16 %v725, %v725
        %v790 = vpack.c.bf16 %v726, %v726
        %v791 = vpack.c.bf16 %v727, %v727
        %v792 = vpack.c.bf16 %v728, %v728
        %v793 = vpack.c.bf16 %v729, %v729
        %v794 = vpack.c.bf16 %v730, %v730
        %v795 = vpack.c.bf16 %v731, %v731
        %v796 = vpack.c.bf16 %v732, %v732
        %v797 = vpack.c.bf16 %v733, %v733
        %v798 = vpack.c.bf16 %v734, %v734
        %v799 = vpack.c.bf16 %v735, %v735
        %v800 = vpack.c.bf16 %v736, %v736
        %v801 = vpack.c.bf16 %v737, %v737
        %v802 = vpack.c.bf16 %v738, %v738
        %v803 = vpack.c.bf16 %v739, %v739
        %v804 = vpack.c.bf16 %v740, %v740
        %v805 = vpack.c.bf16 %v741, %v741
        %v806 = vpack.c.bf16 %v742, %v742
        %v807 = vpack.c.bf16 %v743, %v743
        %v808 = vpack.c.bf16 %v744, %v744
        %v809 = vpack.c.bf16 %v745, %v745
        %v810 = vpack.c.bf16 %v746, %v746
        %v811 = vpack.c.bf16 %v747, %v747
        %v812 = vpack.c.bf16 %v748, %v748
        %v813 = vpack.c.bf16 %v749, %v749
        %v814 = vpack.c.bf16 %v750, %v750
        %v815 = vpack.c.bf16 %v751, %v751
        %v816 = vpack.c.bf16 %v752, %v752
        %v817 = vpack.c.bf16 %v753, %v753
        %v818 = vpack.c.bf16 %v754, %v754
        %v819 = vpack.c.bf16 %v755, %v755
        %v820 = vpack.c.bf16 %v756, %v756
        %v821 = vpack.c.bf16 %v757, %v757
        %v822 = vpack.c.bf16 %v758, %v758
        %v823 = vpack.c.bf16 %v759, %v759
        %v824 = vpack.c.bf16 %v760, %v760
        %v825 = vpack.c.bf16 %v761, %v761
        %v826 = vpack.c.bf16 %v762, %v762
        %v827 = vpack.c.bf16 %v763, %v763
        %v828 = vpack.c.bf16 %v764, %v764
        %v829 = vpack.c.bf16 %v765, %v765
        %v830 = vpack.c.bf16 %v766, %v766
        %v831 = vpack.c.bf16 %v767, %v767
        %v832 = vpack.c.bf16 %v768, %v768
        %v833 = vpack.c.bf16 %v769, %v769
        %v834 = vpack.c.bf16 %v770, %v770
        %v835 = vpack.c.bf16 %v771, %v771
        %v836 = vld [vmem:[%s284] sm:$0xff]
        %v837 = vld [vmem:[%s284 + $0x8] sm:$0xff]
        %v838 = vld [vmem:[%s284 + $0x10] sm:$0xff]
        %v839 = vld [vmem:[%s284 + $0x18] sm:$0xff]
        %v840 = vld [vmem:[%s284 + $0x20] sm:$0xff]
        %v841 = vld [vmem:[%s284 + $0x28] sm:$0xff]
        %v842 = vld [vmem:[%s284 + $0x30] sm:$0xff]
        %v843 = vld [vmem:[%s284 + $0x38] sm:$0xff]
        %v844 = vld [vmem:[%s284 + $0x40] sm:$0xff]
        %v845 = vld [vmem:[%s284 + $0x48] sm:$0xff]
        %v846 = vld [vmem:[%s284 + $0x50] sm:$0xff]
        %v847 = vld [vmem:[%s284 + $0x58] sm:$0xff]
        %v848 = vld [vmem:[%s284 + $0x60] sm:$0xff]
        %v849 = vld [vmem:[%s284 + $0x68] sm:$0xff]
        %v850 = vld [vmem:[%s284 + $0x70] sm:$0xff]
        %v851 = vld [vmem:[%s284 + $0x78] sm:$0xff]
        %v852 = vld [vmem:[%s284 + $0x80] sm:$0xff]
        %v853 = vld [vmem:[%s284 + $0x88] sm:$0xff]
        %v854 = vld [vmem:[%s284 + $0x90] sm:$0xff]
        %v855 = vld [vmem:[%s284 + $0x98] sm:$0xff]
        %v856 = vld [vmem:[%s284 + $0xa0] sm:$0xff]
        %v857 = vld [vmem:[%s284 + $0xa8] sm:$0xff]
        %v858 = vld [vmem:[%s284 + $0xb0] sm:$0xff]
        %v859 = vld [vmem:[%s284 + $0xb8] sm:$0xff]
        %v860 = vld [vmem:[%s284 + $0xc0] sm:$0xff]
        %v861 = vld [vmem:[%s284 + $0xc8] sm:$0xff]
        %v862 = vld [vmem:[%s284 + $0xd0] sm:$0xff]
        %v863 = vld [vmem:[%s284 + $0xd8] sm:$0xff]
        %v864 = vld [vmem:[%s284 + $0xe0] sm:$0xff]
        %v865 = vld [vmem:[%s284 + $0xe8] sm:$0xff]
        %v866 = vld [vmem:[%s284 + $0xf0] sm:$0xff]
        %v867 = vld [vmem:[%s284 + $0xf8] sm:$0xff]
        %v868 = vld [vmem:[%s284 + $0x100] sm:$0xff]
        %v869 = vld [vmem:[%s284 + $0x108] sm:$0xff]
        %v870 = vld [vmem:[%s284 + $0x110] sm:$0xff]
        %v871 = vld [vmem:[%s284 + $0x118] sm:$0xff]
        %v872 = vld [vmem:[%s284 + $0x120] sm:$0xff]
        %v873 = vld [vmem:[%s284 + $0x128] sm:$0xff]
        %v874 = vld [vmem:[%s284 + $0x130] sm:$0xff]
        %v875 = vld [vmem:[%s284 + $0x138] sm:$0xff]
        %v876 = vld [vmem:[%s284 + $0x140] sm:$0xff]
        %v877 = vld [vmem:[%s284 + $0x148] sm:$0xff]
        %v878 = vld [vmem:[%s284 + $0x150] sm:$0xff]
        %v879 = vld [vmem:[%s284 + $0x158] sm:$0xff]
        %v880 = vld [vmem:[%s284 + $0x160] sm:$0xff]
        %v881 = vld [vmem:[%s284 + $0x168] sm:$0xff]
        %v882 = vld [vmem:[%s284 + $0x170] sm:$0xff]
        %v883 = vld [vmem:[%s284 + $0x178] sm:$0xff]
        %v884 = vld [vmem:[%s284 + $0x180] sm:$0xff]
        %v885 = vld [vmem:[%s284 + $0x188] sm:$0xff]
        %v886 = vld [vmem:[%s284 + $0x190] sm:$0xff]
        %v887 = vld [vmem:[%s284 + $0x198] sm:$0xff]
        %v888 = vld [vmem:[%s284 + $0x1a0] sm:$0xff]
        %v889 = vld [vmem:[%s284 + $0x1a8] sm:$0xff]
        %v890 = vld [vmem:[%s284 + $0x1b0] sm:$0xff]
        %v891 = vld [vmem:[%s284 + $0x1b8] sm:$0xff]
        %v892 = vld [vmem:[%s284 + $0x1c0] sm:$0xff]
        %v893 = vld [vmem:[%s284 + $0x1c8] sm:$0xff]
        %v894 = vld [vmem:[%s284 + $0x1d0] sm:$0xff]
        %v895 = vld [vmem:[%s284 + $0x1d8] sm:$0xff]
        %v896 = vld [vmem:[%s284 + $0x1e0] sm:$0xff]
        %v897 = vld [vmem:[%s284 + $0x1e8] sm:$0xff]
        %v898 = vld [vmem:[%s284 + $0x1f0] sm:$0xff]
        %v899 = vld [vmem:[%s284 + $0x1f8] sm:$0xff]
        %v900 = vpack.c.bf16 %v836, %v836
        %v901 = vpack.c.bf16 %v837, %v837
        %v902 = vpack.c.bf16 %v838, %v838
        %v903 = vpack.c.bf16 %v839, %v839
        %v904 = vpack.c.bf16 %v840, %v840
        %v905 = vpack.c.bf16 %v841, %v841
        %v906 = vpack.c.bf16 %v842, %v842
        %v907 = vpack.c.bf16 %v843, %v843
        %v908 = vpack.c.bf16 %v844, %v844
        %v909 = vpack.c.bf16 %v845, %v845
        %v910 = vpack.c.bf16 %v846, %v846
        %v911 = vpack.c.bf16 %v847, %v847
        %v912 = vpack.c.bf16 %v848, %v848
        %v913 = vpack.c.bf16 %v849, %v849
        %v914 = vpack.c.bf16 %v850, %v850
        %v915 = vpack.c.bf16 %v851, %v851
        %v916 = vpack.c.bf16 %v852, %v852
        %v917 = vpack.c.bf16 %v853, %v853
        %v918 = vpack.c.bf16 %v854, %v854
        %v919 = vpack.c.bf16 %v855, %v855
        %v920 = vpack.c.bf16 %v856, %v856
        %v921 = vpack.c.bf16 %v857, %v857
        %v922 = vpack.c.bf16 %v858, %v858
        %v923 = vpack.c.bf16 %v859, %v859
        %v924 = vpack.c.bf16 %v860, %v860
        %v925 = vpack.c.bf16 %v861, %v861
        %v926 = vpack.c.bf16 %v862, %v862
        %v927 = vpack.c.bf16 %v863, %v863
        %v928 = vpack.c.bf16 %v864, %v864
        %v929 = vpack.c.bf16 %v865, %v865
        %v930 = vpack.c.bf16 %v866, %v866
        %v931 = vpack.c.bf16 %v867, %v867
        %v932 = vpack.c.bf16 %v868, %v868
        %v933 = vpack.c.bf16 %v869, %v869
        %v934 = vpack.c.bf16 %v870, %v870
        %v935 = vpack.c.bf16 %v871, %v871
        %v936 = vpack.c.bf16 %v872, %v872
        %v937 = vpack.c.bf16 %v873, %v873
        %v938 = vpack.c.bf16 %v874, %v874
        %v939 = vpack.c.bf16 %v875, %v875
        %v940 = vpack.c.bf16 %v876, %v876
        %v941 = vpack.c.bf16 %v877, %v877
        %v942 = vpack.c.bf16 %v878, %v878
        %v943 = vpack.c.bf16 %v879, %v879
        %v944 = vpack.c.bf16 %v880, %v880
        %v945 = vpack.c.bf16 %v881, %v881
        %v946 = vpack.c.bf16 %v882, %v882
        %v947 = vpack.c.bf16 %v883, %v883
        %v948 = vpack.c.bf16 %v884, %v884
        %v949 = vpack.c.bf16 %v885, %v885
        %v950 = vpack.c.bf16 %v886, %v886
        %v951 = vpack.c.bf16 %v887, %v887
        %v952 = vpack.c.bf16 %v888, %v888
        %v953 = vpack.c.bf16 %v889, %v889
        %v954 = vpack.c.bf16 %v890, %v890
        %v955 = vpack.c.bf16 %v891, %v891
        %v956 = vpack.c.bf16 %v892, %v892
        %v957 = vpack.c.bf16 %v893, %v893
        %v958 = vpack.c.bf16 %v894, %v894
        %v959 = vpack.c.bf16 %v895, %v895
        %v960 = vpack.c.bf16 %v896, %v896
        %v961 = vpack.c.bf16 %v897, %v897
        %v962 = vpack.c.bf16 %v898, %v898
        %v963 = vpack.c.bf16 %v899, %v899
        %v996 = vunpack.c.l.b16 %v580
        %v997 = vunpack.c.l.b16 %v581
        %v998 = vunpack.c.l.b16 %v582
        %v999 = vunpack.c.l.b16 %v583
        %v1000 = vunpack.c.l.b16 %v584
        %v1001 = vunpack.c.l.b16 %v585
        %v1002 = vunpack.c.l.b16 %v586
        %v1003 = vunpack.c.l.b16 %v587
        %v1004 = vunpack.c.l.b16 %v588
        %v1005 = vunpack.c.l.b16 %v589
        %v1006 = vunpack.c.l.b16 %v590
        %v1007 = vunpack.c.l.b16 %v591
        %v1008 = vunpack.c.l.b16 %v592
        %v1009 = vunpack.c.l.b16 %v593
        %v1010 = vunpack.c.l.b16 %v594
        %v1011 = vunpack.c.l.b16 %v595
        %v1012 = vunpack.c.l.b16 %v596
        %v1013 = vunpack.c.l.b16 %v597
        %v1014 = vunpack.c.l.b16 %v598
        %v1015 = vunpack.c.l.b16 %v599
        %v1016 = vunpack.c.l.b16 %v600
        %v1017 = vunpack.c.l.b16 %v601
        %v1018 = vunpack.c.l.b16 %v602
        %v1019 = vunpack.c.l.b16 %v603
        %v1020 = vunpack.c.l.b16 %v604
        %v1021 = vunpack.c.l.b16 %v605
        %v1022 = vunpack.c.l.b16 %v606
        %v1023 = vunpack.c.l.b16 %v607
        %v1024 = vunpack.c.l.b16 %v608
        %v1025 = vunpack.c.l.b16 %v609
        %v1026 = vunpack.c.l.b16 %v610
        %v1027 = vunpack.c.l.b16 %v611
        %v1028 = vpack.c.b16 %v997, %v996
        %v1029 = vpack.c.b16 %v999, %v998
        %v1030 = vpack.c.b16 %v1001, %v1000
        %v1031 = vpack.c.b16 %v1003, %v1002
        %v1032 = vpack.c.b16 %v1005, %v1004
        %v1033 = vpack.c.b16 %v1007, %v1006
        %v1034 = vpack.c.b16 %v1009, %v1008
        %v1035 = vpack.c.b16 %v1011, %v1010
        %v1036 = vpack.c.b16 %v1013, %v1012
        %v1037 = vpack.c.b16 %v1015, %v1014
        %v1038 = vpack.c.b16 %v1017, %v1016
        %v1039 = vpack.c.b16 %v1019, %v1018
        %v1040 = vpack.c.b16 %v1021, %v1020
        %v1041 = vpack.c.b16 %v1023, %v1022
        %v1042 = vpack.c.b16 %v1025, %v1024
        %v1043 = vpack.c.b16 %v1027, %v1026
        %v1076 = vunpack.c.l.b16 %v772
        %v1077 = vunpack.c.l.b16 %v773
        %v1078 = vunpack.c.l.b16 %v774
        %v1079 = vunpack.c.l.b16 %v775
        %v1080 = vunpack.c.l.b16 %v776
        %v1081 = vunpack.c.l.b16 %v777
        %v1082 = vunpack.c.l.b16 %v778
        %v1083 = vunpack.c.l.b16 %v779
        %v1084 = vunpack.c.l.b16 %v780
        %v1085 = vunpack.c.l.b16 %v781
        %v1086 = vunpack.c.l.b16 %v782
        %v1087 = vunpack.c.l.b16 %v783
        %v1088 = vunpack.c.l.b16 %v784
        %v1089 = vunpack.c.l.b16 %v785
        %v1090 = vunpack.c.l.b16 %v786
        %v1091 = vunpack.c.l.b16 %v787
        %v1092 = vpack.c.b16 %v1077, %v1076
        %v1093 = vpack.c.b16 %v1079, %v1078
        %v1094 = vpack.c.b16 %v1081, %v1080
        %v1095 = vpack.c.b16 %v1083, %v1082
        %v1096 = vpack.c.b16 %v1085, %v1084
        %v1097 = vpack.c.b16 %v1087, %v1086
        %v1098 = vpack.c.b16 %v1089, %v1088
        %v1099 = vpack.c.b16 %v1091, %v1090
        %1108 = vmatpush.bf16.xpose.msra.mxu0 %v1099
        %1109 = vmatpush.bf16.xpose.msra.mxu0 %v1098
        %1110 = vmatpush.bf16.xpose.msra.mxu0 %v1097
        %1111 = vmatpush.bf16.xpose.msra.mxu0 %v1096
        %1112 = vmatpush.bf16.xpose.msra.mxu0 %v1095
        %1113 = vmatpush.bf16.xpose.msra.mxu0 %v1094
        %1114 = vmatpush.bf16.xpose.msra.mxu0 %v1093
        %1115 = vmatpush.bf16.xpose.msra.mxu0 %v1092
        %1116 = vmatmul.bf16.gmra.mxu0 %v1028
        %v1117 = vpop.f32.mrf.mxu0
        %v1118 = vadd.f32 0.0, %v1117
        %v1119 = vpop.f32.mrf.mxu0
        %v1120 = vadd.f32 0.0, %v1119
        %1121 = vmatmul.bf16.gmra.mxu0 %v1029
        %v1122 = vpop.f32.mrf.mxu0
        %v1123 = vadd.f32 0.0, %v1122
        %v1124 = vpop.f32.mrf.mxu0
        %v1125 = vadd.f32 0.0, %v1124
        %1126 = vmatmul.bf16.gmra.mxu0 %v1030
        %v1127 = vpop.f32.mrf.mxu0
        %v1128 = vadd.f32 0.0, %v1127
        %v1129 = vpop.f32.mrf.mxu0
        %v1130 = vadd.f32 0.0, %v1129
        %1131 = vmatmul.bf16.gmra.mxu0 %v1031
        %v1132 = vpop.f32.mrf.mxu0
        %v1133 = vadd.f32 0.0, %v1132
        %v1134 = vpop.f32.mrf.mxu0
        %v1135 = vadd.f32 0.0, %v1134
        %1136 = vmatmul.bf16.gmra.mxu0 %v1032
        %v1137 = vpop.f32.mrf.mxu0
        %v1138 = vadd.f32 0.0, %v1137
        %v1139 = vpop.f32.mrf.mxu0
        %v1140 = vadd.f32 0.0, %v1139
        %1141 = vmatmul.bf16.gmra.mxu0 %v1033
        %v1142 = vpop.f32.mrf.mxu0
        %v1143 = vadd.f32 0.0, %v1142
        %v1144 = vpop.f32.mrf.mxu0
        %v1145 = vadd.f32 0.0, %v1144
        %1146 = vmatmul.bf16.gmra.mxu0 %v1034
        %v1147 = vpop.f32.mrf.mxu0
        %v1148 = vadd.f32 0.0, %v1147
        %v1149 = vpop.f32.mrf.mxu0
        %v1150 = vadd.f32 0.0, %v1149
        %1151 = vmatmul.bf16.gmra.mxu0 %v1035
        %v1152 = vpop.f32.mrf.mxu0
        %v1153 = vadd.f32 0.0, %v1152
        %v1154 = vpop.f32.mrf.mxu0
        %v1155 = vadd.f32 0.0, %v1154
        %1156 = vmatmul.bf16.gmra.mxu0 %v1036
        %v1157 = vpop.f32.mrf.mxu0
        %v1158 = vadd.f32 0.0, %v1157
        %v1159 = vpop.f32.mrf.mxu0
        %v1160 = vadd.f32 0.0, %v1159
        %1161 = vmatmul.bf16.gmra.mxu0 %v1037
        %v1162 = vpop.f32.mrf.mxu0
        %v1163 = vadd.f32 0.0, %v1162
        %v1164 = vpop.f32.mrf.mxu0
        %v1165 = vadd.f32 0.0, %v1164
        %1166 = vmatmul.bf16.gmra.mxu0 %v1038
        %v1167 = vpop.f32.mrf.mxu0
        %v1168 = vadd.f32 0.0, %v1167
        %v1169 = vpop.f32.mrf.mxu0
        %v1170 = vadd.f32 0.0, %v1169
        %1171 = vmatmul.bf16.gmra.mxu0 %v1039
        %v1172 = vpop.f32.mrf.mxu0
        %v1173 = vadd.f32 0.0, %v1172
        %v1174 = vpop.f32.mrf.mxu0
        %v1175 = vadd.f32 0.0, %v1174
        %1176 = vmatmul.bf16.gmra.mxu0 %v1040
        %v1177 = vpop.f32.mrf.mxu0
        %v1178 = vadd.f32 0.0, %v1177
        %v1179 = vpop.f32.mrf.mxu0
        %v1180 = vadd.f32 0.0, %v1179
        %1181 = vmatmul.bf16.gmra.mxu0 %v1041
        %v1182 = vpop.f32.mrf.mxu0
        %v1183 = vadd.f32 0.0, %v1182
        %v1184 = vpop.f32.mrf.mxu0
        %v1185 = vadd.f32 0.0, %v1184
        %1186 = vmatmul.bf16.gmra.mxu0 %v1042
        %v1187 = vpop.f32.mrf.mxu0
        %v1188 = vadd.f32 0.0, %v1187
        %v1189 = vpop.f32.mrf.mxu0
        %v1190 = vadd.f32 0.0, %v1189
        %1191 = vmatmul.bf16.gmra.mxu0 %v1043
        %v1192 = vpop.f32.mrf.mxu0
        %v1193 = vadd.f32 0.0, %v1192
        %v1194 = vpop.f32.mrf.mxu0
        %v1195 = vadd.f32 0.0, %v1194
        %1196 = vdwg.mxu0
        %v1229 = vunpack.c.l.b16 %v612
        %v1230 = vunpack.c.l.b16 %v613
        %v1231 = vunpack.c.l.b16 %v614
        %v1232 = vunpack.c.l.b16 %v615
        %v1233 = vunpack.c.l.b16 %v616
        %v1234 = vunpack.c.l.b16 %v617
        %v1235 = vunpack.c.l.b16 %v618
        %v1236 = vunpack.c.l.b16 %v619
        %v1237 = vunpack.c.l.b16 %v620
        %v1238 = vunpack.c.l.b16 %v621
        %v1239 = vunpack.c.l.b16 %v622
        %v1240 = vunpack.c.l.b16 %v623
        %v1241 = vunpack.c.l.b16 %v624
        %v1242 = vunpack.c.l.b16 %v625
        %v1243 = vunpack.c.l.b16 %v626
        %v1244 = vunpack.c.l.b16 %v627
        %v1245 = vunpack.c.l.b16 %v628
        %v1246 = vunpack.c.l.b16 %v629
        %v1247 = vunpack.c.l.b16 %v630
        %v1248 = vunpack.c.l.b16 %v631
        %v1249 = vunpack.c.l.b16 %v632
        %v1250 = vunpack.c.l.b16 %v633
        %v1251 = vunpack.c.l.b16 %v634
        %v1252 = vunpack.c.l.b16 %v635
        %v1253 = vunpack.c.l.b16 %v636
        %v1254 = vunpack.c.l.b16 %v637
        %v1255 = vunpack.c.l.b16 %v638
        %v1256 = vunpack.c.l.b16 %v639
        %v1257 = vunpack.c.l.b16 %v640
        %v1258 = vunpack.c.l.b16 %v641
        %v1259 = vunpack.c.l.b16 %v642
        %v1260 = vunpack.c.l.b16 %v643
        %v1261 = vpack.c.b16 %v1230, %v1229
        %v1262 = vpack.c.b16 %v1232, %v1231
        %v1263 = vpack.c.b16 %v1234, %v1233
        %v1264 = vpack.c.b16 %v1236, %v1235
        %v1265 = vpack.c.b16 %v1238, %v1237
        %v1266 = vpack.c.b16 %v1240, %v1239
        %v1267 = vpack.c.b16 %v1242, %v1241
        %v1268 = vpack.c.b16 %v1244, %v1243
        %v1269 = vpack.c.b16 %v1246, %v1245
        %v1270 = vpack.c.b16 %v1248, %v1247
        %v1271 = vpack.c.b16 %v1250, %v1249
        %v1272 = vpack.c.b16 %v1252, %v1251
        %v1273 = vpack.c.b16 %v1254, %v1253
        %v1274 = vpack.c.b16 %v1256, %v1255
        %v1275 = vpack.c.b16 %v1258, %v1257
        %v1276 = vpack.c.b16 %v1260, %v1259
        %v1309 = vunpack.c.l.b16 %v788
        %v1310 = vunpack.c.l.b16 %v789
        %v1311 = vunpack.c.l.b16 %v790
        %v1312 = vunpack.c.l.b16 %v791
        %v1313 = vunpack.c.l.b16 %v792
        %v1314 = vunpack.c.l.b16 %v793
        %v1315 = vunpack.c.l.b16 %v794
        %v1316 = vunpack.c.l.b16 %v795
        %v1317 = vunpack.c.l.b16 %v796
        %v1318 = vunpack.c.l.b16 %v797
        %v1319 = vunpack.c.l.b16 %v798
        %v1320 = vunpack.c.l.b16 %v799
        %v1321 = vunpack.c.l.b16 %v800
        %v1322 = vunpack.c.l.b16 %v801
        %v1323 = vunpack.c.l.b16 %v802
        %v1324 = vunpack.c.l.b16 %v803
        %v1325 = vpack.c.b16 %v1310, %v1309
        %v1326 = vpack.c.b16 %v1312, %v1311
        %v1327 = vpack.c.b16 %v1314, %v1313
        %v1328 = vpack.c.b16 %v1316, %v1315
        %v1329 = vpack.c.b16 %v1318, %v1317
        %v1330 = vpack.c.b16 %v1320, %v1319
        %v1331 = vpack.c.b16 %v1322, %v1321
        %v1332 = vpack.c.b16 %v1324, %v1323
        %1341 = vmatpush.bf16.xpose.msra.mxu0 %v1332
        %1342 = vmatpush.bf16.xpose.msra.mxu0 %v1331
        %1343 = vmatpush.bf16.xpose.msra.mxu0 %v1330
        %1344 = vmatpush.bf16.xpose.msra.mxu0 %v1329
        %1345 = vmatpush.bf16.xpose.msra.mxu0 %v1328
        %1346 = vmatpush.bf16.xpose.msra.mxu0 %v1327
        %1347 = vmatpush.bf16.xpose.msra.mxu0 %v1326
        %1348 = vmatpush.bf16.xpose.msra.mxu0 %v1325
        %1349 = vmatmul.bf16.gmra.mxu0 %v1261
        %v1350 = vpop.f32.mrf.mxu0
        %v1351 = vadd.f32 0.0, %v1350
        %v1352 = vpop.f32.mrf.mxu0
        %v1353 = vadd.f32 0.0, %v1352
        %1354 = vmatmul.bf16.gmra.mxu0 %v1262
        %v1355 = vpop.f32.mrf.mxu0
        %v1356 = vadd.f32 0.0, %v1355
        %v1357 = vpop.f32.mrf.mxu0
        %v1358 = vadd.f32 0.0, %v1357
        %1359 = vmatmul.bf16.gmra.mxu0 %v1263
        %v1360 = vpop.f32.mrf.mxu0
        %v1361 = vadd.f32 0.0, %v1360
        %v1362 = vpop.f32.mrf.mxu0
        %v1363 = vadd.f32 0.0, %v1362
        %1364 = vmatmul.bf16.gmra.mxu0 %v1264
        %v1365 = vpop.f32.mrf.mxu0
        %v1366 = vadd.f32 0.0, %v1365
        %v1367 = vpop.f32.mrf.mxu0
        %v1368 = vadd.f32 0.0, %v1367
        %1369 = vmatmul.bf16.gmra.mxu0 %v1265
        %v1370 = vpop.f32.mrf.mxu0
        %v1371 = vadd.f32 0.0, %v1370
        %v1372 = vpop.f32.mrf.mxu0
        %v1373 = vadd.f32 0.0, %v1372
        %1374 = vmatmul.bf16.gmra.mxu0 %v1266
        %v1375 = vpop.f32.mrf.mxu0
        %v1376 = vadd.f32 0.0, %v1375
        %v1377 = vpop.f32.mrf.mxu0
        %v1378 = vadd.f32 0.0, %v1377
        %1379 = vmatmul.bf16.gmra.mxu0 %v1267
        %v1380 = vpop.f32.mrf.mxu0
        %v1381 = vadd.f32 0.0, %v1380
        %v1382 = vpop.f32.mrf.mxu0
        %v1383 = vadd.f32 0.0, %v1382
        %1384 = vmatmul.bf16.gmra.mxu0 %v1268
        %v1385 = vpop.f32.mrf.mxu0
        %v1386 = vadd.f32 0.0, %v1385
        %v1387 = vpop.f32.mrf.mxu0
        %v1388 = vadd.f32 0.0, %v1387
        %1389 = vmatmul.bf16.gmra.mxu0 %v1269
        %v1390 = vpop.f32.mrf.mxu0
        %v1391 = vadd.f32 0.0, %v1390
        %v1392 = vpop.f32.mrf.mxu0
        %v1393 = vadd.f32 0.0, %v1392
        %1394 = vmatmul.bf16.gmra.mxu0 %v1270
        %v1395 = vpop.f32.mrf.mxu0
        %v1396 = vadd.f32 0.0, %v1395
        %v1397 = vpop.f32.mrf.mxu0
        %v1398 = vadd.f32 0.0, %v1397
        %1399 = vmatmul.bf16.gmra.mxu0 %v1271
        %v1400 = vpop.f32.mrf.mxu0
        %v1401 = vadd.f32 0.0, %v1400
        %v1402 = vpop.f32.mrf.mxu0
        %v1403 = vadd.f32 0.0, %v1402
        %1404 = vmatmul.bf16.gmra.mxu0 %v1272
        %v1405 = vpop.f32.mrf.mxu0
        %v1406 = vadd.f32 0.0, %v1405
        %v1407 = vpop.f32.mrf.mxu0
        %v1408 = vadd.f32 0.0, %v1407
        %1409 = vmatmul.bf16.gmra.mxu0 %v1273
        %v1410 = vpop.f32.mrf.mxu0
        %v1411 = vadd.f32 0.0, %v1410
        %v1412 = vpop.f32.mrf.mxu0
        %v1413 = vadd.f32 0.0, %v1412
        %1414 = vmatmul.bf16.gmra.mxu0 %v1274
        %v1415 = vpop.f32.mrf.mxu0
        %v1416 = vadd.f32 0.0, %v1415
        %v1417 = vpop.f32.mrf.mxu0
        %v1418 = vadd.f32 0.0, %v1417
        %1419 = vmatmul.bf16.gmra.mxu0 %v1275
        %v1420 = vpop.f32.mrf.mxu0
        %v1421 = vadd.f32 0.0, %v1420
        %v1422 = vpop.f32.mrf.mxu0
        %v1423 = vadd.f32 0.0, %v1422
        %1424 = vmatmul.bf16.gmra.mxu0 %v1276
        %v1425 = vpop.f32.mrf.mxu0
        %v1426 = vadd.f32 0.0, %v1425
        %v1427 = vpop.f32.mrf.mxu0
        %v1428 = vadd.f32 0.0, %v1427
        %1429 = vdwg.mxu0
        %v1462 = vunpack.c.l.b16 %v644
        %v1463 = vunpack.c.l.b16 %v645
        %v1464 = vunpack.c.l.b16 %v646
        %v1465 = vunpack.c.l.b16 %v647
        %v1466 = vunpack.c.l.b16 %v648
        %v1467 = vunpack.c.l.b16 %v649
        %v1468 = vunpack.c.l.b16 %v650
        %v1469 = vunpack.c.l.b16 %v651
        %v1470 = vunpack.c.l.b16 %v652
        %v1471 = vunpack.c.l.b16 %v653
        %v1472 = vunpack.c.l.b16 %v654
        %v1473 = vunpack.c.l.b16 %v655
        %v1474 = vunpack.c.l.b16 %v656
        %v1475 = vunpack.c.l.b16 %v657
        %v1476 = vunpack.c.l.b16 %v658
        %v1477 = vunpack.c.l.b16 %v659
        %v1478 = vunpack.c.l.b16 %v660
        %v1479 = vunpack.c.l.b16 %v661
        %v1480 = vunpack.c.l.b16 %v662
        %v1481 = vunpack.c.l.b16 %v663
        %v1482 = vunpack.c.l.b16 %v664
        %v1483 = vunpack.c.l.b16 %v665
        %v1484 = vunpack.c.l.b16 %v666
        %v1485 = vunpack.c.l.b16 %v667
        %v1486 = vunpack.c.l.b16 %v668
        %v1487 = vunpack.c.l.b16 %v669
        %v1488 = vunpack.c.l.b16 %v670
        %v1489 = vunpack.c.l.b16 %v671
        %v1490 = vunpack.c.l.b16 %v672
        %v1491 = vunpack.c.l.b16 %v673
        %v1492 = vunpack.c.l.b16 %v674
        %v1493 = vunpack.c.l.b16 %v675
        %v1494 = vpack.c.b16 %v1463, %v1462
        %v1495 = vpack.c.b16 %v1465, %v1464
        %v1496 = vpack.c.b16 %v1467, %v1466
        %v1497 = vpack.c.b16 %v1469, %v1468
        %v1498 = vpack.c.b16 %v1471, %v1470
        %v1499 = vpack.c.b16 %v1473, %v1472
        %v1500 = vpack.c.b16 %v1475, %v1474
        %v1501 = vpack.c.b16 %v1477, %v1476
        %v1502 = vpack.c.b16 %v1479, %v1478
        %v1503 = vpack.c.b16 %v1481, %v1480
        %v1504 = vpack.c.b16 %v1483, %v1482
        %v1505 = vpack.c.b16 %v1485, %v1484
        %v1506 = vpack.c.b16 %v1487, %v1486
        %v1507 = vpack.c.b16 %v1489, %v1488
        %v1508 = vpack.c.b16 %v1491, %v1490
        %v1509 = vpack.c.b16 %v1493, %v1492
        %v1542 = vunpack.c.l.b16 %v804
        %v1543 = vunpack.c.l.b16 %v805
        %v1544 = vunpack.c.l.b16 %v806
        %v1545 = vunpack.c.l.b16 %v807
        %v1546 = vunpack.c.l.b16 %v808
        %v1547 = vunpack.c.l.b16 %v809
        %v1548 = vunpack.c.l.b16 %v810
        %v1549 = vunpack.c.l.b16 %v811
        %v1550 = vunpack.c.l.b16 %v812
        %v1551 = vunpack.c.l.b16 %v813
        %v1552 = vunpack.c.l.b16 %v814
        %v1553 = vunpack.c.l.b16 %v815
        %v1554 = vunpack.c.l.b16 %v816
        %v1555 = vunpack.c.l.b16 %v817
        %v1556 = vunpack.c.l.b16 %v818
        %v1557 = vunpack.c.l.b16 %v819
        %v1558 = vpack.c.b16 %v1543, %v1542
        %v1559 = vpack.c.b16 %v1545, %v1544
        %v1560 = vpack.c.b16 %v1547, %v1546
        %v1561 = vpack.c.b16 %v1549, %v1548
        %v1562 = vpack.c.b16 %v1551, %v1550
        %v1563 = vpack.c.b16 %v1553, %v1552
        %v1564 = vpack.c.b16 %v1555, %v1554
        %v1565 = vpack.c.b16 %v1557, %v1556
        %1574 = vmatpush.bf16.xpose.msra.mxu0 %v1565
        %1575 = vmatpush.bf16.xpose.msra.mxu0 %v1564
        %1576 = vmatpush.bf16.xpose.msra.mxu0 %v1563
        %1577 = vmatpush.bf16.xpose.msra.mxu0 %v1562
        %1578 = vmatpush.bf16.xpose.msra.mxu0 %v1561
        %1579 = vmatpush.bf16.xpose.msra.mxu0 %v1560
        %1580 = vmatpush.bf16.xpose.msra.mxu0 %v1559
        %1581 = vmatpush.bf16.xpose.msra.mxu0 %v1558
        %1582 = vmatmul.bf16.gmra.mxu0 %v1494
        %v1583 = vpop.f32.mrf.mxu0
        %v1584 = vadd.f32 0.0, %v1583
        %v1585 = vpop.f32.mrf.mxu0
        %v1586 = vadd.f32 0.0, %v1585
        %1587 = vmatmul.bf16.gmra.mxu0 %v1495
        %v1588 = vpop.f32.mrf.mxu0
        %v1589 = vadd.f32 0.0, %v1588
        %v1590 = vpop.f32.mrf.mxu0
        %v1591 = vadd.f32 0.0, %v1590
        %1592 = vmatmul.bf16.gmra.mxu0 %v1496
        %v1593 = vpop.f32.mrf.mxu0
        %v1594 = vadd.f32 0.0, %v1593
        %v1595 = vpop.f32.mrf.mxu0
        %v1596 = vadd.f32 0.0, %v1595
        %1597 = vmatmul.bf16.gmra.mxu0 %v1497
        %v1598 = vpop.f32.mrf.mxu0
        %v1599 = vadd.f32 0.0, %v1598
        %v1600 = vpop.f32.mrf.mxu0
        %v1601 = vadd.f32 0.0, %v1600
        %1602 = vmatmul.bf16.gmra.mxu0 %v1498
        %v1603 = vpop.f32.mrf.mxu0
        %v1604 = vadd.f32 0.0, %v1603
        %v1605 = vpop.f32.mrf.mxu0
        %v1606 = vadd.f32 0.0, %v1605
        %1607 = vmatmul.bf16.gmra.mxu0 %v1499
        %v1608 = vpop.f32.mrf.mxu0
        %v1609 = vadd.f32 0.0, %v1608
        %v1610 = vpop.f32.mrf.mxu0
        %v1611 = vadd.f32 0.0, %v1610
        %1612 = vmatmul.bf16.gmra.mxu0 %v1500
        %v1613 = vpop.f32.mrf.mxu0
        %v1614 = vadd.f32 0.0, %v1613
        %v1615 = vpop.f32.mrf.mxu0
        %v1616 = vadd.f32 0.0, %v1615
        %1617 = vmatmul.bf16.gmra.mxu0 %v1501
        %v1618 = vpop.f32.mrf.mxu0
        %v1619 = vadd.f32 0.0, %v1618
        %v1620 = vpop.f32.mrf.mxu0
        %v1621 = vadd.f32 0.0, %v1620
        %1622 = vmatmul.bf16.gmra.mxu0 %v1502
        %v1623 = vpop.f32.mrf.mxu0
        %v1624 = vadd.f32 0.0, %v1623
        %v1625 = vpop.f32.mrf.mxu0
        %v1626 = vadd.f32 0.0, %v1625
        %1627 = vmatmul.bf16.gmra.mxu0 %v1503
        %v1628 = vpop.f32.mrf.mxu0
        %v1629 = vadd.f32 0.0, %v1628
        %v1630 = vpop.f32.mrf.mxu0
        %v1631 = vadd.f32 0.0, %v1630
        %1632 = vmatmul.bf16.gmra.mxu0 %v1504
        %v1633 = vpop.f32.mrf.mxu0
        %v1634 = vadd.f32 0.0, %v1633
        %v1635 = vpop.f32.mrf.mxu0
        %v1636 = vadd.f32 0.0, %v1635
        %1637 = vmatmul.bf16.gmra.mxu0 %v1505
        %v1638 = vpop.f32.mrf.mxu0
        %v1639 = vadd.f32 0.0, %v1638
        %v1640 = vpop.f32.mrf.mxu0
        %v1641 = vadd.f32 0.0, %v1640
        %1642 = vmatmul.bf16.gmra.mxu0 %v1506
        %v1643 = vpop.f32.mrf.mxu0
        %v1644 = vadd.f32 0.0, %v1643
        %v1645 = vpop.f32.mrf.mxu0
        %v1646 = vadd.f32 0.0, %v1645
        %1647 = vmatmul.bf16.gmra.mxu0 %v1507
        %v1648 = vpop.f32.mrf.mxu0
        %v1649 = vadd.f32 0.0, %v1648
        %v1650 = vpop.f32.mrf.mxu0
        %v1651 = vadd.f32 0.0, %v1650
        %1652 = vmatmul.bf16.gmra.mxu0 %v1508
        %v1653 = vpop.f32.mrf.mxu0
        %v1654 = vadd.f32 0.0, %v1653
        %v1655 = vpop.f32.mrf.mxu0
        %v1656 = vadd.f32 0.0, %v1655
        %1657 = vmatmul.bf16.gmra.mxu0 %v1509
        %v1658 = vpop.f32.mrf.mxu0
        %v1659 = vadd.f32 0.0, %v1658
        %v1660 = vpop.f32.mrf.mxu0
        %v1661 = vadd.f32 0.0, %v1660
        %1662 = vdwg.mxu0
        %v1695 = vunpack.c.l.b16 %v676
        %v1696 = vunpack.c.l.b16 %v677
        %v1697 = vunpack.c.l.b16 %v678
        %v1698 = vunpack.c.l.b16 %v679
        %v1699 = vunpack.c.l.b16 %v680
        %v1700 = vunpack.c.l.b16 %v681
        %v1701 = vunpack.c.l.b16 %v682
        %v1702 = vunpack.c.l.b16 %v683
        %v1703 = vunpack.c.l.b16 %v684
        %v1704 = vunpack.c.l.b16 %v685
        %v1705 = vunpack.c.l.b16 %v686
        %v1706 = vunpack.c.l.b16 %v687
        %v1707 = vunpack.c.l.b16 %v688
        %v1708 = vunpack.c.l.b16 %v689
        %v1709 = vunpack.c.l.b16 %v690
        %v1710 = vunpack.c.l.b16 %v691
        %v1711 = vunpack.c.l.b16 %v692
        %v1712 = vunpack.c.l.b16 %v693
        %v1713 = vunpack.c.l.b16 %v694
        %v1714 = vunpack.c.l.b16 %v695
        %v1715 = vunpack.c.l.b16 %v696
        %v1716 = vunpack.c.l.b16 %v697
        %v1717 = vunpack.c.l.b16 %v698
        %v1718 = vunpack.c.l.b16 %v699
        %v1719 = vunpack.c.l.b16 %v700
        %v1720 = vunpack.c.l.b16 %v701
        %v1721 = vunpack.c.l.b16 %v702
        %v1722 = vunpack.c.l.b16 %v703
        %v1723 = vunpack.c.l.b16 %v704
        %v1724 = vunpack.c.l.b16 %v705
        %v1725 = vunpack.c.l.b16 %v706
        %v1726 = vunpack.c.l.b16 %v707
        %v1727 = vpack.c.b16 %v1696, %v1695
        %v1728 = vpack.c.b16 %v1698, %v1697
        %v1729 = vpack.c.b16 %v1700, %v1699
        %v1730 = vpack.c.b16 %v1702, %v1701
        %v1731 = vpack.c.b16 %v1704, %v1703
        %v1732 = vpack.c.b16 %v1706, %v1705
        %v1733 = vpack.c.b16 %v1708, %v1707
        %v1734 = vpack.c.b16 %v1710, %v1709
        %v1735 = vpack.c.b16 %v1712, %v1711
        %v1736 = vpack.c.b16 %v1714, %v1713
        %v1737 = vpack.c.b16 %v1716, %v1715
        %v1738 = vpack.c.b16 %v1718, %v1717
        %v1739 = vpack.c.b16 %v1720, %v1719
        %v1740 = vpack.c.b16 %v1722, %v1721
        %v1741 = vpack.c.b16 %v1724, %v1723
        %v1742 = vpack.c.b16 %v1726, %v1725
        %v1775 = vunpack.c.l.b16 %v820
        %v1776 = vunpack.c.l.b16 %v821
        %v1777 = vunpack.c.l.b16 %v822
        %v1778 = vunpack.c.l.b16 %v823
        %v1779 = vunpack.c.l.b16 %v824
        %v1780 = vunpack.c.l.b16 %v825
        %v1781 = vunpack.c.l.b16 %v826
        %v1782 = vunpack.c.l.b16 %v827
        %v1783 = vunpack.c.l.b16 %v828
        %v1784 = vunpack.c.l.b16 %v829
        %v1785 = vunpack.c.l.b16 %v830
        %v1786 = vunpack.c.l.b16 %v831
        %v1787 = vunpack.c.l.b16 %v832
        %v1788 = vunpack.c.l.b16 %v833
        %v1789 = vunpack.c.l.b16 %v834
        %v1790 = vunpack.c.l.b16 %v835
        %v1791 = vpack.c.b16 %v1776, %v1775
        %v1792 = vpack.c.b16 %v1778, %v1777
        %v1793 = vpack.c.b16 %v1780, %v1779
        %v1794 = vpack.c.b16 %v1782, %v1781
        %v1795 = vpack.c.b16 %v1784, %v1783
        %v1796 = vpack.c.b16 %v1786, %v1785
        %v1797 = vpack.c.b16 %v1788, %v1787
        %v1798 = vpack.c.b16 %v1790, %v1789
        %1807 = vmatpush.bf16.xpose.msra.mxu0 %v1798
        %1808 = vmatpush.bf16.xpose.msra.mxu0 %v1797
        %1809 = vmatpush.bf16.xpose.msra.mxu0 %v1796
        %1810 = vmatpush.bf16.xpose.msra.mxu0 %v1795
        %1811 = vmatpush.bf16.xpose.msra.mxu0 %v1794
        %1812 = vmatpush.bf16.xpose.msra.mxu0 %v1793
        %1813 = vmatpush.bf16.xpose.msra.mxu0 %v1792
        %1814 = vmatpush.bf16.xpose.msra.mxu0 %v1791
        %1815 = vmatmul.bf16.gmra.mxu0 %v1727
        %v1816 = vpop.f32.mrf.mxu0
        %v1817 = vadd.f32 0.0, %v1816
        %v1818 = vpop.f32.mrf.mxu0
        %v1819 = vadd.f32 0.0, %v1818
        %1820 = vmatmul.bf16.gmra.mxu0 %v1728
        %v1821 = vpop.f32.mrf.mxu0
        %v1822 = vadd.f32 0.0, %v1821
        %v1823 = vpop.f32.mrf.mxu0
        %v1824 = vadd.f32 0.0, %v1823
        %1825 = vmatmul.bf16.gmra.mxu0 %v1729
        %v1826 = vpop.f32.mrf.mxu0
        %v1827 = vadd.f32 0.0, %v1826
        %v1828 = vpop.f32.mrf.mxu0
        %v1829 = vadd.f32 0.0, %v1828
        %1830 = vmatmul.bf16.gmra.mxu0 %v1730
        %v1831 = vpop.f32.mrf.mxu0
        %v1832 = vadd.f32 0.0, %v1831
        %v1833 = vpop.f32.mrf.mxu0
        %v1834 = vadd.f32 0.0, %v1833
        %1835 = vmatmul.bf16.gmra.mxu0 %v1731
        %v1836 = vpop.f32.mrf.mxu0
        %v1837 = vadd.f32 0.0, %v1836
        %v1838 = vpop.f32.mrf.mxu0
        %v1839 = vadd.f32 0.0, %v1838
        %1840 = vmatmul.bf16.gmra.mxu0 %v1732
        %v1841 = vpop.f32.mrf.mxu0
        %v1842 = vadd.f32 0.0, %v1841
        %v1843 = vpop.f32.mrf.mxu0
        %v1844 = vadd.f32 0.0, %v1843
        %1845 = vmatmul.bf16.gmra.mxu0 %v1733
        %v1846 = vpop.f32.mrf.mxu0
        %v1847 = vadd.f32 0.0, %v1846
        %v1848 = vpop.f32.mrf.mxu0
        %v1849 = vadd.f32 0.0, %v1848
        %1850 = vmatmul.bf16.gmra.mxu0 %v1734
        %v1851 = vpop.f32.mrf.mxu0
        %v1852 = vadd.f32 0.0, %v1851
        %v1853 = vpop.f32.mrf.mxu0
        %v1854 = vadd.f32 0.0, %v1853
        %1855 = vmatmul.bf16.gmra.mxu0 %v1735
        %v1856 = vpop.f32.mrf.mxu0
        %v1857 = vadd.f32 0.0, %v1856
        %v1858 = vpop.f32.mrf.mxu0
        %v1859 = vadd.f32 0.0, %v1858
        %1860 = vmatmul.bf16.gmra.mxu0 %v1736
        %v1861 = vpop.f32.mrf.mxu0
        %v1862 = vadd.f32 0.0, %v1861
        %v1863 = vpop.f32.mrf.mxu0
        %v1864 = vadd.f32 0.0, %v1863
        %1865 = vmatmul.bf16.gmra.mxu0 %v1737
        %v1866 = vpop.f32.mrf.mxu0
        %v1867 = vadd.f32 0.0, %v1866
        %v1868 = vpop.f32.mrf.mxu0
        %v1869 = vadd.f32 0.0, %v1868
        %1870 = vmatmul.bf16.gmra.mxu0 %v1738
        %v1871 = vpop.f32.mrf.mxu0
        %v1872 = vadd.f32 0.0, %v1871
        %v1873 = vpop.f32.mrf.mxu0
        %v1874 = vadd.f32 0.0, %v1873
        %1875 = vmatmul.bf16.gmra.mxu0 %v1739
        %v1876 = vpop.f32.mrf.mxu0
        %v1877 = vadd.f32 0.0, %v1876
        %v1878 = vpop.f32.mrf.mxu0
        %v1879 = vadd.f32 0.0, %v1878
        %1880 = vmatmul.bf16.gmra.mxu0 %v1740
        %v1881 = vpop.f32.mrf.mxu0
        %v1882 = vadd.f32 0.0, %v1881
        %v1883 = vpop.f32.mrf.mxu0
        %v1884 = vadd.f32 0.0, %v1883
        %1885 = vmatmul.bf16.gmra.mxu0 %v1741
        %v1886 = vpop.f32.mrf.mxu0
        %v1887 = vadd.f32 0.0, %v1886
        %v1888 = vpop.f32.mrf.mxu0
        %v1889 = vadd.f32 0.0, %v1888
        %1890 = vmatmul.bf16.gmra.mxu0 %v1742
        %v1891 = vpop.f32.mrf.mxu0
        %v1892 = vadd.f32 0.0, %v1891
        %v1893 = vpop.f32.mrf.mxu0
        %v1894 = vadd.f32 0.0, %v1893
        %1895 = vdwg.mxu0
        %s1896 = smul.u32 %s28, 256
        %p1897 = scmp.lt.s32.totalorder %s1896, 128
        // Predicated region
        $region45: #{tpu_custom_call.1} parent=31 // pred_check
          %p1898 = pneg %p1897
        $region46: #{tpu_custom_call.1} parent=31 // pred_check_branch
          %1900 = sbr.rel (%p1898) target = $region48
        $region47: #{tpu_custom_call.1} parent=31 // pred_region
          %v1901 = vlaneseq
          %v1902 = vshrl.u32 %v1901, 7
          %v1903 = vadd.s32 %v1902, 8
          %v1904 = vadd.s32 %v1902, 16
          %v1905 = vadd.s32 %v1902, 24
          %v1906 = vadd.s32 %v1902, 32
          %v1907 = vadd.s32 %v1902, 40
          %v1908 = vadd.s32 %v1902, 48
          %v1909 = vadd.s32 %v1902, 56
          %v1910 = vadd.s32 %v1902, 64
          %v1911 = vadd.s32 %v1902, 72
          %v1912 = vadd.s32 %v1902, 80
          %v1913 = vadd.s32 %v1902, 88
          %v1914 = vadd.s32 %v1902, 96
          %v1915 = vadd.s32 %v1902, 104
          %v1916 = vadd.s32 %v1902, 112
          %v1917 = vadd.s32 %v1902, 120
          %v1918 = vadd.s32 %v1902, 128
          %v1919 = vadd.s32 %v1902, 136
          %v1920 = vadd.s32 %v1902, 144
          %v1921 = vadd.s32 %v1902, 152
          %v1922 = vadd.s32 %v1902, 160
          %v1923 = vadd.s32 %v1902, 168
          %v1924 = vadd.s32 %v1902, 176
          %v1925 = vadd.s32 %v1902, 184
          %v1926 = vadd.s32 %v1902, 192
          %v1927 = vadd.s32 %v1902, 200
          %v1928 = vadd.s32 %v1902, 208
          %v1929 = vadd.s32 %v1902, 216
          %v1930 = vadd.s32 %v1902, 224
          %v1931 = vadd.s32 %v1902, 232
          %v1932 = vadd.s32 %v1902, 240
          %v1933 = vadd.s32 %v1902, 248
          %v1934 = vstv %s1896
          %v1935 = vadd.s32 %v1934, %v1902
          %v1936 = vadd.s32 %v1934, %v1903
          %v1937 = vadd.s32 %v1934, %v1904
          %v1938 = vadd.s32 %v1934, %v1905
          %v1939 = vadd.s32 %v1934, %v1906
          %v1940 = vadd.s32 %v1934, %v1907
          %v1941 = vadd.s32 %v1934, %v1908
          %v1942 = vadd.s32 %v1934, %v1909
          %v1943 = vadd.s32 %v1934, %v1910
          %v1944 = vadd.s32 %v1934, %v1911
          %v1945 = vadd.s32 %v1934, %v1912
          %v1946 = vadd.s32 %v1934, %v1913
          %v1947 = vadd.s32 %v1934, %v1914
          %v1948 = vadd.s32 %v1934, %v1915
          %v1949 = vadd.s32 %v1934, %v1916
          %v1950 = vadd.s32 %v1934, %v1917
          %v1951 = vadd.s32 %v1934, %v1918
          %v1952 = vadd.s32 %v1934, %v1919
          %v1953 = vadd.s32 %v1934, %v1920
          %v1954 = vadd.s32 %v1934, %v1921
          %v1955 = vadd.s32 %v1934, %v1922
          %v1956 = vadd.s32 %v1934, %v1923
          %v1957 = vadd.s32 %v1934, %v1924
          %v1958 = vadd.s32 %v1934, %v1925
          %v1959 = vadd.s32 %v1934, %v1926
          %v1960 = vadd.s32 %v1934, %v1927
          %v1961 = vadd.s32 %v1934, %v1928
          %v1962 = vadd.s32 %v1934, %v1929
          %v1963 = vadd.s32 %v1934, %v1930
          %v1964 = vadd.s32 %v1934, %v1931
          %v1965 = vadd.s32 %v1934, %v1932
          %v1966 = vadd.s32 %v1934, %v1933
          %v1967 = vlaneseq
          %v1968 = vand.u32 %v1967, 127
          %vm1969 = vcmp.lt.s32.totalorder %v1935, %v1968
          %vm1970 = vcmp.lt.s32.totalorder %v1936, %v1968
          %vm1971 = vcmp.lt.s32.totalorder %v1937, %v1968
          %vm1972 = vcmp.lt.s32.totalorder %v1938, %v1968
          %vm1973 = vcmp.lt.s32.totalorder %v1939, %v1968
          %vm1974 = vcmp.lt.s32.totalorder %v1940, %v1968
          %vm1975 = vcmp.lt.s32.totalorder %v1941, %v1968
          %vm1976 = vcmp.lt.s32.totalorder %v1942, %v1968
          %vm1977 = vcmp.lt.s32.totalorder %v1943, %v1968
          %vm1978 = vcmp.lt.s32.totalorder %v1944, %v1968
          %vm1979 = vcmp.lt.s32.totalorder %v1945, %v1968
          %vm1980 = vcmp.lt.s32.totalorder %v1946, %v1968
          %vm1981 = vcmp.lt.s32.totalorder %v1947, %v1968
          %vm1982 = vcmp.lt.s32.totalorder %v1948, %v1968
          %vm1983 = vcmp.lt.s32.totalorder %v1949, %v1968
          %vm1984 = vcmp.lt.s32.totalorder %v1950, %v1968
          %vm1985 = vcmp.lt.s32.totalorder %v1951, %v1968
          %vm1986 = vcmp.lt.s32.totalorder %v1952, %v1968
          %vm1987 = vcmp.lt.s32.totalorder %v1953, %v1968
          %vm1988 = vcmp.lt.s32.totalorder %v1954, %v1968
          %vm1989 = vcmp.lt.s32.totalorder %v1955, %v1968
          %vm1990 = vcmp.lt.s32.totalorder %v1956, %v1968
          %vm1991 = vcmp.lt.s32.totalorder %v1957, %v1968
          %vm1992 = vcmp.lt.s32.totalorder %v1958, %v1968
          %vm1993 = vcmp.lt.s32.totalorder %v1959, %v1968
          %vm1994 = vcmp.lt.s32.totalorder %v1960, %v1968
          %vm1995 = vcmp.lt.s32.totalorder %v1961, %v1968
          %vm1996 = vcmp.lt.s32.totalorder %v1962, %v1968
          %vm1997 = vcmp.lt.s32.totalorder %v1963, %v1968
          %vm1998 = vcmp.lt.s32.totalorder %v1964, %v1968
          %vm1999 = vcmp.lt.s32.totalorder %v1965, %v1968
          %vm2000 = vcmp.lt.s32.totalorder %v1966, %v1968
          %v2001 = vsel %vm1969, 1, 0
          %v2002 = vsel %vm1970, 1, 0
          %v2003 = vsel %vm1971, 1, 0
          %v2004 = vsel %vm1972, 1, 0
          %v2005 = vsel %vm1973, 1, 0
          %v2006 = vsel %vm1974, 1, 0
          %v2007 = vsel %vm1975, 1, 0
          %v2008 = vsel %vm1976, 1, 0
          %v2009 = vsel %vm1977, 1, 0
          %v2010 = vsel %vm1978, 1, 0
          %v2011 = vsel %vm1979, 1, 0
          %v2012 = vsel %vm1980, 1, 0
          %v2013 = vsel %vm1981, 1, 0
          %v2014 = vsel %vm1982, 1, 0
          %v2015 = vsel %vm1983, 1, 0
          %v2016 = vsel %vm1984, 1, 0
          %v2017 = vsel %vm1985, 1, 0
          %v2018 = vsel %vm1986, 1, 0
          %v2019 = vsel %vm1987, 1, 0
          %v2020 = vsel %vm1988, 1, 0
          %v2021 = vsel %vm1989, 1, 0
          %v2022 = vsel %vm1990, 1, 0
          %v2023 = vsel %vm1991, 1, 0
          %v2024 = vsel %vm1992, 1, 0
          %v2025 = vsel %vm1993, 1, 0
          %v2026 = vsel %vm1994, 1, 0
          %v2027 = vsel %vm1995, 1, 0
          %v2028 = vsel %vm1996, 1, 0
          %v2029 = vsel %vm1997, 1, 0
          %v2030 = vsel %vm1998, 1, 0
          %v2031 = vsel %vm1999, 1, 0
          %v2032 = vsel %vm2000, 1, 0
          %vm2033 = vcmp.eq.s32.totalorder %v2001, 1
          %vm2034 = vcmp.eq.s32.totalorder %v2002, 1
          %vm2035 = vcmp.eq.s32.totalorder %v2003, 1
          %vm2036 = vcmp.eq.s32.totalorder %v2004, 1
          %vm2037 = vcmp.eq.s32.totalorder %v2005, 1
          %vm2038 = vcmp.eq.s32.totalorder %v2006, 1
          %vm2039 = vcmp.eq.s32.totalorder %v2007, 1
          %vm2040 = vcmp.eq.s32.totalorder %v2008, 1
          %vm2041 = vcmp.eq.s32.totalorder %v2009, 1
          %vm2042 = vcmp.eq.s32.totalorder %v2010, 1
          %vm2043 = vcmp.eq.s32.totalorder %v2011, 1
          %vm2044 = vcmp.eq.s32.totalorder %v2012, 1
          %vm2045 = vcmp.eq.s32.totalorder %v2013, 1
          %vm2046 = vcmp.eq.s32.totalorder %v2014, 1
          %vm2047 = vcmp.eq.s32.totalorder %v2015, 1
          %vm2048 = vcmp.eq.s32.totalorder %v2016, 1
          %vm2049 = vcmp.eq.s32.totalorder %v2017, 1
          %vm2050 = vcmp.eq.s32.totalorder %v2018, 1
          %vm2051 = vcmp.eq.s32.totalorder %v2019, 1
          %vm2052 = vcmp.eq.s32.totalorder %v2020, 1
          %vm2053 = vcmp.eq.s32.totalorder %v2021, 1
          %vm2054 = vcmp.eq.s32.totalorder %v2022, 1
          %vm2055 = vcmp.eq.s32.totalorder %v2023, 1
          %vm2056 = vcmp.eq.s32.totalorder %v2024, 1
          %vm2057 = vcmp.eq.s32.totalorder %v2025, 1
          %vm2058 = vcmp.eq.s32.totalorder %v2026, 1
          %vm2059 = vcmp.eq.s32.totalorder %v2027, 1
          %vm2060 = vcmp.eq.s32.totalorder %v2028, 1
          %vm2061 = vcmp.eq.s32.totalorder %v2029, 1
          %vm2062 = vcmp.eq.s32.totalorder %v2030, 1
          %vm2063 = vcmp.eq.s32.totalorder %v2031, 1
          %vm2064 = vcmp.eq.s32.totalorder %v2032, 1
          %v2065 = vsel %vm2033, -2.3819763e+38, %v1118
          %v2066 = vsel %vm2034, -2.3819763e+38, %v1120
          %v2067 = vsel %vm2035, -2.3819763e+38, %v1123
          %v2068 = vsel %vm2036, -2.3819763e+38, %v1125
          %v2069 = vsel %vm2037, -2.3819763e+38, %v1128
          %v2070 = vsel %vm2038, -2.3819763e+38, %v1130
          %v2071 = vsel %vm2039, -2.3819763e+38, %v1133
          %v2072 = vsel %vm2040, -2.3819763e+38, %v1135
          %v2073 = vsel %vm2041, -2.3819763e+38, %v1138
          %v2074 = vsel %vm2042, -2.3819763e+38, %v1140
          %v2075 = vsel %vm2043, -2.3819763e+38, %v1143
          %v2076 = vsel %vm2044, -2.3819763e+38, %v1145
          %v2077 = vsel %vm2045, -2.3819763e+38, %v1148
          %v2078 = vsel %vm2046, -2.3819763e+38, %v1150
          %v2079 = vsel %vm2047, -2.3819763e+38, %v1153
          %v2080 = vsel %vm2048, -2.3819763e+38, %v1155
          %v2081 = vsel %vm2049, -2.3819763e+38, %v1158
          %v2082 = vsel %vm2050, -2.3819763e+38, %v1160
          %v2083 = vsel %vm2051, -2.3819763e+38, %v1163
          %v2084 = vsel %vm2052, -2.3819763e+38, %v1165
          %v2085 = vsel %vm2053, -2.3819763e+38, %v1168
          %v2086 = vsel %vm2054, -2.3819763e+38, %v1170
          %v2087 = vsel %vm2055, -2.3819763e+38, %v1173
          %v2088 = vsel %vm2056, -2.3819763e+38, %v1175
          %v2089 = vsel %vm2057, -2.3819763e+38, %v1178
          %v2090 = vsel %vm2058, -2.3819763e+38, %v1180
          %v2091 = vsel %vm2059, -2.3819763e+38, %v1183
          %v2092 = vsel %vm2060, -2.3819763e+38, %v1185
          %v2093 = vsel %vm2061, -2.3819763e+38, %v1188
          %v2094 = vsel %vm2062, -2.3819763e+38, %v1190
          %v2095 = vsel %vm2063, -2.3819763e+38, %v1193
          %v2096 = vsel %vm2064, -2.3819763e+38, %v1195
          %v2097 = vsel %vm2033, -2.3819763e+38, %v1351
          %v2098 = vsel %vm2034, -2.3819763e+38, %v1353
          %v2099 = vsel %vm2035, -2.3819763e+38, %v1356
          %v2100 = vsel %vm2036, -2.3819763e+38, %v1358
          %v2101 = vsel %vm2037, -2.3819763e+38, %v1361
          %v2102 = vsel %vm2038, -2.3819763e+38, %v1363
          %v2103 = vsel %vm2039, -2.3819763e+38, %v1366
          %v2104 = vsel %vm2040, -2.3819763e+38, %v1368
          %v2105 = vsel %vm2041, -2.3819763e+38, %v1371
          %v2106 = vsel %vm2042, -2.3819763e+38, %v1373
          %v2107 = vsel %vm2043, -2.3819763e+38, %v1376
          %v2108 = vsel %vm2044, -2.3819763e+38, %v1378
          %v2109 = vsel %vm2045, -2.3819763e+38, %v1381
          %v2110 = vsel %vm2046, -2.3819763e+38, %v1383
          %v2111 = vsel %vm2047, -2.3819763e+38, %v1386
          %v2112 = vsel %vm2048, -2.3819763e+38, %v1388
          %v2113 = vsel %vm2049, -2.3819763e+38, %v1391
          %v2114 = vsel %vm2050, -2.3819763e+38, %v1393
          %v2115 = vsel %vm2051, -2.3819763e+38, %v1396
          %v2116 = vsel %vm2052, -2.3819763e+38, %v1398
          %v2117 = vsel %vm2053, -2.3819763e+38, %v1401
          %v2118 = vsel %vm2054, -2.3819763e+38, %v1403
          %v2119 = vsel %vm2055, -2.3819763e+38, %v1406
          %v2120 = vsel %vm2056, -2.3819763e+38, %v1408
          %v2121 = vsel %vm2057, -2.3819763e+38, %v1411
          %v2122 = vsel %vm2058, -2.3819763e+38, %v1413
          %v2123 = vsel %vm2059, -2.3819763e+38, %v1416
          %v2124 = vsel %vm2060, -2.3819763e+38, %v1418
          %v2125 = vsel %vm2061, -2.3819763e+38, %v1421
          %v2126 = vsel %vm2062, -2.3819763e+38, %v1423
          %v2127 = vsel %vm2063, -2.3819763e+38, %v1426
          %v2128 = vsel %vm2064, -2.3819763e+38, %v1428
          %v2129 = vsel %vm2033, -2.3819763e+38, %v1584
          %v2130 = vsel %vm2034, -2.3819763e+38, %v1586
          %v2131 = vsel %vm2035, -2.3819763e+38, %v1589
          %v2132 = vsel %vm2036, -2.3819763e+38, %v1591
          %v2133 = vsel %vm2037, -2.3819763e+38, %v1594
          %v2134 = vsel %vm2038, -2.3819763e+38, %v1596
          %v2135 = vsel %vm2039, -2.3819763e+38, %v1599
          %v2136 = vsel %vm2040, -2.3819763e+38, %v1601
          %v2137 = vsel %vm2041, -2.3819763e+38, %v1604
          %v2138 = vsel %vm2042, -2.3819763e+38, %v1606
          %v2139 = vsel %vm2043, -2.3819763e+38, %v1609
          %v2140 = vsel %vm2044, -2.3819763e+38, %v1611
          %v2141 = vsel %vm2045, -2.3819763e+38, %v1614
          %v2142 = vsel %vm2046, -2.3819763e+38, %v1616
          %v2143 = vsel %vm2047, -2.3819763e+38, %v1619
          %v2144 = vsel %vm2048, -2.3819763e+38, %v1621
          %v2145 = vsel %vm2049, -2.3819763e+38, %v1624
          %v2146 = vsel %vm2050, -2.3819763e+38, %v1626
          %v2147 = vsel %vm2051, -2.3819763e+38, %v1629
          %v2148 = vsel %vm2052, -2.3819763e+38, %v1631
          %v2149 = vsel %vm2053, -2.3819763e+38, %v1634
          %v2150 = vsel %vm2054, -2.3819763e+38, %v1636
          %v2151 = vsel %vm2055, -2.3819763e+38, %v1639
          %v2152 = vsel %vm2056, -2.3819763e+38, %v1641
          %v2153 = vsel %vm2057, -2.3819763e+38, %v1644
          %v2154 = vsel %vm2058, -2.3819763e+38, %v1646
          %v2155 = vsel %vm2059, -2.3819763e+38, %v1649
          %v2156 = vsel %vm2060, -2.3819763e+38, %v1651
          %v2157 = vsel %vm2061, -2.3819763e+38, %v1654
          %v2158 = vsel %vm2062, -2.3819763e+38, %v1656
          %v2159 = vsel %vm2063, -2.3819763e+38, %v1659
          %v2160 = vsel %vm2064, -2.3819763e+38, %v1661
          %v2161 = vsel %vm2033, -2.3819763e+38, %v1817
          %v2162 = vsel %vm2034, -2.3819763e+38, %v1819
          %v2163 = vsel %vm2035, -2.3819763e+38, %v1822
          %v2164 = vsel %vm2036, -2.3819763e+38, %v1824
          %v2165 = vsel %vm2037, -2.3819763e+38, %v1827
          %v2166 = vsel %vm2038, -2.3819763e+38, %v1829
          %v2167 = vsel %vm2039, -2.3819763e+38, %v1832
          %v2168 = vsel %vm2040, -2.3819763e+38, %v1834
          %v2169 = vsel %vm2041, -2.3819763e+38, %v1837
          %v2170 = vsel %vm2042, -2.3819763e+38, %v1839
          %v2171 = vsel %vm2043, -2.3819763e+38, %v1842
          %v2172 = vsel %vm2044, -2.3819763e+38, %v1844
          %v2173 = vsel %vm2045, -2.3819763e+38, %v1847
          %v2174 = vsel %vm2046, -2.3819763e+38, %v1849
          %v2175 = vsel %vm2047, -2.3819763e+38, %v1852
          %v2176 = vsel %vm2048, -2.3819763e+38, %v1854
          %v2177 = vsel %vm2049, -2.3819763e+38, %v1857
          %v2178 = vsel %vm2050, -2.3819763e+38, %v1859
          %v2179 = vsel %vm2051, -2.3819763e+38, %v1862
          %v2180 = vsel %vm2052, -2.3819763e+38, %v1864
          %v2181 = vsel %vm2053, -2.3819763e+38, %v1867
          %v2182 = vsel %vm2054, -2.3819763e+38, %v1869
          %v2183 = vsel %vm2055, -2.3819763e+38, %v1872
          %v2184 = vsel %vm2056, -2.3819763e+38, %v1874
          %v2185 = vsel %vm2057, -2.3819763e+38, %v1877
          %v2186 = vsel %vm2058, -2.3819763e+38, %v1879
          %v2187 = vsel %vm2059, -2.3819763e+38, %v1882
          %v2188 = vsel %vm2060, -2.3819763e+38, %v1884
          %v2189 = vsel %vm2061, -2.3819763e+38, %v1887
          %v2190 = vsel %vm2062, -2.3819763e+38, %v1889
          %v2191 = vsel %vm2063, -2.3819763e+38, %v1892
          %v2192 = vsel %vm2064, -2.3819763e+38, %v1894
          %2193 = vmax.xlane.f32.xlu0 %v2065
          %v2194 = vpop.xlane.xlu0 %2193
          %2195 = vmax.xlane.f32.xlu0 %v2066
          %v2196 = vpop.xlane.xlu0 %2195
          %2197 = vmax.xlane.f32.xlu0 %v2067
          %v2198 = vpop.xlane.xlu0 %2197
          %2199 = vmax.xlane.f32.xlu0 %v2068
          %v2200 = vpop.xlane.xlu0 %2199
          %2201 = vmax.xlane.f32.xlu0 %v2069
          %v2202 = vpop.xlane.xlu0 %2201
          %2203 = vmax.xlane.f32.xlu0 %v2070
          %v2204 = vpop.xlane.xlu0 %2203
          %2205 = vmax.xlane.f32.xlu0 %v2071
          %v2206 = vpop.xlane.xlu0 %2205
          %2207 = vmax.xlane.f32.xlu0 %v2072
          %v2208 = vpop.xlane.xlu0 %2207
          %2209 = vmax.xlane.f32.xlu0 %v2073
          %v2210 = vpop.xlane.xlu0 %2209
          %2211 = vmax.xlane.f32.xlu0 %v2074
          %v2212 = vpop.xlane.xlu0 %2211
          %2213 = vmax.xlane.f32.xlu0 %v2075
          %v2214 = vpop.xlane.xlu0 %2213
          %2215 = vmax.xlane.f32.xlu0 %v2076
          %v2216 = vpop.xlane.xlu0 %2215
          %2217 = vmax.xlane.f32.xlu0 %v2077
          %v2218 = vpop.xlane.xlu0 %2217
          %2219 = vmax.xlane.f32.xlu0 %v2078
          %v2220 = vpop.xlane.xlu0 %2219
          %2221 = vmax.xlane.f32.xlu0 %v2079
          %v2222 = vpop.xlane.xlu0 %2221
          %2223 = vmax.xlane.f32.xlu0 %v2080
          %v2224 = vpop.xlane.xlu0 %2223
          %2225 = vmax.xlane.f32.xlu0 %v2081
          %v2226 = vpop.xlane.xlu0 %2225
          %2227 = vmax.xlane.f32.xlu0 %v2082
          %v2228 = vpop.xlane.xlu0 %2227
          %2229 = vmax.xlane.f32.xlu0 %v2083
          %v2230 = vpop.xlane.xlu0 %2229
          %2231 = vmax.xlane.f32.xlu0 %v2084
          %v2232 = vpop.xlane.xlu0 %2231
          %2233 = vmax.xlane.f32.xlu0 %v2085
          %v2234 = vpop.xlane.xlu0 %2233
          %2235 = vmax.xlane.f32.xlu0 %v2086
          %v2236 = vpop.xlane.xlu0 %2235
          %2237 = vmax.xlane.f32.xlu0 %v2087
          %v2238 = vpop.xlane.xlu0 %2237
          %2239 = vmax.xlane.f32.xlu0 %v2088
          %v2240 = vpop.xlane.xlu0 %2239
          %2241 = vmax.xlane.f32.xlu0 %v2089
          %v2242 = vpop.xlane.xlu0 %2241
          %2243 = vmax.xlane.f32.xlu0 %v2090
          %v2244 = vpop.xlane.xlu0 %2243
          %2245 = vmax.xlane.f32.xlu0 %v2091
          %v2246 = vpop.xlane.xlu0 %2245
          %2247 = vmax.xlane.f32.xlu0 %v2092
          %v2248 = vpop.xlane.xlu0 %2247
          %2249 = vmax.xlane.f32.xlu0 %v2093
          %v2250 = vpop.xlane.xlu0 %2249
          %2251 = vmax.xlane.f32.xlu0 %v2094
          %v2252 = vpop.xlane.xlu0 %2251
          %2253 = vmax.xlane.f32.xlu0 %v2095
          %v2254 = vpop.xlane.xlu0 %2253
          %2255 = vmax.xlane.f32.xlu0 %v2096
          %v2256 = vpop.xlane.xlu0 %2255
          %2257 = vmax.xlane.f32.xlu0 %v2097
          %v2258 = vpop.xlane.xlu0 %2257
          %2259 = vmax.xlane.f32.xlu0 %v2098
          %v2260 = vpop.xlane.xlu0 %2259
          %2261 = vmax.xlane.f32.xlu0 %v2099
          %v2262 = vpop.xlane.xlu0 %2261
          %2263 = vmax.xlane.f32.xlu0 %v2100
          %v2264 = vpop.xlane.xlu0 %2263
          %2265 = vmax.xlane.f32.xlu0 %v2101
          %v2266 = vpop.xlane.xlu0 %2265
          %2267 = vmax.xlane.f32.xlu0 %v2102
          %v2268 = vpop.xlane.xlu0 %2267
          %2269 = vmax.xlane.f32.xlu0 %v2103
          %v2270 = vpop.xlane.xlu0 %2269
          %2271 = vmax.xlane.f32.xlu0 %v2104
          %v2272 = vpop.xlane.xlu0 %2271
          %2273 = vmax.xlane.f32.xlu0 %v2105
          %v2274 = vpop.xlane.xlu0 %2273
          %2275 = vmax.xlane.f32.xlu0 %v2106
          %v2276 = vpop.xlane.xlu0 %2275
          %2277 = vmax.xlane.f32.xlu0 %v2107
          %v2278 = vpop.xlane.xlu0 %2277
          %2279 = vmax.xlane.f32.xlu0 %v2108
          %v2280 = vpop.xlane.xlu0 %2279
          %2281 = vmax.xlane.f32.xlu0 %v2109
          %v2282 = vpop.xlane.xlu0 %2281
          %2283 = vmax.xlane.f32.xlu0 %v2110
          %v2284 = vpop.xlane.xlu0 %2283
          %2285 = vmax.xlane.f32.xlu0 %v2111
          %v2286 = vpop.xlane.xlu0 %2285
          %2287 = vmax.xlane.f32.xlu0 %v2112
          %v2288 = vpop.xlane.xlu0 %2287
          %2289 = vmax.xlane.f32.xlu0 %v2113
          %v2290 = vpop.xlane.xlu0 %2289
          %2291 = vmax.xlane.f32.xlu0 %v2114
          %v2292 = vpop.xlane.xlu0 %2291
          %2293 = vmax.xlane.f32.xlu0 %v2115
          %v2294 = vpop.xlane.xlu0 %2293
          %2295 = vmax.xlane.f32.xlu0 %v2116
          %v2296 = vpop.xlane.xlu0 %2295
          %2297 = vmax.xlane.f32.xlu0 %v2117
          %v2298 = vpop.xlane.xlu0 %2297
          %2299 = vmax.xlane.f32.xlu0 %v2118
          %v2300 = vpop.xlane.xlu0 %2299
          %2301 = vmax.xlane.f32.xlu0 %v2119
          %v2302 = vpop.xlane.xlu0 %2301
          %2303 = vmax.xlane.f32.xlu0 %v2120
          %v2304 = vpop.xlane.xlu0 %2303
          %2305 = vmax.xlane.f32.xlu0 %v2121
          %v2306 = vpop.xlane.xlu0 %2305
          %2307 = vmax.xlane.f32.xlu0 %v2122
          %v2308 = vpop.xlane.xlu0 %2307
          %2309 = vmax.xlane.f32.xlu0 %v2123
          %v2310 = vpop.xlane.xlu0 %2309
          %2311 = vmax.xlane.f32.xlu0 %v2124
          %v2312 = vpop.xlane.xlu0 %2311
          %2313 = vmax.xlane.f32.xlu0 %v2125
          %v2314 = vpop.xlane.xlu0 %2313
          %2315 = vmax.xlane.f32.xlu0 %v2126
          %v2316 = vpop.xlane.xlu0 %2315
          %2317 = vmax.xlane.f32.xlu0 %v2127
          %v2318 = vpop.xlane.xlu0 %2317
          %2319 = vmax.xlane.f32.xlu0 %v2128
          %v2320 = vpop.xlane.xlu0 %2319
          %2321 = vmax.xlane.f32.xlu0 %v2129
          %v2322 = vpop.xlane.xlu0 %2321
          %2323 = vmax.xlane.f32.xlu0 %v2130
          %v2324 = vpop.xlane.xlu0 %2323
          %2325 = vmax.xlane.f32.xlu0 %v2131
          %v2326 = vpop.xlane.xlu0 %2325
          %2327 = vmax.xlane.f32.xlu0 %v2132
          %v2328 = vpop.xlane.xlu0 %2327
          %2329 = vmax.xlane.f32.xlu0 %v2133
          %v2330 = vpop.xlane.xlu0 %2329
          %2331 = vmax.xlane.f32.xlu0 %v2134
          %v2332 = vpop.xlane.xlu0 %2331
          %2333 = vmax.xlane.f32.xlu0 %v2135
          %v2334 = vpop.xlane.xlu0 %2333
          %2335 = vmax.xlane.f32.xlu0 %v2136
          %v2336 = vpop.xlane.xlu0 %2335
          %2337 = vmax.xlane.f32.xlu0 %v2137
          %v2338 = vpop.xlane.xlu0 %2337
          %2339 = vmax.xlane.f32.xlu0 %v2138
          %v2340 = vpop.xlane.xlu0 %2339
          %2341 = vmax.xlane.f32.xlu0 %v2139
          %v2342 = vpop.xlane.xlu0 %2341
          %2343 = vmax.xlane.f32.xlu0 %v2140
          %v2344 = vpop.xlane.xlu0 %2343
          %2345 = vmax.xlane.f32.xlu0 %v2141
          %v2346 = vpop.xlane.xlu0 %2345
          %2347 = vmax.xlane.f32.xlu0 %v2142
          %v2348 = vpop.xlane.xlu0 %2347
          %2349 = vmax.xlane.f32.xlu0 %v2143
          %v2350 = vpop.xlane.xlu0 %2349
          %2351 = vmax.xlane.f32.xlu0 %v2144
          %v2352 = vpop.xlane.xlu0 %2351
          %2353 = vmax.xlane.f32.xlu0 %v2145
          %v2354 = vpop.xlane.xlu0 %2353
          %2355 = vmax.xlane.f32.xlu0 %v2146
          %v2356 = vpop.xlane.xlu0 %2355
          %2357 = vmax.xlane.f32.xlu0 %v2147
          %v2358 = vpop.xlane.xlu0 %2357
          %2359 = vmax.xlane.f32.xlu0 %v2148
          %v2360 = vpop.xlane.xlu0 %2359
          %2361 = vmax.xlane.f32.xlu0 %v2149
          %v2362 = vpop.xlane.xlu0 %2361
          %2363 = vmax.xlane.f32.xlu0 %v2150
          %v2364 = vpop.xlane.xlu0 %2363
          %2365 = vmax.xlane.f32.xlu0 %v2151
          %v2366 = vpop.xlane.xlu0 %2365
          %2367 = vmax.xlane.f32.xlu0 %v2152
          %v2368 = vpop.xlane.xlu0 %2367
          %2369 = vmax.xlane.f32.xlu0 %v2153
          %v2370 = vpop.xlane.xlu0 %2369
          %2371 = vmax.xlane.f32.xlu0 %v2154
          %v2372 = vpop.xlane.xlu0 %2371
          %2373 = vmax.xlane.f32.xlu0 %v2155
          %v2374 = vpop.xlane.xlu0 %2373
          %2375 = vmax.xlane.f32.xlu0 %v2156
          %v2376 = vpop.xlane.xlu0 %2375
          %2377 = vmax.xlane.f32.xlu0 %v2157
          %v2378 = vpop.xlane.xlu0 %2377
          %2379 = vmax.xlane.f32.xlu0 %v2158
          %v2380 = vpop.xlane.xlu0 %2379
          %2381 = vmax.xlane.f32.xlu0 %v2159
          %v2382 = vpop.xlane.xlu0 %2381
          %2383 = vmax.xlane.f32.xlu0 %v2160
          %v2384 = vpop.xlane.xlu0 %2383
          %2385 = vmax.xlane.f32.xlu0 %v2161
          %v2386 = vpop.xlane.xlu0 %2385
          %2387 = vmax.xlane.f32.xlu0 %v2162
          %v2388 = vpop.xlane.xlu0 %2387
          %2389 = vmax.xlane.f32.xlu0 %v2163
          %v2390 = vpop.xlane.xlu0 %2389
          %2391 = vmax.xlane.f32.xlu0 %v2164
          %v2392 = vpop.xlane.xlu0 %2391
          %2393 = vmax.xlane.f32.xlu0 %v2165
          %v2394 = vpop.xlane.xlu0 %2393
          %2395 = vmax.xlane.f32.xlu0 %v2166
          %v2396 = vpop.xlane.xlu0 %2395
          %2397 = vmax.xlane.f32.xlu0 %v2167
          %v2398 = vpop.xlane.xlu0 %2397
          %2399 = vmax.xlane.f32.xlu0 %v2168
          %v2400 = vpop.xlane.xlu0 %2399
          %2401 = vmax.xlane.f32.xlu0 %v2169
          %v2402 = vpop.xlane.xlu0 %2401
          %2403 = vmax.xlane.f32.xlu0 %v2170
          %v2404 = vpop.xlane.xlu0 %2403
          %2405 = vmax.xlane.f32.xlu0 %v2171
          %v2406 = vpop.xlane.xlu0 %2405
          %2407 = vmax.xlane.f32.xlu0 %v2172
          %v2408 = vpop.xlane.xlu0 %2407
          %2409 = vmax.xlane.f32.xlu0 %v2173
          %v2410 = vpop.xlane.xlu0 %2409
          %2411 = vmax.xlane.f32.xlu0 %v2174
          %v2412 = vpop.xlane.xlu0 %2411
          %2413 = vmax.xlane.f32.xlu0 %v2175
          %v2414 = vpop.xlane.xlu0 %2413
          %2415 = vmax.xlane.f32.xlu0 %v2176
          %v2416 = vpop.xlane.xlu0 %2415
          %2417 = vmax.xlane.f32.xlu0 %v2177
          %v2418 = vpop.xlane.xlu0 %2417
          %2419 = vmax.xlane.f32.xlu0 %v2178
          %v2420 = vpop.xlane.xlu0 %2419
          %2421 = vmax.xlane.f32.xlu0 %v2179
          %v2422 = vpop.xlane.xlu0 %2421
          %2423 = vmax.xlane.f32.xlu0 %v2180
          %v2424 = vpop.xlane.xlu0 %2423
          %2425 = vmax.xlane.f32.xlu0 %v2181
          %v2426 = vpop.xlane.xlu0 %2425
          %2427 = vmax.xlane.f32.xlu0 %v2182
          %v2428 = vpop.xlane.xlu0 %2427
          %2429 = vmax.xlane.f32.xlu0 %v2183
          %v2430 = vpop.xlane.xlu0 %2429
          %2431 = vmax.xlane.f32.xlu0 %v2184
          %v2432 = vpop.xlane.xlu0 %2431
          %2433 = vmax.xlane.f32.xlu0 %v2185
          %v2434 = vpop.xlane.xlu0 %2433
          %2435 = vmax.xlane.f32.xlu0 %v2186
          %v2436 = vpop.xlane.xlu0 %2435
          %2437 = vmax.xlane.f32.xlu0 %v2187
          %v2438 = vpop.xlane.xlu0 %2437
          %2439 = vmax.xlane.f32.xlu0 %v2188
          %v2440 = vpop.xlane.xlu0 %2439
          %2441 = vmax.xlane.f32.xlu0 %v2189
          %v2442 = vpop.xlane.xlu0 %2441
          %2443 = vmax.xlane.f32.xlu0 %v2190
          %v2444 = vpop.xlane.xlu0 %2443
          %2445 = vmax.xlane.f32.xlu0 %v2191
          %v2446 = vpop.xlane.xlu0 %2445
          %2447 = vmax.xlane.f32.xlu0 %v2192
          %v2448 = vpop.xlane.xlu0 %2447
          %v2449 = vsub.f32 %v2065, %v2194
          %v2450 = vsub.f32 %v2066, %v2196
          %v2451 = vsub.f32 %v2067, %v2198
          %v2452 = vsub.f32 %v2068, %v2200
          %v2453 = vsub.f32 %v2069, %v2202
          %v2454 = vsub.f32 %v2070, %v2204
          %v2455 = vsub.f32 %v2071, %v2206
          %v2456 = vsub.f32 %v2072, %v2208
          %v2457 = vsub.f32 %v2073, %v2210
          %v2458 = vsub.f32 %v2074, %v2212
          %v2459 = vsub.f32 %v2075, %v2214
          %v2460 = vsub.f32 %v2076, %v2216
          %v2461 = vsub.f32 %v2077, %v2218
          %v2462 = vsub.f32 %v2078, %v2220
          %v2463 = vsub.f32 %v2079, %v2222
          %v2464 = vsub.f32 %v2080, %v2224
          %v2465 = vsub.f32 %v2081, %v2226
          %v2466 = vsub.f32 %v2082, %v2228
          %v2467 = vsub.f32 %v2083, %v2230
          %v2468 = vsub.f32 %v2084, %v2232
          %v2469 = vsub.f32 %v2085, %v2234
          %v2470 = vsub.f32 %v2086, %v2236
          %v2471 = vsub.f32 %v2087, %v2238
          %v2472 = vsub.f32 %v2088, %v2240
          %v2473 = vsub.f32 %v2089, %v2242
          %v2474 = vsub.f32 %v2090, %v2244
          %v2475 = vsub.f32 %v2091, %v2246
          %v2476 = vsub.f32 %v2092, %v2248
          %v2477 = vsub.f32 %v2093, %v2250
          %v2478 = vsub.f32 %v2094, %v2252
          %v2479 = vsub.f32 %v2095, %v2254
          %v2480 = vsub.f32 %v2096, %v2256
          %v2481 = vsub.f32 %v2097, %v2258
          %v2482 = vsub.f32 %v2098, %v2260
          %v2483 = vsub.f32 %v2099, %v2262
          %v2484 = vsub.f32 %v2100, %v2264
          %v2485 = vsub.f32 %v2101, %v2266
          %v2486 = vsub.f32 %v2102, %v2268
          %v2487 = vsub.f32 %v2103, %v2270
          %v2488 = vsub.f32 %v2104, %v2272
          %v2489 = vsub.f32 %v2105, %v2274
          %v2490 = vsub.f32 %v2106, %v2276
          %v2491 = vsub.f32 %v2107, %v2278
          %v2492 = vsub.f32 %v2108, %v2280
          %v2493 = vsub.f32 %v2109, %v2282
          %v2494 = vsub.f32 %v2110, %v2284
          %v2495 = vsub.f32 %v2111, %v2286
          %v2496 = vsub.f32 %v2112, %v2288
          %v2497 = vsub.f32 %v2113, %v2290
          %v2498 = vsub.f32 %v2114, %v2292
          %v2499 = vsub.f32 %v2115, %v2294
          %v2500 = vsub.f32 %v2116, %v2296
          %v2501 = vsub.f32 %v2117, %v2298
          %v2502 = vsub.f32 %v2118, %v2300
          %v2503 = vsub.f32 %v2119, %v2302
          %v2504 = vsub.f32 %v2120, %v2304
          %v2505 = vsub.f32 %v2121, %v2306
          %v2506 = vsub.f32 %v2122, %v2308
          %v2507 = vsub.f32 %v2123, %v2310
          %v2508 = vsub.f32 %v2124, %v2312
          %v2509 = vsub.f32 %v2125, %v2314
          %v2510 = vsub.f32 %v2126, %v2316
          %v2511 = vsub.f32 %v2127, %v2318
          %v2512 = vsub.f32 %v2128, %v2320
          %v2513 = vsub.f32 %v2129, %v2322
          %v2514 = vsub.f32 %v2130, %v2324
          %v2515 = vsub.f32 %v2131, %v2326
          %v2516 = vsub.f32 %v2132, %v2328
          %v2517 = vsub.f32 %v2133, %v2330
          %v2518 = vsub.f32 %v2134, %v2332
          %v2519 = vsub.f32 %v2135, %v2334
          %v2520 = vsub.f32 %v2136, %v2336
          %v2521 = vsub.f32 %v2137, %v2338
          %v2522 = vsub.f32 %v2138, %v2340
          %v2523 = vsub.f32 %v2139, %v2342
          %v2524 = vsub.f32 %v2140, %v2344
          %v2525 = vsub.f32 %v2141, %v2346
          %v2526 = vsub.f32 %v2142, %v2348
          %v2527 = vsub.f32 %v2143, %v2350
          %v2528 = vsub.f32 %v2144, %v2352
          %v2529 = vsub.f32 %v2145, %v2354
          %v2530 = vsub.f32 %v2146, %v2356
          %v2531 = vsub.f32 %v2147, %v2358
          %v2532 = vsub.f32 %v2148, %v2360
          %v2533 = vsub.f32 %v2149, %v2362
          %v2534 = vsub.f32 %v2150, %v2364
          %v2535 = vsub.f32 %v2151, %v2366
          %v2536 = vsub.f32 %v2152, %v2368
          %v2537 = vsub.f32 %v2153, %v2370
          %v2538 = vsub.f32 %v2154, %v2372
          %v2539 = vsub.f32 %v2155, %v2374
          %v2540 = vsub.f32 %v2156, %v2376
          %v2541 = vsub.f32 %v2157, %v2378
          %v2542 = vsub.f32 %v2158, %v2380
          %v2543 = vsub.f32 %v2159, %v2382
          %v2544 = vsub.f32 %v2160, %v2384
          %v2545 = vsub.f32 %v2161, %v2386
          %v2546 = vsub.f32 %v2162, %v2388
          %v2547 = vsub.f32 %v2163, %v2390
          %v2548 = vsub.f32 %v2164, %v2392
          %v2549 = vsub.f32 %v2165, %v2394
          %v2550 = vsub.f32 %v2166, %v2396
          %v2551 = vsub.f32 %v2167, %v2398
          %v2552 = vsub.f32 %v2168, %v2400
          %v2553 = vsub.f32 %v2169, %v2402
          %v2554 = vsub.f32 %v2170, %v2404
          %v2555 = vsub.f32 %v2171, %v2406
          %v2556 = vsub.f32 %v2172, %v2408
          %v2557 = vsub.f32 %v2173, %v2410
          %v2558 = vsub.f32 %v2174, %v2412
          %v2559 = vsub.f32 %v2175, %v2414
          %v2560 = vsub.f32 %v2176, %v2416
          %v2561 = vsub.f32 %v2177, %v2418
          %v2562 = vsub.f32 %v2178, %v2420
          %v2563 = vsub.f32 %v2179, %v2422
          %v2564 = vsub.f32 %v2180, %v2424
          %v2565 = vsub.f32 %v2181, %v2426
          %v2566 = vsub.f32 %v2182, %v2428
          %v2567 = vsub.f32 %v2183, %v2430
          %v2568 = vsub.f32 %v2184, %v2432
          %v2569 = vsub.f32 %v2185, %v2434
          %v2570 = vsub.f32 %v2186, %v2436
          %v2571 = vsub.f32 %v2187, %v2438
          %v2572 = vsub.f32 %v2188, %v2440
          %v2573 = vsub.f32 %v2189, %v2442
          %v2574 = vsub.f32 %v2190, %v2444
          %v2575 = vsub.f32 %v2191, %v2446
          %v2576 = vsub.f32 %v2192, %v2448
          %v2577 = vmul.f32 %v2449, 1.442695
          %v2578 = vpow.pop %v2577
          %v2579 = vmul.f32 %v2450, 1.442695
          %v2580 = vpow.pop %v2579
          %v2581 = vmul.f32 %v2451, 1.442695
          %v2582 = vpow.pop %v2581
          %v2583 = vmul.f32 %v2452, 1.442695
          %v2584 = vpow.pop %v2583
          %v2585 = vmul.f32 %v2453, 1.442695
          %v2586 = vpow.pop %v2585
          %v2587 = vmul.f32 %v2454, 1.442695
          %v2588 = vpow.pop %v2587
          %v2589 = vmul.f32 %v2455, 1.442695
          %v2590 = vpow.pop %v2589
          %v2591 = vmul.f32 %v2456, 1.442695
          %v2592 = vpow.pop %v2591
          %v2593 = vmul.f32 %v2457, 1.442695
          %v2594 = vpow.pop %v2593
          %v2595 = vmul.f32 %v2458, 1.442695
          %v2596 = vpow.pop %v2595
          %v2597 = vmul.f32 %v2459, 1.442695
          %v2598 = vpow.pop %v2597
          %v2599 = vmul.f32 %v2460, 1.442695
          %v2600 = vpow.pop %v2599
          %v2601 = vmul.f32 %v2461, 1.442695
          %v2602 = vpow.pop %v2601
          %v2603 = vmul.f32 %v2462, 1.442695
          %v2604 = vpow.pop %v2603
          %v2605 = vmul.f32 %v2463, 1.442695
          %v2606 = vpow.pop %v2605
          %v2607 = vmul.f32 %v2464, 1.442695
          %v2608 = vpow.pop %v2607
          %v2609 = vmul.f32 %v2465, 1.442695
          %v2610 = vpow.pop %v2609
          %v2611 = vmul.f32 %v2466, 1.442695
          %v2612 = vpow.pop %v2611
          %v2613 = vmul.f32 %v2467, 1.442695
          %v2614 = vpow.pop %v2613
          %v2615 = vmul.f32 %v2468, 1.442695
          %v2616 = vpow.pop %v2615
          %v2617 = vmul.f32 %v2469, 1.442695
          %v2618 = vpow.pop %v2617
          %v2619 = vmul.f32 %v2470, 1.442695
          %v2620 = vpow.pop %v2619
          %v2621 = vmul.f32 %v2471, 1.442695
          %v2622 = vpow.pop %v2621
          %v2623 = vmul.f32 %v2472, 1.442695
          %v2624 = vpow.pop %v2623
          %v2625 = vmul.f32 %v2473, 1.442695
          %v2626 = vpow.pop %v2625
          %v2627 = vmul.f32 %v2474, 1.442695
          %v2628 = vpow.pop %v2627
          %v2629 = vmul.f32 %v2475, 1.442695
          %v2630 = vpow.pop %v2629
          %v2631 = vmul.f32 %v2476, 1.442695
          %v2632 = vpow.pop %v2631
          %v2633 = vmul.f32 %v2477, 1.442695
          %v2634 = vpow.pop %v2633
          %v2635 = vmul.f32 %v2478, 1.442695
          %v2636 = vpow.pop %v2635
          %v2637 = vmul.f32 %v2479, 1.442695
          %v2638 = vpow.pop %v2637
          %v2639 = vmul.f32 %v2480, 1.442695
          %v2640 = vpow.pop %v2639
          %v2641 = vmul.f32 %v2481, 1.442695
          %v2642 = vpow.pop %v2641
          %v2643 = vmul.f32 %v2482, 1.442695
          %v2644 = vpow.pop %v2643
          %v2645 = vmul.f32 %v2483, 1.442695
          %v2646 = vpow.pop %v2645
          %v2647 = vmul.f32 %v2484, 1.442695
          %v2648 = vpow.pop %v2647
          %v2649 = vmul.f32 %v2485, 1.442695
          %v2650 = vpow.pop %v2649
          %v2651 = vmul.f32 %v2486, 1.442695
          %v2652 = vpow.pop %v2651
          %v2653 = vmul.f32 %v2487, 1.442695
          %v2654 = vpow.pop %v2653
          %v2655 = vmul.f32 %v2488, 1.442695
          %v2656 = vpow.pop %v2655
          %v2657 = vmul.f32 %v2489, 1.442695
          %v2658 = vpow.pop %v2657
          %v2659 = vmul.f32 %v2490, 1.442695
          %v2660 = vpow.pop %v2659
          %v2661 = vmul.f32 %v2491, 1.442695
          %v2662 = vpow.pop %v2661
          %v2663 = vmul.f32 %v2492, 1.442695
          %v2664 = vpow.pop %v2663
          %v2665 = vmul.f32 %v2493, 1.442695
          %v2666 = vpow.pop %v2665
          %v2667 = vmul.f32 %v2494, 1.442695
          %v2668 = vpow.pop %v2667
          %v2669 = vmul.f32 %v2495, 1.442695
          %v2670 = vpow.pop %v2669
          %v2671 = vmul.f32 %v2496, 1.442695
          %v2672 = vpow.pop %v2671
          %v2673 = vmul.f32 %v2497, 1.442695
          %v2674 = vpow.pop %v2673
          %v2675 = vmul.f32 %v2498, 1.442695
          %v2676 = vpow.pop %v2675
          %v2677 = vmul.f32 %v2499, 1.442695
          %v2678 = vpow.pop %v2677
          %v2679 = vmul.f32 %v2500, 1.442695
          %v2680 = vpow.pop %v2679
          %v2681 = vmul.f32 %v2501, 1.442695
          %v2682 = vpow.pop %v2681
          %v2683 = vmul.f32 %v2502, 1.442695
          %v2684 = vpow.pop %v2683
          %v2685 = vmul.f32 %v2503, 1.442695
          %v2686 = vpow.pop %v2685
          %v2687 = vmul.f32 %v2504, 1.442695
          %v2688 = vpow.pop %v2687
          %v2689 = vmul.f32 %v2505, 1.442695
          %v2690 = vpow.pop %v2689
          %v2691 = vmul.f32 %v2506, 1.442695
          %v2692 = vpow.pop %v2691
          %v2693 = vmul.f32 %v2507, 1.442695
          %v2694 = vpow.pop %v2693
          %v2695 = vmul.f32 %v2508, 1.442695
          %v2696 = vpow.pop %v2695
          %v2697 = vmul.f32 %v2509, 1.442695
          %v2698 = vpow.pop %v2697
          %v2699 = vmul.f32 %v2510, 1.442695
          %v2700 = vpow.pop %v2699
          %v2701 = vmul.f32 %v2511, 1.442695
          %v2702 = vpow.pop %v2701
          %v2703 = vmul.f32 %v2512, 1.442695
          %v2704 = vpow.pop %v2703
          %v2705 = vmul.f32 %v2513, 1.442695
          %v2706 = vpow.pop %v2705
          %v2707 = vmul.f32 %v2514, 1.442695
          %v2708 = vpow.pop %v2707
          %v2709 = vmul.f32 %v2515, 1.442695
          %v2710 = vpow.pop %v2709
          %v2711 = vmul.f32 %v2516, 1.442695
          %v2712 = vpow.pop %v2711
          %v2713 = vmul.f32 %v2517, 1.442695
          %v2714 = vpow.pop %v2713
          %v2715 = vmul.f32 %v2518, 1.442695
          %v2716 = vpow.pop %v2715
          %v2717 = vmul.f32 %v2519, 1.442695
          %v2718 = vpow.pop %v2717
          %v2719 = vmul.f32 %v2520, 1.442695
          %v2720 = vpow.pop %v2719
          %v2721 = vmul.f32 %v2521, 1.442695
          %v2722 = vpow.pop %v2721
          %v2723 = vmul.f32 %v2522, 1.442695
          %v2724 = vpow.pop %v2723
          %v2725 = vmul.f32 %v2523, 1.442695
          %v2726 = vpow.pop %v2725
          %v2727 = vmul.f32 %v2524, 1.442695
          %v2728 = vpow.pop %v2727
          %v2729 = vmul.f32 %v2525, 1.442695
          %v2730 = vpow.pop %v2729
          %v2731 = vmul.f32 %v2526, 1.442695
          %v2732 = vpow.pop %v2731
          %v2733 = vmul.f32 %v2527, 1.442695
          %v2734 = vpow.pop %v2733
          %v2735 = vmul.f32 %v2528, 1.442695
          %v2736 = vpow.pop %v2735
          %v2737 = vmul.f32 %v2529, 1.442695
          %v2738 = vpow.pop %v2737
          %v2739 = vmul.f32 %v2530, 1.442695
          %v2740 = vpow.pop %v2739
          %v2741 = vmul.f32 %v2531, 1.442695
          %v2742 = vpow.pop %v2741
          %v2743 = vmul.f32 %v2532, 1.442695
          %v2744 = vpow.pop %v2743
          %v2745 = vmul.f32 %v2533, 1.442695
          %v2746 = vpow.pop %v2745
          %v2747 = vmul.f32 %v2534, 1.442695
          %v2748 = vpow.pop %v2747
          %v2749 = vmul.f32 %v2535, 1.442695
          %v2750 = vpow.pop %v2749
          %v2751 = vmul.f32 %v2536, 1.442695
          %v2752 = vpow.pop %v2751
          %v2753 = vmul.f32 %v2537, 1.442695
          %v2754 = vpow.pop %v2753
          %v2755 = vmul.f32 %v2538, 1.442695
          %v2756 = vpow.pop %v2755
          %v2757 = vmul.f32 %v2539, 1.442695
          %v2758 = vpow.pop %v2757
          %v2759 = vmul.f32 %v2540, 1.442695
          %v2760 = vpow.pop %v2759
          %v2761 = vmul.f32 %v2541, 1.442695
          %v2762 = vpow.pop %v2761
          %v2763 = vmul.f32 %v2542, 1.442695
          %v2764 = vpow.pop %v2763
          %v2765 = vmul.f32 %v2543, 1.442695
          %v2766 = vpow.pop %v2765
          %v2767 = vmul.f32 %v2544, 1.442695
          %v2768 = vpow.pop %v2767
          %v2769 = vmul.f32 %v2545, 1.442695
          %v2770 = vpow.pop %v2769
          %v2771 = vmul.f32 %v2546, 1.442695
          %v2772 = vpow.pop %v2771
          %v2773 = vmul.f32 %v2547, 1.442695
          %v2774 = vpow.pop %v2773
          %v2775 = vmul.f32 %v2548, 1.442695
          %v2776 = vpow.pop %v2775
          %v2777 = vmul.f32 %v2549, 1.442695
          %v2778 = vpow.pop %v2777
          %v2779 = vmul.f32 %v2550, 1.442695
          %v2780 = vpow.pop %v2779
          %v2781 = vmul.f32 %v2551, 1.442695
          %v2782 = vpow.pop %v2781
          %v2783 = vmul.f32 %v2552, 1.442695
          %v2784 = vpow.pop %v2783
          %v2785 = vmul.f32 %v2553, 1.442695
          %v2786 = vpow.pop %v2785
          %v2787 = vmul.f32 %v2554, 1.442695
          %v2788 = vpow.pop %v2787
          %v2789 = vmul.f32 %v2555, 1.442695
          %v2790 = vpow.pop %v2789
          %v2791 = vmul.f32 %v2556, 1.442695
          %v2792 = vpow.pop %v2791
          %v2793 = vmul.f32 %v2557, 1.442695
          %v2794 = vpow.pop %v2793
          %v2795 = vmul.f32 %v2558, 1.442695
          %v2796 = vpow.pop %v2795
          %v2797 = vmul.f32 %v2559, 1.442695
          %v2798 = vpow.pop %v2797
          %v2799 = vmul.f32 %v2560, 1.442695
          %v2800 = vpow.pop %v2799
          %v2801 = vmul.f32 %v2561, 1.442695
          %v2802 = vpow.pop %v2801
          %v2803 = vmul.f32 %v2562, 1.442695
          %v2804 = vpow.pop %v2803
          %v2805 = vmul.f32 %v2563, 1.442695
          %v2806 = vpow.pop %v2805
          %v2807 = vmul.f32 %v2564, 1.442695
          %v2808 = vpow.pop %v2807
          %v2809 = vmul.f32 %v2565, 1.442695
          %v2810 = vpow.pop %v2809
          %v2811 = vmul.f32 %v2566, 1.442695
          %v2812 = vpow.pop %v2811
          %v2813 = vmul.f32 %v2567, 1.442695
          %v2814 = vpow.pop %v2813
          %v2815 = vmul.f32 %v2568, 1.442695
          %v2816 = vpow.pop %v2815
          %v2817 = vmul.f32 %v2569, 1.442695
          %v2818 = vpow.pop %v2817
          %v2819 = vmul.f32 %v2570, 1.442695
          %v2820 = vpow.pop %v2819
          %v2821 = vmul.f32 %v2571, 1.442695
          %v2822 = vpow.pop %v2821
          %v2823 = vmul.f32 %v2572, 1.442695
          %v2824 = vpow.pop %v2823
          %v2825 = vmul.f32 %v2573, 1.442695
          %v2826 = vpow.pop %v2825
          %v2827 = vmul.f32 %v2574, 1.442695
          %v2828 = vpow.pop %v2827
          %v2829 = vmul.f32 %v2575, 1.442695
          %v2830 = vpow.pop %v2829
          %v2831 = vmul.f32 %v2576, 1.442695
          %v2832 = vpow.pop %v2831
          %2833 = vadd.xlane.f32.xlu0 %v2578
          %v2834 = vpop.xlane.xlu0 %2833
          %2835 = vadd.xlane.f32.xlu0 %v2580
          %v2836 = vpop.xlane.xlu0 %2835
          %2837 = vadd.xlane.f32.xlu0 %v2582
          %v2838 = vpop.xlane.xlu0 %2837
          %2839 = vadd.xlane.f32.xlu0 %v2584
          %v2840 = vpop.xlane.xlu0 %2839
          %2841 = vadd.xlane.f32.xlu0 %v2586
          %v2842 = vpop.xlane.xlu0 %2841
          %2843 = vadd.xlane.f32.xlu0 %v2588
          %v2844 = vpop.xlane.xlu0 %2843
          %2845 = vadd.xlane.f32.xlu0 %v2590
          %v2846 = vpop.xlane.xlu0 %2845
          %2847 = vadd.xlane.f32.xlu0 %v2592
          %v2848 = vpop.xlane.xlu0 %2847
          %2849 = vadd.xlane.f32.xlu0 %v2594
          %v2850 = vpop.xlane.xlu0 %2849
          %2851 = vadd.xlane.f32.xlu0 %v2596
          %v2852 = vpop.xlane.xlu0 %2851
          %2853 = vadd.xlane.f32.xlu0 %v2598
          %v2854 = vpop.xlane.xlu0 %2853
          %2855 = vadd.xlane.f32.xlu0 %v2600
          %v2856 = vpop.xlane.xlu0 %2855
          %2857 = vadd.xlane.f32.xlu0 %v2602
          %v2858 = vpop.xlane.xlu0 %2857
          %2859 = vadd.xlane.f32.xlu0 %v2604
          %v2860 = vpop.xlane.xlu0 %2859
          %2861 = vadd.xlane.f32.xlu0 %v2606
          %v2862 = vpop.xlane.xlu0 %2861
          %2863 = vadd.xlane.f32.xlu0 %v2608
          %v2864 = vpop.xlane.xlu0 %2863
          %2865 = vadd.xlane.f32.xlu0 %v2610
          %v2866 = vpop.xlane.xlu0 %2865
          %2867 = vadd.xlane.f32.xlu0 %v2612
          %v2868 = vpop.xlane.xlu0 %2867
          %2869 = vadd.xlane.f32.xlu0 %v2614
          %v2870 = vpop.xlane.xlu0 %2869
          %2871 = vadd.xlane.f32.xlu0 %v2616
          %v2872 = vpop.xlane.xlu0 %2871
          %2873 = vadd.xlane.f32.xlu0 %v2618
          %v2874 = vpop.xlane.xlu0 %2873
          %2875 = vadd.xlane.f32.xlu0 %v2620
          %v2876 = vpop.xlane.xlu0 %2875
          %2877 = vadd.xlane.f32.xlu0 %v2622
          %v2878 = vpop.xlane.xlu0 %2877
          %2879 = vadd.xlane.f32.xlu0 %v2624
          %v2880 = vpop.xlane.xlu0 %2879
          %2881 = vadd.xlane.f32.xlu0 %v2626
          %v2882 = vpop.xlane.xlu0 %2881
          %2883 = vadd.xlane.f32.xlu0 %v2628
          %v2884 = vpop.xlane.xlu0 %2883
          %2885 = vadd.xlane.f32.xlu0 %v2630
          %v2886 = vpop.xlane.xlu0 %2885
          %2887 = vadd.xlane.f32.xlu0 %v2632
          %v2888 = vpop.xlane.xlu0 %2887
          %2889 = vadd.xlane.f32.xlu0 %v2634
          %v2890 = vpop.xlane.xlu0 %2889
          %2891 = vadd.xlane.f32.xlu0 %v2636
          %v2892 = vpop.xlane.xlu0 %2891
          %2893 = vadd.xlane.f32.xlu0 %v2638
          %v2894 = vpop.xlane.xlu0 %2893
          %2895 = vadd.xlane.f32.xlu0 %v2640
          %v2896 = vpop.xlane.xlu0 %2895
          %2897 = vadd.xlane.f32.xlu0 %v2642
          %v2898 = vpop.xlane.xlu0 %2897
          %2899 = vadd.xlane.f32.xlu0 %v2644
          %v2900 = vpop.xlane.xlu0 %2899
          %2901 = vadd.xlane.f32.xlu0 %v2646
          %v2902 = vpop.xlane.xlu0 %2901
          %2903 = vadd.xlane.f32.xlu0 %v2648
          %v2904 = vpop.xlane.xlu0 %2903
          %2905 = vadd.xlane.f32.xlu0 %v2650
          %v2906 = vpop.xlane.xlu0 %2905
          %2907 = vadd.xlane.f32.xlu0 %v2652
          %v2908 = vpop.xlane.xlu0 %2907
          %2909 = vadd.xlane.f32.xlu0 %v2654
          %v2910 = vpop.xlane.xlu0 %2909
          %2911 = vadd.xlane.f32.xlu0 %v2656
          %v2912 = vpop.xlane.xlu0 %2911
          %2913 = vadd.xlane.f32.xlu0 %v2658
          %v2914 = vpop.xlane.xlu0 %2913
          %2915 = vadd.xlane.f32.xlu0 %v2660
          %v2916 = vpop.xlane.xlu0 %2915
          %2917 = vadd.xlane.f32.xlu0 %v2662
          %v2918 = vpop.xlane.xlu0 %2917
          %2919 = vadd.xlane.f32.xlu0 %v2664
          %v2920 = vpop.xlane.xlu0 %2919
          %2921 = vadd.xlane.f32.xlu0 %v2666
          %v2922 = vpop.xlane.xlu0 %2921
          %2923 = vadd.xlane.f32.xlu0 %v2668
          %v2924 = vpop.xlane.xlu0 %2923
          %2925 = vadd.xlane.f32.xlu0 %v2670
          %v2926 = vpop.xlane.xlu0 %2925
          %2927 = vadd.xlane.f32.xlu0 %v2672
          %v2928 = vpop.xlane.xlu0 %2927
          %2929 = vadd.xlane.f32.xlu0 %v2674
          %v2930 = vpop.xlane.xlu0 %2929
          %2931 = vadd.xlane.f32.xlu0 %v2676
          %v2932 = vpop.xlane.xlu0 %2931
          %2933 = vadd.xlane.f32.xlu0 %v2678
          %v2934 = vpop.xlane.xlu0 %2933
          %2935 = vadd.xlane.f32.xlu0 %v2680
          %v2936 = vpop.xlane.xlu0 %2935
          %2937 = vadd.xlane.f32.xlu0 %v2682
          %v2938 = vpop.xlane.xlu0 %2937
          %2939 = vadd.xlane.f32.xlu0 %v2684
          %v2940 = vpop.xlane.xlu0 %2939
          %2941 = vadd.xlane.f32.xlu0 %v2686
          %v2942 = vpop.xlane.xlu0 %2941
          %2943 = vadd.xlane.f32.xlu0 %v2688
          %v2944 = vpop.xlane.xlu0 %2943
          %2945 = vadd.xlane.f32.xlu0 %v2690
          %v2946 = vpop.xlane.xlu0 %2945
          %2947 = vadd.xlane.f32.xlu0 %v2692
          %v2948 = vpop.xlane.xlu0 %2947
          %2949 = vadd.xlane.f32.xlu0 %v2694
          %v2950 = vpop.xlane.xlu0 %2949
          %2951 = vadd.xlane.f32.xlu0 %v2696
          %v2952 = vpop.xlane.xlu0 %2951
          %2953 = vadd.xlane.f32.xlu0 %v2698
          %v2954 = vpop.xlane.xlu0 %2953
          %2955 = vadd.xlane.f32.xlu0 %v2700
          %v2956 = vpop.xlane.xlu0 %2955
          %2957 = vadd.xlane.f32.xlu0 %v2702
          %v2958 = vpop.xlane.xlu0 %2957
          %2959 = vadd.xlane.f32.xlu0 %v2704
          %v2960 = vpop.xlane.xlu0 %2959
          %2961 = vadd.xlane.f32.xlu0 %v2706
          %v2962 = vpop.xlane.xlu0 %2961
          %2963 = vadd.xlane.f32.xlu0 %v2708
          %v2964 = vpop.xlane.xlu0 %2963
          %2965 = vadd.xlane.f32.xlu0 %v2710
          %v2966 = vpop.xlane.xlu0 %2965
          %2967 = vadd.xlane.f32.xlu0 %v2712
          %v2968 = vpop.xlane.xlu0 %2967
          %2969 = vadd.xlane.f32.xlu0 %v2714
          %v2970 = vpop.xlane.xlu0 %2969
          %2971 = vadd.xlane.f32.xlu0 %v2716
          %v2972 = vpop.xlane.xlu0 %2971
          %2973 = vadd.xlane.f32.xlu0 %v2718
          %v2974 = vpop.xlane.xlu0 %2973
          %2975 = vadd.xlane.f32.xlu0 %v2720
          %v2976 = vpop.xlane.xlu0 %2975
          %2977 = vadd.xlane.f32.xlu0 %v2722
          %v2978 = vpop.xlane.xlu0 %2977
          %2979 = vadd.xlane.f32.xlu0 %v2724
          %v2980 = vpop.xlane.xlu0 %2979
          %2981 = vadd.xlane.f32.xlu0 %v2726
          %v2982 = vpop.xlane.xlu0 %2981
          %2983 = vadd.xlane.f32.xlu0 %v2728
          %v2984 = vpop.xlane.xlu0 %2983
          %2985 = vadd.xlane.f32.xlu0 %v2730
          %v2986 = vpop.xlane.xlu0 %2985
          %2987 = vadd.xlane.f32.xlu0 %v2732
          %v2988 = vpop.xlane.xlu0 %2987
          %2989 = vadd.xlane.f32.xlu0 %v2734
          %v2990 = vpop.xlane.xlu0 %2989
          %2991 = vadd.xlane.f32.xlu0 %v2736
          %v2992 = vpop.xlane.xlu0 %2991
          %2993 = vadd.xlane.f32.xlu0 %v2738
          %v2994 = vpop.xlane.xlu0 %2993
          %2995 = vadd.xlane.f32.xlu0 %v2740
          %v2996 = vpop.xlane.xlu0 %2995
          %2997 = vadd.xlane.f32.xlu0 %v2742
          %v2998 = vpop.xlane.xlu0 %2997
          %2999 = vadd.xlane.f32.xlu0 %v2744
          %v3000 = vpop.xlane.xlu0 %2999
          %3001 = vadd.xlane.f32.xlu0 %v2746
          %v3002 = vpop.xlane.xlu0 %3001
          %3003 = vadd.xlane.f32.xlu0 %v2748
          %v3004 = vpop.xlane.xlu0 %3003
          %3005 = vadd.xlane.f32.xlu0 %v2750
          %v3006 = vpop.xlane.xlu0 %3005
          %3007 = vadd.xlane.f32.xlu0 %v2752
          %v3008 = vpop.xlane.xlu0 %3007
          %3009 = vadd.xlane.f32.xlu0 %v2754
          %v3010 = vpop.xlane.xlu0 %3009
          %3011 = vadd.xlane.f32.xlu0 %v2756
          %v3012 = vpop.xlane.xlu0 %3011
          %3013 = vadd.xlane.f32.xlu0 %v2758
          %v3014 = vpop.xlane.xlu0 %3013
          %3015 = vadd.xlane.f32.xlu0 %v2760
          %v3016 = vpop.xlane.xlu0 %3015
          %3017 = vadd.xlane.f32.xlu0 %v2762
          %v3018 = vpop.xlane.xlu0 %3017
          %3019 = vadd.xlane.f32.xlu0 %v2764
          %v3020 = vpop.xlane.xlu0 %3019
          %3021 = vadd.xlane.f32.xlu0 %v2766
          %v3022 = vpop.xlane.xlu0 %3021
          %3023 = vadd.xlane.f32.xlu0 %v2768
          %v3024 = vpop.xlane.xlu0 %3023
          %3025 = vadd.xlane.f32.xlu0 %v2770
          %v3026 = vpop.xlane.xlu0 %3025
          %3027 = vadd.xlane.f32.xlu0 %v2772
          %v3028 = vpop.xlane.xlu0 %3027
          %3029 = vadd.xlane.f32.xlu0 %v2774
          %v3030 = vpop.xlane.xlu0 %3029
          %3031 = vadd.xlane.f32.xlu0 %v2776
          %v3032 = vpop.xlane.xlu0 %3031
          %3033 = vadd.xlane.f32.xlu0 %v2778
          %v3034 = vpop.xlane.xlu0 %3033
          %3035 = vadd.xlane.f32.xlu0 %v2780
          %v3036 = vpop.xlane.xlu0 %3035
          %3037 = vadd.xlane.f32.xlu0 %v2782
          %v3038 = vpop.xlane.xlu0 %3037
          %3039 = vadd.xlane.f32.xlu0 %v2784
          %v3040 = vpop.xlane.xlu0 %3039
          %3041 = vadd.xlane.f32.xlu0 %v2786
          %v3042 = vpop.xlane.xlu0 %3041
          %3043 = vadd.xlane.f32.xlu0 %v2788
          %v3044 = vpop.xlane.xlu0 %3043
          %3045 = vadd.xlane.f32.xlu0 %v2790
          %v3046 = vpop.xlane.xlu0 %3045
          %3047 = vadd.xlane.f32.xlu0 %v2792
          %v3048 = vpop.xlane.xlu0 %3047
          %3049 = vadd.xlane.f32.xlu0 %v2794
          %v3050 = vpop.xlane.xlu0 %3049
          %3051 = vadd.xlane.f32.xlu0 %v2796
          %v3052 = vpop.xlane.xlu0 %3051
          %3053 = vadd.xlane.f32.xlu0 %v2798
          %v3054 = vpop.xlane.xlu0 %3053
          %3055 = vadd.xlane.f32.xlu0 %v2800
          %v3056 = vpop.xlane.xlu0 %3055
          %3057 = vadd.xlane.f32.xlu0 %v2802
          %v3058 = vpop.xlane.xlu0 %3057
          %3059 = vadd.xlane.f32.xlu0 %v2804
          %v3060 = vpop.xlane.xlu0 %3059
          %3061 = vadd.xlane.f32.xlu0 %v2806
          %v3062 = vpop.xlane.xlu0 %3061
          %3063 = vadd.xlane.f32.xlu0 %v2808
          %v3064 = vpop.xlane.xlu0 %3063
          %3065 = vadd.xlane.f32.xlu0 %v2810
          %v3066 = vpop.xlane.xlu0 %3065
          %3067 = vadd.xlane.f32.xlu0 %v2812
          %v3068 = vpop.xlane.xlu0 %3067
          %3069 = vadd.xlane.f32.xlu0 %v2814
          %v3070 = vpop.xlane.xlu0 %3069
          %3071 = vadd.xlane.f32.xlu0 %v2816
          %v3072 = vpop.xlane.xlu0 %3071
          %3073 = vadd.xlane.f32.xlu0 %v2818
          %v3074 = vpop.xlane.xlu0 %3073
          %3075 = vadd.xlane.f32.xlu0 %v2820
          %v3076 = vpop.xlane.xlu0 %3075
          %3077 = vadd.xlane.f32.xlu0 %v2822
          %v3078 = vpop.xlane.xlu0 %3077
          %3079 = vadd.xlane.f32.xlu0 %v2824
          %v3080 = vpop.xlane.xlu0 %3079
          %3081 = vadd.xlane.f32.xlu0 %v2826
          %v3082 = vpop.xlane.xlu0 %3081
          %3083 = vadd.xlane.f32.xlu0 %v2828
          %v3084 = vpop.xlane.xlu0 %3083
          %3085 = vadd.xlane.f32.xlu0 %v2830
          %v3086 = vpop.xlane.xlu0 %3085
          %3087 = vadd.xlane.f32.xlu0 %v2832
          %v3088 = vpop.xlane.xlu0 %3087
          %v3089 = vrcp.pop %v2834
          %v3090 = vrcp.pop %v2836
          %v3091 = vrcp.pop %v2838
          %v3092 = vrcp.pop %v2840
          %v3093 = vrcp.pop %v2842
          %v3094 = vrcp.pop %v2844
          %v3095 = vrcp.pop %v2846
          %v3096 = vrcp.pop %v2848
          %v3097 = vrcp.pop %v2850
          %v3098 = vrcp.pop %v2852
          %v3099 = vrcp.pop %v2854
          %v3100 = vrcp.pop %v2856
          %v3101 = vrcp.pop %v2858
          %v3102 = vrcp.pop %v2860
          %v3103 = vrcp.pop %v2862
          %v3104 = vrcp.pop %v2864
          %v3105 = vrcp.pop %v2866
          %v3106 = vrcp.pop %v2868
          %v3107 = vrcp.pop %v2870
          %v3108 = vrcp.pop %v2872
          %v3109 = vrcp.pop %v2874
          %v3110 = vrcp.pop %v2876
          %v3111 = vrcp.pop %v2878
          %v3112 = vrcp.pop %v2880
          %v3113 = vrcp.pop %v2882
          %v3114 = vrcp.pop %v2884
          %v3115 = vrcp.pop %v2886
          %v3116 = vrcp.pop %v2888
          %v3117 = vrcp.pop %v2890
          %v3118 = vrcp.pop %v2892
          %v3119 = vrcp.pop %v2894
          %v3120 = vrcp.pop %v2896
          %v3121 = vrcp.pop %v2898
          %v3122 = vrcp.pop %v2900
          %v3123 = vrcp.pop %v2902
          %v3124 = vrcp.pop %v2904
          %v3125 = vrcp.pop %v2906
          %v3126 = vrcp.pop %v2908
          %v3127 = vrcp.pop %v2910
          %v3128 = vrcp.pop %v2912
          %v3129 = vrcp.pop %v2914
          %v3130 = vrcp.pop %v2916
          %v3131 = vrcp.pop %v2918
          %v3132 = vrcp.pop %v2920
          %v3133 = vrcp.pop %v2922
          %v3134 = vrcp.pop %v2924
          %v3135 = vrcp.pop %v2926
          %v3136 = vrcp.pop %v2928
          %v3137 = vrcp.pop %v2930
          %v3138 = vrcp.pop %v2932
          %v3139 = vrcp.pop %v2934
          %v3140 = vrcp.pop %v2936
          %v3141 = vrcp.pop %v2938
          %v3142 = vrcp.pop %v2940
          %v3143 = vrcp.pop %v2942
          %v3144 = vrcp.pop %v2944
          %v3145 = vrcp.pop %v2946
          %v3146 = vrcp.pop %v2948
          %v3147 = vrcp.pop %v2950
          %v3148 = vrcp.pop %v2952
          %v3149 = vrcp.pop %v2954
          %v3150 = vrcp.pop %v2956
          %v3151 = vrcp.pop %v2958
          %v3152 = vrcp.pop %v2960
          %v3153 = vrcp.pop %v2962
          %v3154 = vrcp.pop %v2964
          %v3155 = vrcp.pop %v2966
          %v3156 = vrcp.pop %v2968
          %v3157 = vrcp.pop %v2970
          %v3158 = vrcp.pop %v2972
          %v3159 = vrcp.pop %v2974
          %v3160 = vrcp.pop %v2976
          %v3161 = vrcp.pop %v2978
          %v3162 = vrcp.pop %v2980
          %v3163 = vrcp.pop %v2982
          %v3164 = vrcp.pop %v2984
          %v3165 = vrcp.pop %v2986
          %v3166 = vrcp.pop %v2988
          %v3167 = vrcp.pop %v2990
          %v3168 = vrcp.pop %v2992
          %v3169 = vrcp.pop %v2994
          %v3170 = vrcp.pop %v2996
          %v3171 = vrcp.pop %v2998
          %v3172 = vrcp.pop %v3000
          %v3173 = vrcp.pop %v3002
          %v3174 = vrcp.pop %v3004
          %v3175 = vrcp.pop %v3006
          %v3176 = vrcp.pop %v3008
          %v3177 = vrcp.pop %v3010
          %v3178 = vrcp.pop %v3012
          %v3179 = vrcp.pop %v3014
          %v3180 = vrcp.pop %v3016
          %v3181 = vrcp.pop %v3018
          %v3182 = vrcp.pop %v3020
          %v3183 = vrcp.pop %v3022
          %v3184 = vrcp.pop %v3024
          %v3185 = vrcp.pop %v3026
          %v3186 = vrcp.pop %v3028
          %v3187 = vrcp.pop %v3030
          %v3188 = vrcp.pop %v3032
          %v3189 = vrcp.pop %v3034
          %v3190 = vrcp.pop %v3036
          %v3191 = vrcp.pop %v3038
          %v3192 = vrcp.pop %v3040
          %v3193 = vrcp.pop %v3042
          %v3194 = vrcp.pop %v3044
          %v3195 = vrcp.pop %v3046
          %v3196 = vrcp.pop %v3048
          %v3197 = vrcp.pop %v3050
          %v3198 = vrcp.pop %v3052
          %v3199 = vrcp.pop %v3054
          %v3200 = vrcp.pop %v3056
          %v3201 = vrcp.pop %v3058
          %v3202 = vrcp.pop %v3060
          %v3203 = vrcp.pop %v3062
          %v3204 = vrcp.pop %v3064
          %v3205 = vrcp.pop %v3066
          %v3206 = vrcp.pop %v3068
          %v3207 = vrcp.pop %v3070
          %v3208 = vrcp.pop %v3072
          %v3209 = vrcp.pop %v3074
          %v3210 = vrcp.pop %v3076
          %v3211 = vrcp.pop %v3078
          %v3212 = vrcp.pop %v3080
          %v3213 = vrcp.pop %v3082
          %v3214 = vrcp.pop %v3084
          %v3215 = vrcp.pop %v3086
          %v3216 = vrcp.pop %v3088
          %v3217 = vmul.f32 %v2578, %v3089
          %v3218 = vmul.f32 %v2580, %v3090
          %v3219 = vmul.f32 %v2582, %v3091
          %v3220 = vmul.f32 %v2584, %v3092
          %v3221 = vmul.f32 %v2586, %v3093
          %v3222 = vmul.f32 %v2588, %v3094
          %v3223 = vmul.f32 %v2590, %v3095
          %v3224 = vmul.f32 %v2592, %v3096
          %v3225 = vmul.f32 %v2594, %v3097
          %v3226 = vmul.f32 %v2596, %v3098
          %v3227 = vmul.f32 %v2598, %v3099
          %v3228 = vmul.f32 %v2600, %v3100
          %v3229 = vmul.f32 %v2602, %v3101
          %v3230 = vmul.f32 %v2604, %v3102
          %v3231 = vmul.f32 %v2606, %v3103
          %v3232 = vmul.f32 %v2608, %v3104
          %v3233 = vmul.f32 %v2610, %v3105
          %v3234 = vmul.f32 %v2612, %v3106
          %v3235 = vmul.f32 %v2614, %v3107
          %v3236 = vmul.f32 %v2616, %v3108
          %v3237 = vmul.f32 %v2618, %v3109
          %v3238 = vmul.f32 %v2620, %v3110
          %v3239 = vmul.f32 %v2622, %v3111
          %v3240 = vmul.f32 %v2624, %v3112
          %v3241 = vmul.f32 %v2626, %v3113
          %v3242 = vmul.f32 %v2628, %v3114
          %v3243 = vmul.f32 %v2630, %v3115
          %v3244 = vmul.f32 %v2632, %v3116
          %v3245 = vmul.f32 %v2634, %v3117
          %v3246 = vmul.f32 %v2636, %v3118
          %v3247 = vmul.f32 %v2638, %v3119
          %v3248 = vmul.f32 %v2640, %v3120
          %v3249 = vmul.f32 %v2642, %v3121
          %v3250 = vmul.f32 %v2644, %v3122
          %v3251 = vmul.f32 %v2646, %v3123
          %v3252 = vmul.f32 %v2648, %v3124
          %v3253 = vmul.f32 %v2650, %v3125
          %v3254 = vmul.f32 %v2652, %v3126
          %v3255 = vmul.f32 %v2654, %v3127
          %v3256 = vmul.f32 %v2656, %v3128
          %v3257 = vmul.f32 %v2658, %v3129
          %v3258 = vmul.f32 %v2660, %v3130
          %v3259 = vmul.f32 %v2662, %v3131
          %v3260 = vmul.f32 %v2664, %v3132
          %v3261 = vmul.f32 %v2666, %v3133
          %v3262 = vmul.f32 %v2668, %v3134
          %v3263 = vmul.f32 %v2670, %v3135
          %v3264 = vmul.f32 %v2672, %v3136
          %v3265 = vmul.f32 %v2674, %v3137
          %v3266 = vmul.f32 %v2676, %v3138
          %v3267 = vmul.f32 %v2678, %v3139
          %v3268 = vmul.f32 %v2680, %v3140
          %v3269 = vmul.f32 %v2682, %v3141
          %v3270 = vmul.f32 %v2684, %v3142
          %v3271 = vmul.f32 %v2686, %v3143
          %v3272 = vmul.f32 %v2688, %v3144
          %v3273 = vmul.f32 %v2690, %v3145
          %v3274 = vmul.f32 %v2692, %v3146
          %v3275 = vmul.f32 %v2694, %v3147
          %v3276 = vmul.f32 %v2696, %v3148
          %v3277 = vmul.f32 %v2698, %v3149
          %v3278 = vmul.f32 %v2700, %v3150
          %v3279 = vmul.f32 %v2702, %v3151
          %v3280 = vmul.f32 %v2704, %v3152
          %v3281 = vmul.f32 %v2706, %v3153
          %v3282 = vmul.f32 %v2708, %v3154
          %v3283 = vmul.f32 %v2710, %v3155
          %v3284 = vmul.f32 %v2712, %v3156
          %v3285 = vmul.f32 %v2714, %v3157
          %v3286 = vmul.f32 %v2716, %v3158
          %v3287 = vmul.f32 %v2718, %v3159
          %v3288 = vmul.f32 %v2720, %v3160
          %v3289 = vmul.f32 %v2722, %v3161
          %v3290 = vmul.f32 %v2724, %v3162
          %v3291 = vmul.f32 %v2726, %v3163
          %v3292 = vmul.f32 %v2728, %v3164
          %v3293 = vmul.f32 %v2730, %v3165
          %v3294 = vmul.f32 %v2732, %v3166
          %v3295 = vmul.f32 %v2734, %v3167
          %v3296 = vmul.f32 %v2736, %v3168
          %v3297 = vmul.f32 %v2738, %v3169
          %v3298 = vmul.f32 %v2740, %v3170
          %v3299 = vmul.f32 %v2742, %v3171
          %v3300 = vmul.f32 %v2744, %v3172
          %v3301 = vmul.f32 %v2746, %v3173
          %v3302 = vmul.f32 %v2748, %v3174
          %v3303 = vmul.f32 %v2750, %v3175
          %v3304 = vmul.f32 %v2752, %v3176
          %v3305 = vmul.f32 %v2754, %v3177
          %v3306 = vmul.f32 %v2756, %v3178
          %v3307 = vmul.f32 %v2758, %v3179
          %v3308 = vmul.f32 %v2760, %v3180
          %v3309 = vmul.f32 %v2762, %v3181
          %v3310 = vmul.f32 %v2764, %v3182
          %v3311 = vmul.f32 %v2766, %v3183
          %v3312 = vmul.f32 %v2768, %v3184
          %v3313 = vmul.f32 %v2770, %v3185
          %v3314 = vmul.f32 %v2772, %v3186
          %v3315 = vmul.f32 %v2774, %v3187
          %v3316 = vmul.f32 %v2776, %v3188
          %v3317 = vmul.f32 %v2778, %v3189
          %v3318 = vmul.f32 %v2780, %v3190
          %v3319 = vmul.f32 %v2782, %v3191
          %v3320 = vmul.f32 %v2784, %v3192
          %v3321 = vmul.f32 %v2786, %v3193
          %v3322 = vmul.f32 %v2788, %v3194
          %v3323 = vmul.f32 %v2790, %v3195
          %v3324 = vmul.f32 %v2792, %v3196
          %v3325 = vmul.f32 %v2794, %v3197
          %v3326 = vmul.f32 %v2796, %v3198
          %v3327 = vmul.f32 %v2798, %v3199
          %v3328 = vmul.f32 %v2800, %v3200
          %v3329 = vmul.f32 %v2802, %v3201
          %v3330 = vmul.f32 %v2804, %v3202
          %v3331 = vmul.f32 %v2806, %v3203
          %v3332 = vmul.f32 %v2808, %v3204
          %v3333 = vmul.f32 %v2810, %v3205
          %v3334 = vmul.f32 %v2812, %v3206
          %v3335 = vmul.f32 %v2814, %v3207
          %v3336 = vmul.f32 %v2816, %v3208
          %v3337 = vmul.f32 %v2818, %v3209
          %v3338 = vmul.f32 %v2820, %v3210
          %v3339 = vmul.f32 %v2822, %v3211
          %v3340 = vmul.f32 %v2824, %v3212
          %v3341 = vmul.f32 %v2826, %v3213
          %v3342 = vmul.f32 %v2828, %v3214
          %v3343 = vmul.f32 %v2830, %v3215
          %v3344 = vmul.f32 %v2832, %v3216
          %v3345 = vpack.c.bf16 %v3217, %v3217
          %v3346 = vpack.c.bf16 %v3218, %v3218
          %v3347 = vpack.c.bf16 %v3219, %v3219
          %v3348 = vpack.c.bf16 %v3220, %v3220
          %v3349 = vpack.c.bf16 %v3221, %v3221
          %v3350 = vpack.c.bf16 %v3222, %v3222
          %v3351 = vpack.c.bf16 %v3223, %v3223
          %v3352 = vpack.c.bf16 %v3224, %v3224
          %v3353 = vpack.c.bf16 %v3225, %v3225
          %v3354 = vpack.c.bf16 %v3226, %v3226
          %v3355 = vpack.c.bf16 %v3227, %v3227
          %v3356 = vpack.c.bf16 %v3228, %v3228
          %v3357 = vpack.c.bf16 %v3229, %v3229
          %v3358 = vpack.c.bf16 %v3230, %v3230
          %v3359 = vpack.c.bf16 %v3231, %v3231
          %v3360 = vpack.c.bf16 %v3232, %v3232
          %v3361 = vpack.c.bf16 %v3233, %v3233
          %v3362 = vpack.c.bf16 %v3234, %v3234
          %v3363 = vpack.c.bf16 %v3235, %v3235
          %v3364 = vpack.c.bf16 %v3236, %v3236
          %v3365 = vpack.c.bf16 %v3237, %v3237
          %v3366 = vpack.c.bf16 %v3238, %v3238
          %v3367 = vpack.c.bf16 %v3239, %v3239
          %v3368 = vpack.c.bf16 %v3240, %v3240
          %v3369 = vpack.c.bf16 %v3241, %v3241
          %v3370 = vpack.c.bf16 %v3242, %v3242
          %v3371 = vpack.c.bf16 %v3243, %v3243
          %v3372 = vpack.c.bf16 %v3244, %v3244
          %v3373 = vpack.c.bf16 %v3245, %v3245
          %v3374 = vpack.c.bf16 %v3246, %v3246
          %v3375 = vpack.c.bf16 %v3247, %v3247
          %v3376 = vpack.c.bf16 %v3248, %v3248
          %v3377 = vpack.c.bf16 %v3249, %v3249
          %v3378 = vpack.c.bf16 %v3250, %v3250
          %v3379 = vpack.c.bf16 %v3251, %v3251
          %v3380 = vpack.c.bf16 %v3252, %v3252
          %v3381 = vpack.c.bf16 %v3253, %v3253
          %v3382 = vpack.c.bf16 %v3254, %v3254
          %v3383 = vpack.c.bf16 %v3255, %v3255
          %v3384 = vpack.c.bf16 %v3256, %v3256
          %v3385 = vpack.c.bf16 %v3257, %v3257
          %v3386 = vpack.c.bf16 %v3258, %v3258
          %v3387 = vpack.c.bf16 %v3259, %v3259
          %v3388 = vpack.c.bf16 %v3260, %v3260
          %v3389 = vpack.c.bf16 %v3261, %v3261
          %v3390 = vpack.c.bf16 %v3262, %v3262
          %v3391 = vpack.c.bf16 %v3263, %v3263
          %v3392 = vpack.c.bf16 %v3264, %v3264
          %v3393 = vpack.c.bf16 %v3265, %v3265
          %v3394 = vpack.c.bf16 %v3266, %v3266
          %v3395 = vpack.c.bf16 %v3267, %v3267
          %v3396 = vpack.c.bf16 %v3268, %v3268
          %v3397 = vpack.c.bf16 %v3269, %v3269
          %v3398 = vpack.c.bf16 %v3270, %v3270
          %v3399 = vpack.c.bf16 %v3271, %v3271
          %v3400 = vpack.c.bf16 %v3272, %v3272
          %v3401 = vpack.c.bf16 %v3273, %v3273
          %v3402 = vpack.c.bf16 %v3274, %v3274
          %v3403 = vpack.c.bf16 %v3275, %v3275
          %v3404 = vpack.c.bf16 %v3276, %v3276
          %v3405 = vpack.c.bf16 %v3277, %v3277
          %v3406 = vpack.c.bf16 %v3278, %v3278
          %v3407 = vpack.c.bf16 %v3279, %v3279
          %v3408 = vpack.c.bf16 %v3280, %v3280
          %v3409 = vpack.c.bf16 %v3281, %v3281
          %v3410 = vpack.c.bf16 %v3282, %v3282
          %v3411 = vpack.c.bf16 %v3283, %v3283
          %v3412 = vpack.c.bf16 %v3284, %v3284
          %v3413 = vpack.c.bf16 %v3285, %v3285
          %v3414 = vpack.c.bf16 %v3286, %v3286
          %v3415 = vpack.c.bf16 %v3287, %v3287
          %v3416 = vpack.c.bf16 %v3288, %v3288
          %v3417 = vpack.c.bf16 %v3289, %v3289
          %v3418 = vpack.c.bf16 %v3290, %v3290
          %v3419 = vpack.c.bf16 %v3291, %v3291
          %v3420 = vpack.c.bf16 %v3292, %v3292
          %v3421 = vpack.c.bf16 %v3293, %v3293
          %v3422 = vpack.c.bf16 %v3294, %v3294
          %v3423 = vpack.c.bf16 %v3295, %v3295
          %v3424 = vpack.c.bf16 %v3296, %v3296
          %v3425 = vpack.c.bf16 %v3297, %v3297
          %v3426 = vpack.c.bf16 %v3298, %v3298
          %v3427 = vpack.c.bf16 %v3299, %v3299
          %v3428 = vpack.c.bf16 %v3300, %v3300
          %v3429 = vpack.c.bf16 %v3301, %v3301
          %v3430 = vpack.c.bf16 %v3302, %v3302
          %v3431 = vpack.c.bf16 %v3303, %v3303
          %v3432 = vpack.c.bf16 %v3304, %v3304
          %v3433 = vpack.c.bf16 %v3305, %v3305
          %v3434 = vpack.c.bf16 %v3306, %v3306
          %v3435 = vpack.c.bf16 %v3307, %v3307
          %v3436 = vpack.c.bf16 %v3308, %v3308
          %v3437 = vpack.c.bf16 %v3309, %v3309
          %v3438 = vpack.c.bf16 %v3310, %v3310
          %v3439 = vpack.c.bf16 %v3311, %v3311
          %v3440 = vpack.c.bf16 %v3312, %v3312
          %v3441 = vpack.c.bf16 %v3313, %v3313
          %v3442 = vpack.c.bf16 %v3314, %v3314
          %v3443 = vpack.c.bf16 %v3315, %v3315
          %v3444 = vpack.c.bf16 %v3316, %v3316
          %v3445 = vpack.c.bf16 %v3317, %v3317
          %v3446 = vpack.c.bf16 %v3318, %v3318
          %v3447 = vpack.c.bf16 %v3319, %v3319
          %v3448 = vpack.c.bf16 %v3320, %v3320
          %v3449 = vpack.c.bf16 %v3321, %v3321
          %v3450 = vpack.c.bf16 %v3322, %v3322
          %v3451 = vpack.c.bf16 %v3323, %v3323
          %v3452 = vpack.c.bf16 %v3324, %v3324
          %v3453 = vpack.c.bf16 %v3325, %v3325
          %v3454 = vpack.c.bf16 %v3326, %v3326
          %v3455 = vpack.c.bf16 %v3327, %v3327
          %v3456 = vpack.c.bf16 %v3328, %v3328
          %v3457 = vpack.c.bf16 %v3329, %v3329
          %v3458 = vpack.c.bf16 %v3330, %v3330
          %v3459 = vpack.c.bf16 %v3331, %v3331
          %v3460 = vpack.c.bf16 %v3332, %v3332
          %v3461 = vpack.c.bf16 %v3333, %v3333
          %v3462 = vpack.c.bf16 %v3334, %v3334
          %v3463 = vpack.c.bf16 %v3335, %v3335
          %v3464 = vpack.c.bf16 %v3336, %v3336
          %v3465 = vpack.c.bf16 %v3337, %v3337
          %v3466 = vpack.c.bf16 %v3338, %v3338
          %v3467 = vpack.c.bf16 %v3339, %v3339
          %v3468 = vpack.c.bf16 %v3340, %v3340
          %v3469 = vpack.c.bf16 %v3341, %v3341
          %v3470 = vpack.c.bf16 %v3342, %v3342
          %v3471 = vpack.c.bf16 %v3343, %v3343
          %v3472 = vpack.c.bf16 %v3344, %v3344
          %v3505 = vunpack.c.l.b16 %v3345
          %v3506 = vunpack.c.l.b16 %v3346
          %v3507 = vunpack.c.l.b16 %v3347
          %v3508 = vunpack.c.l.b16 %v3348
          %v3509 = vunpack.c.l.b16 %v3349
          %v3510 = vunpack.c.l.b16 %v3350
          %v3511 = vunpack.c.l.b16 %v3351
          %v3512 = vunpack.c.l.b16 %v3352
          %v3513 = vunpack.c.l.b16 %v3353
          %v3514 = vunpack.c.l.b16 %v3354
          %v3515 = vunpack.c.l.b16 %v3355
          %v3516 = vunpack.c.l.b16 %v3356
          %v3517 = vunpack.c.l.b16 %v3357
          %v3518 = vunpack.c.l.b16 %v3358
          %v3519 = vunpack.c.l.b16 %v3359
          %v3520 = vunpack.c.l.b16 %v3360
          %v3521 = vunpack.c.l.b16 %v3361
          %v3522 = vunpack.c.l.b16 %v3362
          %v3523 = vunpack.c.l.b16 %v3363
          %v3524 = vunpack.c.l.b16 %v3364
          %v3525 = vunpack.c.l.b16 %v3365
          %v3526 = vunpack.c.l.b16 %v3366
          %v3527 = vunpack.c.l.b16 %v3367
          %v3528 = vunpack.c.l.b16 %v3368
          %v3529 = vunpack.c.l.b16 %v3369
          %v3530 = vunpack.c.l.b16 %v3370
          %v3531 = vunpack.c.l.b16 %v3371
          %v3532 = vunpack.c.l.b16 %v3372
          %v3533 = vunpack.c.l.b16 %v3373
          %v3534 = vunpack.c.l.b16 %v3374
          %v3535 = vunpack.c.l.b16 %v3375
          %v3536 = vunpack.c.l.b16 %v3376
          %v3537 = vpack.c.b16 %v3506, %v3505
          %v3538 = vpack.c.b16 %v3508, %v3507
          %v3539 = vpack.c.b16 %v3510, %v3509
          %v3540 = vpack.c.b16 %v3512, %v3511
          %v3541 = vpack.c.b16 %v3514, %v3513
          %v3542 = vpack.c.b16 %v3516, %v3515
          %v3543 = vpack.c.b16 %v3518, %v3517
          %v3544 = vpack.c.b16 %v3520, %v3519
          %v3545 = vpack.c.b16 %v3522, %v3521
          %v3546 = vpack.c.b16 %v3524, %v3523
          %v3547 = vpack.c.b16 %v3526, %v3525
          %v3548 = vpack.c.b16 %v3528, %v3527
          %v3549 = vpack.c.b16 %v3530, %v3529
          %v3550 = vpack.c.b16 %v3532, %v3531
          %v3551 = vpack.c.b16 %v3534, %v3533
          %v3552 = vpack.c.b16 %v3536, %v3535
          %v3585 = vunpack.c.l.b16 %v900
          %v3586 = vunpack.c.l.b16 %v901
          %v3587 = vunpack.c.l.b16 %v902
          %v3588 = vunpack.c.l.b16 %v903
          %v3589 = vunpack.c.l.b16 %v904
          %v3590 = vunpack.c.l.b16 %v905
          %v3591 = vunpack.c.l.b16 %v906
          %v3592 = vunpack.c.l.b16 %v907
          %v3593 = vunpack.c.l.b16 %v908
          %v3594 = vunpack.c.l.b16 %v909
          %v3595 = vunpack.c.l.b16 %v910
          %v3596 = vunpack.c.l.b16 %v911
          %v3597 = vunpack.c.l.b16 %v912
          %v3598 = vunpack.c.l.b16 %v913
          %v3599 = vunpack.c.l.b16 %v914
          %v3600 = vunpack.c.l.b16 %v915
          %v3601 = vpack.c.b16 %v3586, %v3585
          %v3602 = vpack.c.b16 %v3588, %v3587
          %v3603 = vpack.c.b16 %v3590, %v3589
          %v3604 = vpack.c.b16 %v3592, %v3591
          %v3605 = vpack.c.b16 %v3594, %v3593
          %v3606 = vpack.c.b16 %v3596, %v3595
          %v3607 = vpack.c.b16 %v3598, %v3597
          %v3608 = vpack.c.b16 %v3600, %v3599
          %3617 = vmatpush.bf16.msra.mxu0 %v3608
          %3618 = vmatpush.bf16.msra.mxu0 %v3607
          %3619 = vmatpush.bf16.msra.mxu0 %v3606
          %3620 = vmatpush.bf16.msra.mxu0 %v3605
          %3621 = vmatpush.bf16.msra.mxu0 %v3604
          %3622 = vmatpush.bf16.msra.mxu0 %v3603
          %3623 = vmatpush.bf16.msra.mxu0 %v3602
          %3624 = vmatpush.bf16.msra.mxu0 %v3601
          %3625 = vmatmul.bf16.gmra.mxu0 %v3537
          %v3626 = vpop.f32.mrf.mxu0
          %v3627 = vadd.f32 0.0, %v3626
          %v3628 = vpop.f32.mrf.mxu0
          %v3629 = vadd.f32 0.0, %v3628
          %3630 = vmatmul.bf16.gmra.mxu0 %v3538
          %v3631 = vpop.f32.mrf.mxu0
          %v3632 = vadd.f32 0.0, %v3631
          %v3633 = vpop.f32.mrf.mxu0
          %v3634 = vadd.f32 0.0, %v3633
          %3635 = vmatmul.bf16.gmra.mxu0 %v3539
          %v3636 = vpop.f32.mrf.mxu0
          %v3637 = vadd.f32 0.0, %v3636
          %v3638 = vpop.f32.mrf.mxu0
          %v3639 = vadd.f32 0.0, %v3638
          %3640 = vmatmul.bf16.gmra.mxu0 %v3540
          %v3641 = vpop.f32.mrf.mxu0
          %v3642 = vadd.f32 0.0, %v3641
          %v3643 = vpop.f32.mrf.mxu0
          %v3644 = vadd.f32 0.0, %v3643
          %3645 = vmatmul.bf16.gmra.mxu0 %v3541
          %v3646 = vpop.f32.mrf.mxu0
          %v3647 = vadd.f32 0.0, %v3646
          %v3648 = vpop.f32.mrf.mxu0
          %v3649 = vadd.f32 0.0, %v3648
          %3650 = vmatmul.bf16.gmra.mxu0 %v3542
          %v3651 = vpop.f32.mrf.mxu0
          %v3652 = vadd.f32 0.0, %v3651
          %v3653 = vpop.f32.mrf.mxu0
          %v3654 = vadd.f32 0.0, %v3653
          %3655 = vmatmul.bf16.gmra.mxu0 %v3543
          %v3656 = vpop.f32.mrf.mxu0
          %v3657 = vadd.f32 0.0, %v3656
          %v3658 = vpop.f32.mrf.mxu0
          %v3659 = vadd.f32 0.0, %v3658
          %3660 = vmatmul.bf16.gmra.mxu0 %v3544
          %v3661 = vpop.f32.mrf.mxu0
          %v3662 = vadd.f32 0.0, %v3661
          %v3663 = vpop.f32.mrf.mxu0
          %v3664 = vadd.f32 0.0, %v3663
          %3665 = vmatmul.bf16.gmra.mxu0 %v3545
          %v3666 = vpop.f32.mrf.mxu0
          %v3667 = vadd.f32 0.0, %v3666
          %v3668 = vpop.f32.mrf.mxu0
          %v3669 = vadd.f32 0.0, %v3668
          %3670 = vmatmul.bf16.gmra.mxu0 %v3546
          %v3671 = vpop.f32.mrf.mxu0
          %v3672 = vadd.f32 0.0, %v3671
          %v3673 = vpop.f32.mrf.mxu0
          %v3674 = vadd.f32 0.0, %v3673
          %3675 = vmatmul.bf16.gmra.mxu0 %v3547
          %v3676 = vpop.f32.mrf.mxu0
          %v3677 = vadd.f32 0.0, %v3676
          %v3678 = vpop.f32.mrf.mxu0
          %v3679 = vadd.f32 0.0, %v3678
          %3680 = vmatmul.bf16.gmra.mxu0 %v3548
          %v3681 = vpop.f32.mrf.mxu0
          %v3682 = vadd.f32 0.0, %v3681
          %v3683 = vpop.f32.mrf.mxu0
          %v3684 = vadd.f32 0.0, %v3683
          %3685 = vmatmul.bf16.gmra.mxu0 %v3549
          %v3686 = vpop.f32.mrf.mxu0
          %v3687 = vadd.f32 0.0, %v3686
          %v3688 = vpop.f32.mrf.mxu0
          %v3689 = vadd.f32 0.0, %v3688
          %3690 = vmatmul.bf16.gmra.mxu0 %v3550
          %v3691 = vpop.f32.mrf.mxu0
          %v3692 = vadd.f32 0.0, %v3691
          %v3693 = vpop.f32.mrf.mxu0
          %v3694 = vadd.f32 0.0, %v3693
          %3695 = vmatmul.bf16.gmra.mxu0 %v3551
          %v3696 = vpop.f32.mrf.mxu0
          %v3697 = vadd.f32 0.0, %v3696
          %v3698 = vpop.f32.mrf.mxu0
          %v3699 = vadd.f32 0.0, %v3698
          %3700 = vmatmul.bf16.gmra.mxu0 %v3552
          %v3701 = vpop.f32.mrf.mxu0
          %v3702 = vadd.f32 0.0, %v3701
          %v3703 = vpop.f32.mrf.mxu0
          %v3704 = vadd.f32 0.0, %v3703
          %3705 = vdwg.mxu0
          %v3738 = vunpack.c.l.b16 %v3377
          %v3739 = vunpack.c.l.b16 %v3378
          %v3740 = vunpack.c.l.b16 %v3379
          %v3741 = vunpack.c.l.b16 %v3380
          %v3742 = vunpack.c.l.b16 %v3381
          %v3743 = vunpack.c.l.b16 %v3382
          %v3744 = vunpack.c.l.b16 %v3383
          %v3745 = vunpack.c.l.b16 %v3384
          %v3746 = vunpack.c.l.b16 %v3385
          %v3747 = vunpack.c.l.b16 %v3386
          %v3748 = vunpack.c.l.b16 %v3387
          %v3749 = vunpack.c.l.b16 %v3388
          %v3750 = vunpack.c.l.b16 %v3389
          %v3751 = vunpack.c.l.b16 %v3390
          %v3752 = vunpack.c.l.b16 %v3391
          %v3753 = vunpack.c.l.b16 %v3392
          %v3754 = vunpack.c.l.b16 %v3393
          %v3755 = vunpack.c.l.b16 %v3394
          %v3756 = vunpack.c.l.b16 %v3395
          %v3757 = vunpack.c.l.b16 %v3396
          %v3758 = vunpack.c.l.b16 %v3397
          %v3759 = vunpack.c.l.b16 %v3398
          %v3760 = vunpack.c.l.b16 %v3399
          %v3761 = vunpack.c.l.b16 %v3400
          %v3762 = vunpack.c.l.b16 %v3401
          %v3763 = vunpack.c.l.b16 %v3402
          %v3764 = vunpack.c.l.b16 %v3403
          %v3765 = vunpack.c.l.b16 %v3404
          %v3766 = vunpack.c.l.b16 %v3405
          %v3767 = vunpack.c.l.b16 %v3406
          %v3768 = vunpack.c.l.b16 %v3407
          %v3769 = vunpack.c.l.b16 %v3408
          %v3770 = vpack.c.b16 %v3739, %v3738
          %v3771 = vpack.c.b16 %v3741, %v3740
          %v3772 = vpack.c.b16 %v3743, %v3742
          %v3773 = vpack.c.b16 %v3745, %v3744
          %v3774 = vpack.c.b16 %v3747, %v3746
          %v3775 = vpack.c.b16 %v3749, %v3748
          %v3776 = vpack.c.b16 %v3751, %v3750
          %v3777 = vpack.c.b16 %v3753, %v3752
          %v3778 = vpack.c.b16 %v3755, %v3754
          %v3779 = vpack.c.b16 %v3757, %v3756
          %v3780 = vpack.c.b16 %v3759, %v3758
          %v3781 = vpack.c.b16 %v3761, %v3760
          %v3782 = vpack.c.b16 %v3763, %v3762
          %v3783 = vpack.c.b16 %v3765, %v3764
          %v3784 = vpack.c.b16 %v3767, %v3766
          %v3785 = vpack.c.b16 %v3769, %v3768
          %v3818 = vunpack.c.l.b16 %v916
          %v3819 = vunpack.c.l.b16 %v917
          %v3820 = vunpack.c.l.b16 %v918
          %v3821 = vunpack.c.l.b16 %v919
          %v3822 = vunpack.c.l.b16 %v920
          %v3823 = vunpack.c.l.b16 %v921
          %v3824 = vunpack.c.l.b16 %v922
          %v3825 = vunpack.c.l.b16 %v923
          %v3826 = vunpack.c.l.b16 %v924
          %v3827 = vunpack.c.l.b16 %v925
          %v3828 = vunpack.c.l.b16 %v926
          %v3829 = vunpack.c.l.b16 %v927
          %v3830 = vunpack.c.l.b16 %v928
          %v3831 = vunpack.c.l.b16 %v929
          %v3832 = vunpack.c.l.b16 %v930
          %v3833 = vunpack.c.l.b16 %v931
          %v3834 = vpack.c.b16 %v3819, %v3818
          %v3835 = vpack.c.b16 %v3821, %v3820
          %v3836 = vpack.c.b16 %v3823, %v3822
          %v3837 = vpack.c.b16 %v3825, %v3824
          %v3838 = vpack.c.b16 %v3827, %v3826
          %v3839 = vpack.c.b16 %v3829, %v3828
          %v3840 = vpack.c.b16 %v3831, %v3830
          %v3841 = vpack.c.b16 %v3833, %v3832
          %3850 = vmatpush.bf16.msra.mxu0 %v3841
          %3851 = vmatpush.bf16.msra.mxu0 %v3840
          %3852 = vmatpush.bf16.msra.mxu0 %v3839
          %3853 = vmatpush.bf16.msra.mxu0 %v3838
          %3854 = vmatpush.bf16.msra.mxu0 %v3837
          %3855 = vmatpush.bf16.msra.mxu0 %v3836
          %3856 = vmatpush.bf16.msra.mxu0 %v3835
          %3857 = vmatpush.bf16.msra.mxu0 %v3834
          %3858 = vmatmul.bf16.gmra.mxu0 %v3770
          %v3859 = vpop.f32.mrf.mxu0
          %v3860 = vadd.f32 0.0, %v3859
          %v3861 = vpop.f32.mrf.mxu0
          %v3862 = vadd.f32 0.0, %v3861
          %3863 = vmatmul.bf16.gmra.mxu0 %v3771
          %v3864 = vpop.f32.mrf.mxu0
          %v3865 = vadd.f32 0.0, %v3864
          %v3866 = vpop.f32.mrf.mxu0
          %v3867 = vadd.f32 0.0, %v3866
          %3868 = vmatmul.bf16.gmra.mxu0 %v3772
          %v3869 = vpop.f32.mrf.mxu0
          %v3870 = vadd.f32 0.0, %v3869
          %v3871 = vpop.f32.mrf.mxu0
          %v3872 = vadd.f32 0.0, %v3871
          %3873 = vmatmul.bf16.gmra.mxu0 %v3773
          %v3874 = vpop.f32.mrf.mxu0
          %v3875 = vadd.f32 0.0, %v3874
          %v3876 = vpop.f32.mrf.mxu0
          %v3877 = vadd.f32 0.0, %v3876
          %3878 = vmatmul.bf16.gmra.mxu0 %v3774
          %v3879 = vpop.f32.mrf.mxu0
          %v3880 = vadd.f32 0.0, %v3879
          %v3881 = vpop.f32.mrf.mxu0
          %v3882 = vadd.f32 0.0, %v3881
          %3883 = vmatmul.bf16.gmra.mxu0 %v3775
          %v3884 = vpop.f32.mrf.mxu0
          %v3885 = vadd.f32 0.0, %v3884
          %v3886 = vpop.f32.mrf.mxu0
          %v3887 = vadd.f32 0.0, %v3886
          %3888 = vmatmul.bf16.gmra.mxu0 %v3776
          %v3889 = vpop.f32.mrf.mxu0
          %v3890 = vadd.f32 0.0, %v3889
          %v3891 = vpop.f32.mrf.mxu0
          %v3892 = vadd.f32 0.0, %v3891
          %3893 = vmatmul.bf16.gmra.mxu0 %v3777
          %v3894 = vpop.f32.mrf.mxu0
          %v3895 = vadd.f32 0.0, %v3894
          %v3896 = vpop.f32.mrf.mxu0
          %v3897 = vadd.f32 0.0, %v3896
          %3898 = vmatmul.bf16.gmra.mxu0 %v3778
          %v3899 = vpop.f32.mrf.mxu0
          %v3900 = vadd.f32 0.0, %v3899
          %v3901 = vpop.f32.mrf.mxu0
          %v3902 = vadd.f32 0.0, %v3901
          %3903 = vmatmul.bf16.gmra.mxu0 %v3779
          %v3904 = vpop.f32.mrf.mxu0
          %v3905 = vadd.f32 0.0, %v3904
          %v3906 = vpop.f32.mrf.mxu0
          %v3907 = vadd.f32 0.0, %v3906
          %3908 = vmatmul.bf16.gmra.mxu0 %v3780
          %v3909 = vpop.f32.mrf.mxu0
          %v3910 = vadd.f32 0.0, %v3909
          %v3911 = vpop.f32.mrf.mxu0
          %v3912 = vadd.f32 0.0, %v3911
          %3913 = vmatmul.bf16.gmra.mxu0 %v3781
          %v3914 = vpop.f32.mrf.mxu0
          %v3915 = vadd.f32 0.0, %v3914
          %v3916 = vpop.f32.mrf.mxu0
          %v3917 = vadd.f32 0.0, %v3916
          %3918 = vmatmul.bf16.gmra.mxu0 %v3782
          %v3919 = vpop.f32.mrf.mxu0
          %v3920 = vadd.f32 0.0, %v3919
          %v3921 = vpop.f32.mrf.mxu0
          %v3922 = vadd.f32 0.0, %v3921
          %3923 = vmatmul.bf16.gmra.mxu0 %v3783
          %v3924 = vpop.f32.mrf.mxu0
          %v3925 = vadd.f32 0.0, %v3924
          %v3926 = vpop.f32.mrf.mxu0
          %v3927 = vadd.f32 0.0, %v3926
          %3928 = vmatmul.bf16.gmra.mxu0 %v3784
          %v3929 = vpop.f32.mrf.mxu0
          %v3930 = vadd.f32 0.0, %v3929
          %v3931 = vpop.f32.mrf.mxu0
          %v3932 = vadd.f32 0.0, %v3931
          %3933 = vmatmul.bf16.gmra.mxu0 %v3785
          %v3934 = vpop.f32.mrf.mxu0
          %v3935 = vadd.f32 0.0, %v3934
          %v3936 = vpop.f32.mrf.mxu0
          %v3937 = vadd.f32 0.0, %v3936
          %3938 = vdwg.mxu0
          %v3971 = vunpack.c.l.b16 %v3409
          %v3972 = vunpack.c.l.b16 %v3410
          %v3973 = vunpack.c.l.b16 %v3411
          %v3974 = vunpack.c.l.b16 %v3412
          %v3975 = vunpack.c.l.b16 %v3413
          %v3976 = vunpack.c.l.b16 %v3414
          %v3977 = vunpack.c.l.b16 %v3415
          %v3978 = vunpack.c.l.b16 %v3416
          %v3979 = vunpack.c.l.b16 %v3417
          %v3980 = vunpack.c.l.b16 %v3418
          %v3981 = vunpack.c.l.b16 %v3419
          %v3982 = vunpack.c.l.b16 %v3420
          %v3983 = vunpack.c.l.b16 %v3421
          %v3984 = vunpack.c.l.b16 %v3422
          %v3985 = vunpack.c.l.b16 %v3423
          %v3986 = vunpack.c.l.b16 %v3424
          %v3987 = vunpack.c.l.b16 %v3425
          %v3988 = vunpack.c.l.b16 %v3426
          %v3989 = vunpack.c.l.b16 %v3427
          %v3990 = vunpack.c.l.b16 %v3428
          %v3991 = vunpack.c.l.b16 %v3429
          %v3992 = vunpack.c.l.b16 %v3430
          %v3993 = vunpack.c.l.b16 %v3431
          %v3994 = vunpack.c.l.b16 %v3432
          %v3995 = vunpack.c.l.b16 %v3433
          %v3996 = vunpack.c.l.b16 %v3434
          %v3997 = vunpack.c.l.b16 %v3435
          %v3998 = vunpack.c.l.b16 %v3436
          %v3999 = vunpack.c.l.b16 %v3437
          %v4000 = vunpack.c.l.b16 %v3438
          %v4001 = vunpack.c.l.b16 %v3439
          %v4002 = vunpack.c.l.b16 %v3440
          %v4003 = vpack.c.b16 %v3972, %v3971
          %v4004 = vpack.c.b16 %v3974, %v3973
          %v4005 = vpack.c.b16 %v3976, %v3975
          %v4006 = vpack.c.b16 %v3978, %v3977
          %v4007 = vpack.c.b16 %v3980, %v3979
          %v4008 = vpack.c.b16 %v3982, %v3981
          %v4009 = vpack.c.b16 %v3984, %v3983
          %v4010 = vpack.c.b16 %v3986, %v3985
          %v4011 = vpack.c.b16 %v3988, %v3987
          %v4012 = vpack.c.b16 %v3990, %v3989
          %v4013 = vpack.c.b16 %v3992, %v3991
          %v4014 = vpack.c.b16 %v3994, %v3993
          %v4015 = vpack.c.b16 %v3996, %v3995
          %v4016 = vpack.c.b16 %v3998, %v3997
          %v4017 = vpack.c.b16 %v4000, %v3999
          %v4018 = vpack.c.b16 %v4002, %v4001
          %v4051 = vunpack.c.l.b16 %v932
          %v4052 = vunpack.c.l.b16 %v933
          %v4053 = vunpack.c.l.b16 %v934
          %v4054 = vunpack.c.l.b16 %v935
          %v4055 = vunpack.c.l.b16 %v936
          %v4056 = vunpack.c.l.b16 %v937
          %v4057 = vunpack.c.l.b16 %v938
          %v4058 = vunpack.c.l.b16 %v939
          %v4059 = vunpack.c.l.b16 %v940
          %v4060 = vunpack.c.l.b16 %v941
          %v4061 = vunpack.c.l.b16 %v942
          %v4062 = vunpack.c.l.b16 %v943
          %v4063 = vunpack.c.l.b16 %v944
          %v4064 = vunpack.c.l.b16 %v945
          %v4065 = vunpack.c.l.b16 %v946
          %v4066 = vunpack.c.l.b16 %v947
          %v4067 = vpack.c.b16 %v4052, %v4051
          %v4068 = vpack.c.b16 %v4054, %v4053
          %v4069 = vpack.c.b16 %v4056, %v4055
          %v4070 = vpack.c.b16 %v4058, %v4057
          %v4071 = vpack.c.b16 %v4060, %v4059
          %v4072 = vpack.c.b16 %v4062, %v4061
          %v4073 = vpack.c.b16 %v4064, %v4063
          %v4074 = vpack.c.b16 %v4066, %v4065
          %4083 = vmatpush.bf16.msra.mxu0 %v4074
          %4084 = vmatpush.bf16.msra.mxu0 %v4073
          %4085 = vmatpush.bf16.msra.mxu0 %v4072
          %4086 = vmatpush.bf16.msra.mxu0 %v4071
          %4087 = vmatpush.bf16.msra.mxu0 %v4070
          %4088 = vmatpush.bf16.msra.mxu0 %v4069
          %4089 = vmatpush.bf16.msra.mxu0 %v4068
          %4090 = vmatpush.bf16.msra.mxu0 %v4067
          %4091 = vmatmul.bf16.gmra.mxu0 %v4003
          %v4092 = vpop.f32.mrf.mxu0
          %v4093 = vadd.f32 0.0, %v4092
          %v4094 = vpop.f32.mrf.mxu0
          %v4095 = vadd.f32 0.0, %v4094
          %4096 = vmatmul.bf16.gmra.mxu0 %v4004
          %v4097 = vpop.f32.mrf.mxu0
          %v4098 = vadd.f32 0.0, %v4097
          %v4099 = vpop.f32.mrf.mxu0
          %v4100 = vadd.f32 0.0, %v4099
          %4101 = vmatmul.bf16.gmra.mxu0 %v4005
          %v4102 = vpop.f32.mrf.mxu0
          %v4103 = vadd.f32 0.0, %v4102
          %v4104 = vpop.f32.mrf.mxu0
          %v4105 = vadd.f32 0.0, %v4104
          %4106 = vmatmul.bf16.gmra.mxu0 %v4006
          %v4107 = vpop.f32.mrf.mxu0
          %v4108 = vadd.f32 0.0, %v4107
          %v4109 = vpop.f32.mrf.mxu0
          %v4110 = vadd.f32 0.0, %v4109
          %4111 = vmatmul.bf16.gmra.mxu0 %v4007
          %v4112 = vpop.f32.mrf.mxu0
          %v4113 = vadd.f32 0.0, %v4112
          %v4114 = vpop.f32.mrf.mxu0
          %v4115 = vadd.f32 0.0, %v4114
          %4116 = vmatmul.bf16.gmra.mxu0 %v4008
          %v4117 = vpop.f32.mrf.mxu0
          %v4118 = vadd.f32 0.0, %v4117
          %v4119 = vpop.f32.mrf.mxu0
          %v4120 = vadd.f32 0.0, %v4119
          %4121 = vmatmul.bf16.gmra.mxu0 %v4009
          %v4122 = vpop.f32.mrf.mxu0
          %v4123 = vadd.f32 0.0, %v4122
          %v4124 = vpop.f32.mrf.mxu0
          %v4125 = vadd.f32 0.0, %v4124
          %4126 = vmatmul.bf16.gmra.mxu0 %v4010
          %v4127 = vpop.f32.mrf.mxu0
          %v4128 = vadd.f32 0.0, %v4127
          %v4129 = vpop.f32.mrf.mxu0
          %v4130 = vadd.f32 0.0, %v4129
          %4131 = vmatmul.bf16.gmra.mxu0 %v4011
          %v4132 = vpop.f32.mrf.mxu0
          %v4133 = vadd.f32 0.0, %v4132
          %v4134 = vpop.f32.mrf.mxu0
          %v4135 = vadd.f32 0.0, %v4134
          %4136 = vmatmul.bf16.gmra.mxu0 %v4012
          %v4137 = vpop.f32.mrf.mxu0
          %v4138 = vadd.f32 0.0, %v4137
          %v4139 = vpop.f32.mrf.mxu0
          %v4140 = vadd.f32 0.0, %v4139
          %4141 = vmatmul.bf16.gmra.mxu0 %v4013
          %v4142 = vpop.f32.mrf.mxu0
          %v4143 = vadd.f32 0.0, %v4142
          %v4144 = vpop.f32.mrf.mxu0
          %v4145 = vadd.f32 0.0, %v4144
          %4146 = vmatmul.bf16.gmra.mxu0 %v4014
          %v4147 = vpop.f32.mrf.mxu0
          %v4148 = vadd.f32 0.0, %v4147
          %v4149 = vpop.f32.mrf.mxu0
          %v4150 = vadd.f32 0.0, %v4149
          %4151 = vmatmul.bf16.gmra.mxu0 %v4015
          %v4152 = vpop.f32.mrf.mxu0
          %v4153 = vadd.f32 0.0, %v4152
          %v4154 = vpop.f32.mrf.mxu0
          %v4155 = vadd.f32 0.0, %v4154
          %4156 = vmatmul.bf16.gmra.mxu0 %v4016
          %v4157 = vpop.f32.mrf.mxu0
          %v4158 = vadd.f32 0.0, %v4157
          %v4159 = vpop.f32.mrf.mxu0
          %v4160 = vadd.f32 0.0, %v4159
          %4161 = vmatmul.bf16.gmra.mxu0 %v4017
          %v4162 = vpop.f32.mrf.mxu0
          %v4163 = vadd.f32 0.0, %v4162
          %v4164 = vpop.f32.mrf.mxu0
          %v4165 = vadd.f32 0.0, %v4164
          %4166 = vmatmul.bf16.gmra.mxu0 %v4018
          %v4167 = vpop.f32.mrf.mxu0
          %v4168 = vadd.f32 0.0, %v4167
          %v4169 = vpop.f32.mrf.mxu0
          %v4170 = vadd.f32 0.0, %v4169
          %4171 = vdwg.mxu0
          %v4204 = vunpack.c.l.b16 %v3441
          %v4205 = vunpack.c.l.b16 %v3442
          %v4206 = vunpack.c.l.b16 %v3443
          %v4207 = vunpack.c.l.b16 %v3444
          %v4208 = vunpack.c.l.b16 %v3445
          %v4209 = vunpack.c.l.b16 %v3446
          %v4210 = vunpack.c.l.b16 %v3447
          %v4211 = vunpack.c.l.b16 %v3448
          %v4212 = vunpack.c.l.b16 %v3449
          %v4213 = vunpack.c.l.b16 %v3450
          %v4214 = vunpack.c.l.b16 %v3451
          %v4215 = vunpack.c.l.b16 %v3452
          %v4216 = vunpack.c.l.b16 %v3453
          %v4217 = vunpack.c.l.b16 %v3454
          %v4218 = vunpack.c.l.b16 %v3455
          %v4219 = vunpack.c.l.b16 %v3456
          %v4220 = vunpack.c.l.b16 %v3457
          %v4221 = vunpack.c.l.b16 %v3458
          %v4222 = vunpack.c.l.b16 %v3459
          %v4223 = vunpack.c.l.b16 %v3460
          %v4224 = vunpack.c.l.b16 %v3461
          %v4225 = vunpack.c.l.b16 %v3462
          %v4226 = vunpack.c.l.b16 %v3463
          %v4227 = vunpack.c.l.b16 %v3464
          %v4228 = vunpack.c.l.b16 %v3465
          %v4229 = vunpack.c.l.b16 %v3466
          %v4230 = vunpack.c.l.b16 %v3467
          %v4231 = vunpack.c.l.b16 %v3468
          %v4232 = vunpack.c.l.b16 %v3469
          %v4233 = vunpack.c.l.b16 %v3470
          %v4234 = vunpack.c.l.b16 %v3471
          %v4235 = vunpack.c.l.b16 %v3472
          %v4236 = vpack.c.b16 %v4205, %v4204
          %v4237 = vpack.c.b16 %v4207, %v4206
          %v4238 = vpack.c.b16 %v4209, %v4208
          %v4239 = vpack.c.b16 %v4211, %v4210
          %v4240 = vpack.c.b16 %v4213, %v4212
          %v4241 = vpack.c.b16 %v4215, %v4214
          %v4242 = vpack.c.b16 %v4217, %v4216
          %v4243 = vpack.c.b16 %v4219, %v4218
          %v4244 = vpack.c.b16 %v4221, %v4220
          %v4245 = vpack.c.b16 %v4223, %v4222
          %v4246 = vpack.c.b16 %v4225, %v4224
          %v4247 = vpack.c.b16 %v4227, %v4226
          %v4248 = vpack.c.b16 %v4229, %v4228
          %v4249 = vpack.c.b16 %v4231, %v4230
          %v4250 = vpack.c.b16 %v4233, %v4232
          %v4251 = vpack.c.b16 %v4235, %v4234
          %v4284 = vunpack.c.l.b16 %v948
          %v4285 = vunpack.c.l.b16 %v949
          %v4286 = vunpack.c.l.b16 %v950
          %v4287 = vunpack.c.l.b16 %v951
          %v4288 = vunpack.c.l.b16 %v952
          %v4289 = vunpack.c.l.b16 %v953
          %v4290 = vunpack.c.l.b16 %v954
          %v4291 = vunpack.c.l.b16 %v955
          %v4292 = vunpack.c.l.b16 %v956
          %v4293 = vunpack.c.l.b16 %v957
          %v4294 = vunpack.c.l.b16 %v958
          %v4295 = vunpack.c.l.b16 %v959
          %v4296 = vunpack.c.l.b16 %v960
          %v4297 = vunpack.c.l.b16 %v961
          %v4298 = vunpack.c.l.b16 %v962
          %v4299 = vunpack.c.l.b16 %v963
          %v4300 = vpack.c.b16 %v4285, %v4284
          %v4301 = vpack.c.b16 %v4287, %v4286
          %v4302 = vpack.c.b16 %v4289, %v4288
          %v4303 = vpack.c.b16 %v4291, %v4290
          %v4304 = vpack.c.b16 %v4293, %v4292
          %v4305 = vpack.c.b16 %v4295, %v4294
          %v4306 = vpack.c.b16 %v4297, %v4296
          %v4307 = vpack.c.b16 %v4299, %v4298
          %4316 = vmatpush.bf16.msra.mxu0 %v4307
          %4317 = vmatpush.bf16.msra.mxu0 %v4306
          %4318 = vmatpush.bf16.msra.mxu0 %v4305
          %4319 = vmatpush.bf16.msra.mxu0 %v4304
          %4320 = vmatpush.bf16.msra.mxu0 %v4303
          %4321 = vmatpush.bf16.msra.mxu0 %v4302
          %4322 = vmatpush.bf16.msra.mxu0 %v4301
          %4323 = vmatpush.bf16.msra.mxu0 %v4300
          %4324 = vmatmul.bf16.gmra.mxu0 %v4236
          %v4325 = vpop.f32.mrf.mxu0
          %v4326 = vadd.f32 0.0, %v4325
          %v4327 = vpop.f32.mrf.mxu0
          %v4328 = vadd.f32 0.0, %v4327
          %4329 = vmatmul.bf16.gmra.mxu0 %v4237
          %v4330 = vpop.f32.mrf.mxu0
          %v4331 = vadd.f32 0.0, %v4330
          %v4332 = vpop.f32.mrf.mxu0
          %v4333 = vadd.f32 0.0, %v4332
          %4334 = vmatmul.bf16.gmra.mxu0 %v4238
          %v4335 = vpop.f32.mrf.mxu0
          %v4336 = vadd.f32 0.0, %v4335
          %v4337 = vpop.f32.mrf.mxu0
          %v4338 = vadd.f32 0.0, %v4337
          %4339 = vmatmul.bf16.gmra.mxu0 %v4239
          %v4340 = vpop.f32.mrf.mxu0
          %v4341 = vadd.f32 0.0, %v4340
          %v4342 = vpop.f32.mrf.mxu0
          %v4343 = vadd.f32 0.0, %v4342
          %4344 = vmatmul.bf16.gmra.mxu0 %v4240
          %v4345 = vpop.f32.mrf.mxu0
          %v4346 = vadd.f32 0.0, %v4345
          %v4347 = vpop.f32.mrf.mxu0
          %v4348 = vadd.f32 0.0, %v4347
          %4349 = vmatmul.bf16.gmra.mxu0 %v4241
          %v4350 = vpop.f32.mrf.mxu0
          %v4351 = vadd.f32 0.0, %v4350
          %v4352 = vpop.f32.mrf.mxu0
          %v4353 = vadd.f32 0.0, %v4352
          %4354 = vmatmul.bf16.gmra.mxu0 %v4242
          %v4355 = vpop.f32.mrf.mxu0
          %v4356 = vadd.f32 0.0, %v4355
          %v4357 = vpop.f32.mrf.mxu0
          %v4358 = vadd.f32 0.0, %v4357
          %4359 = vmatmul.bf16.gmra.mxu0 %v4243
          %v4360 = vpop.f32.mrf.mxu0
          %v4361 = vadd.f32 0.0, %v4360
          %v4362 = vpop.f32.mrf.mxu0
          %v4363 = vadd.f32 0.0, %v4362
          %4364 = vmatmul.bf16.gmra.mxu0 %v4244
          %v4365 = vpop.f32.mrf.mxu0
          %v4366 = vadd.f32 0.0, %v4365
          %v4367 = vpop.f32.mrf.mxu0
          %v4368 = vadd.f32 0.0, %v4367
          %4369 = vmatmul.bf16.gmra.mxu0 %v4245
          %v4370 = vpop.f32.mrf.mxu0
          %v4371 = vadd.f32 0.0, %v4370
          %v4372 = vpop.f32.mrf.mxu0
          %v4373 = vadd.f32 0.0, %v4372
          %4374 = vmatmul.bf16.gmra.mxu0 %v4246
          %v4375 = vpop.f32.mrf.mxu0
          %v4376 = vadd.f32 0.0, %v4375
          %v4377 = vpop.f32.mrf.mxu0
          %v4378 = vadd.f32 0.0, %v4377
          %4379 = vmatmul.bf16.gmra.mxu0 %v4247
          %v4380 = vpop.f32.mrf.mxu0
          %v4381 = vadd.f32 0.0, %v4380
          %v4382 = vpop.f32.mrf.mxu0
          %v4383 = vadd.f32 0.0, %v4382
          %4384 = vmatmul.bf16.gmra.mxu0 %v4248
          %v4385 = vpop.f32.mrf.mxu0
          %v4386 = vadd.f32 0.0, %v4385
          %v4387 = vpop.f32.mrf.mxu0
          %v4388 = vadd.f32 0.0, %v4387
          %4389 = vmatmul.bf16.gmra.mxu0 %v4249
          %v4390 = vpop.f32.mrf.mxu0
          %v4391 = vadd.f32 0.0, %v4390
          %v4392 = vpop.f32.mrf.mxu0
          %v4393 = vadd.f32 0.0, %v4392
          %4394 = vmatmul.bf16.gmra.mxu0 %v4250
          %v4395 = vpop.f32.mrf.mxu0
          %v4396 = vadd.f32 0.0, %v4395
          %v4397 = vpop.f32.mrf.mxu0
          %v4398 = vadd.f32 0.0, %v4397
          %4399 = vmatmul.bf16.gmra.mxu0 %v4251
          %v4400 = vpop.f32.mrf.mxu0
          %v4401 = vadd.f32 0.0, %v4400
          %v4402 = vpop.f32.mrf.mxu0
          %v4403 = vadd.f32 0.0, %v4402
          %4404 = vdwg.mxu0
          %4405 = vst [vmem:[%s317] sm:$0xff] %v3627
          %4406 = vst [vmem:[%s317 + $0x8] sm:$0xff] %v3629
          %4407 = vst [vmem:[%s317 + $0x10] sm:$0xff] %v3632
          %4408 = vst [vmem:[%s317 + $0x18] sm:$0xff] %v3634
          %4409 = vst [vmem:[%s317 + $0x20] sm:$0xff] %v3637
          %4410 = vst [vmem:[%s317 + $0x28] sm:$0xff] %v3639
          %4411 = vst [vmem:[%s317 + $0x30] sm:$0xff] %v3642
          %4412 = vst [vmem:[%s317 + $0x38] sm:$0xff] %v3644
          %4413 = vst [vmem:[%s317 + $0x40] sm:$0xff] %v3647
          %4414 = vst [vmem:[%s317 + $0x48] sm:$0xff] %v3649
          %4415 = vst [vmem:[%s317 + $0x50] sm:$0xff] %v3652
          %4416 = vst [vmem:[%s317 + $0x58] sm:$0xff] %v3654
          %4417 = vst [vmem:[%s317 + $0x60] sm:$0xff] %v3657
          %4418 = vst [vmem:[%s317 + $0x68] sm:$0xff] %v3659
          %4419 = vst [vmem:[%s317 + $0x70] sm:$0xff] %v3662
          %4420 = vst [vmem:[%s317 + $0x78] sm:$0xff] %v3664
          %4421 = vst [vmem:[%s317 + $0x80] sm:$0xff] %v3667
          %4422 = vst [vmem:[%s317 + $0x88] sm:$0xff] %v3669
          %4423 = vst [vmem:[%s317 + $0x90] sm:$0xff] %v3672
          %4424 = vst [vmem:[%s317 + $0x98] sm:$0xff] %v3674
          %4425 = vst [vmem:[%s317 + $0xa0] sm:$0xff] %v3677
          %4426 = vst [vmem:[%s317 + $0xa8] sm:$0xff] %v3679
          %4427 = vst [vmem:[%s317 + $0xb0] sm:$0xff] %v3682
          %4428 = vst [vmem:[%s317 + $0xb8] sm:$0xff] %v3684
          %4429 = vst [vmem:[%s317 + $0xc0] sm:$0xff] %v3687
          %4430 = vst [vmem:[%s317 + $0xc8] sm:$0xff] %v3689
          %4431 = vst [vmem:[%s317 + $0xd0] sm:$0xff] %v3692
          %4432 = vst [vmem:[%s317 + $0xd8] sm:$0xff] %v3694
          %4433 = vst [vmem:[%s317 + $0xe0] sm:$0xff] %v3697
          %4434 = vst [vmem:[%s317 + $0xe8] sm:$0xff] %v3699
          %4435 = vst [vmem:[%s317 + $0xf0] sm:$0xff] %v3702
          %4436 = vst [vmem:[%s317 + $0xf8] sm:$0xff] %v3704
          %4437 = vst [vmem:[%s317 + $0x100] sm:$0xff] %v3860
          %4438 = vst [vmem:[%s317 + $0x108] sm:$0xff] %v3862
          %4439 = vst [vmem:[%s317 + $0x110] sm:$0xff] %v3865
          %4440 = vst [vmem:[%s317 + $0x118] sm:$0xff] %v3867
          %4441 = vst [vmem:[%s317 + $0x120] sm:$0xff] %v3870
          %4442 = vst [vmem:[%s317 + $0x128] sm:$0xff] %v3872
          %4443 = vst [vmem:[%s317 + $0x130] sm:$0xff] %v3875
          %4444 = vst [vmem:[%s317 + $0x138] sm:$0xff] %v3877
          %4445 = vst [vmem:[%s317 + $0x140] sm:$0xff] %v3880
          %4446 = vst [vmem:[%s317 + $0x148] sm:$0xff] %v3882
          %4447 = vst [vmem:[%s317 + $0x150] sm:$0xff] %v3885
          %4448 = vst [vmem:[%s317 + $0x158] sm:$0xff] %v3887
          %4449 = vst [vmem:[%s317 + $0x160] sm:$0xff] %v3890
          %4450 = vst [vmem:[%s317 + $0x168] sm:$0xff] %v3892
          %4451 = vst [vmem:[%s317 + $0x170] sm:$0xff] %v3895
          %4452 = vst [vmem:[%s317 + $0x178] sm:$0xff] %v3897
          %4453 = vst [vmem:[%s317 + $0x180] sm:$0xff] %v3900
          %4454 = vst [vmem:[%s317 + $0x188] sm:$0xff] %v3902
          %4455 = vst [vmem:[%s317 + $0x190] sm:$0xff] %v3905
          %4456 = vst [vmem:[%s317 + $0x198] sm:$0xff] %v3907
          %4457 = vst [vmem:[%s317 + $0x1a0] sm:$0xff] %v3910
          %4458 = vst [vmem:[%s317 + $0x1a8] sm:$0xff] %v3912
          %4459 = vst [vmem:[%s317 + $0x1b0] sm:$0xff] %v3915
          %4460 = vst [vmem:[%s317 + $0x1b8] sm:$0xff] %v3917
          %4461 = vst [vmem:[%s317 + $0x1c0] sm:$0xff] %v3920
          %4462 = vst [vmem:[%s317 + $0x1c8] sm:$0xff] %v3922
          %4463 = vst [vmem:[%s317 + $0x1d0] sm:$0xff] %v3925
          %4464 = vst [vmem:[%s317 + $0x1d8] sm:$0xff] %v3927
          %4465 = vst [vmem:[%s317 + $0x1e0] sm:$0xff] %v3930
          %4466 = vst [vmem:[%s317 + $0x1e8] sm:$0xff] %v3932
          %4467 = vst [vmem:[%s317 + $0x1f0] sm:$0xff] %v3935
          %4468 = vst [vmem:[%s317 + $0x1f8] sm:$0xff] %v3937
          %4469 = vst [vmem:[%s317 + $0x200] sm:$0xff] %v4093
          %4470 = vst [vmem:[%s317 + $0x208] sm:$0xff] %v4095
          %4471 = vst [vmem:[%s317 + $0x210] sm:$0xff] %v4098
          %4472 = vst [vmem:[%s317 + $0x218] sm:$0xff] %v4100
          %4473 = vst [vmem:[%s317 + $0x220] sm:$0xff] %v4103
          %4474 = vst [vmem:[%s317 + $0x228] sm:$0xff] %v4105
          %4475 = vst [vmem:[%s317 + $0x230] sm:$0xff] %v4108
          %4476 = vst [vmem:[%s317 + $0x238] sm:$0xff] %v4110
          %4477 = vst [vmem:[%s317 + $0x240] sm:$0xff] %v4113
          %4478 = vst [vmem:[%s317 + $0x248] sm:$0xff] %v4115
          %4479 = vst [vmem:[%s317 + $0x250] sm:$0xff] %v4118
          %4480 = vst [vmem:[%s317 + $0x258] sm:$0xff] %v4120
          %4481 = vst [vmem:[%s317 + $0x260] sm:$0xff] %v4123
          %4482 = vst [vmem:[%s317 + $0x268] sm:$0xff] %v4125
          %4483 = vst [vmem:[%s317 + $0x270] sm:$0xff] %v4128
          %4484 = vst [vmem:[%s317 + $0x278] sm:$0xff] %v4130
          %4485 = vst [vmem:[%s317 + $0x280] sm:$0xff] %v4133
          %4486 = vst [vmem:[%s317 + $0x288] sm:$0xff] %v4135
          %4487 = vst [vmem:[%s317 + $0x290] sm:$0xff] %v4138
          %4488 = vst [vmem:[%s317 + $0x298] sm:$0xff] %v4140
          %4489 = vst [vmem:[%s317 + $0x2a0] sm:$0xff] %v4143
          %4490 = vst [vmem:[%s317 + $0x2a8] sm:$0xff] %v4145
          %4491 = vst [vmem:[%s317 + $0x2b0] sm:$0xff] %v4148
          %4492 = vst [vmem:[%s317 + $0x2b8] sm:$0xff] %v4150
          %4493 = vst [vmem:[%s317 + $0x2c0] sm:$0xff] %v4153
          %4494 = vst [vmem:[%s317 + $0x2c8] sm:$0xff] %v4155
          %4495 = vst [vmem:[%s317 + $0x2d0] sm:$0xff] %v4158
          %4496 = vst [vmem:[%s317 + $0x2d8] sm:$0xff] %v4160
          %4497 = vst [vmem:[%s317 + $0x2e0] sm:$0xff] %v4163
          %4498 = vst [vmem:[%s317 + $0x2e8] sm:$0xff] %v4165
          %4499 = vst [vmem:[%s317 + $0x2f0] sm:$0xff] %v4168
          %4500 = vst [vmem:[%s317 + $0x2f8] sm:$0xff] %v4170
          %4501 = vst [vmem:[%s317 + $0x300] sm:$0xff] %v4326
          %4502 = vst [vmem:[%s317 + $0x308] sm:$0xff] %v4328
          %4503 = vst [vmem:[%s317 + $0x310] sm:$0xff] %v4331
          %4504 = vst [vmem:[%s317 + $0x318] sm:$0xff] %v4333
          %4505 = vst [vmem:[%s317 + $0x320] sm:$0xff] %v4336
          %4506 = vst [vmem:[%s317 + $0x328] sm:$0xff] %v4338
          %4507 = vst [vmem:[%s317 + $0x330] sm:$0xff] %v4341
          %4508 = vst [vmem:[%s317 + $0x338] sm:$0xff] %v4343
          %4509 = vst [vmem:[%s317 + $0x340] sm:$0xff] %v4346
          %4510 = vst [vmem:[%s317 + $0x348] sm:$0xff] %v4348
          %4511 = vst [vmem:[%s317 + $0x350] sm:$0xff] %v4351
          %4512 = vst [vmem:[%s317 + $0x358] sm:$0xff] %v4353
          %4513 = vst [vmem:[%s317 + $0x360] sm:$0xff] %v4356
          %4514 = vst [vmem:[%s317 + $0x368] sm:$0xff] %v4358
          %4515 = vst [vmem:[%s317 + $0x370] sm:$0xff] %v4361
          %4516 = vst [vmem:[%s317 + $0x378] sm:$0xff] %v4363
          %4517 = vst [vmem:[%s317 + $0x380] sm:$0xff] %v4366
          %4518 = vst [vmem:[%s317 + $0x388] sm:$0xff] %v4368
          %4519 = vst [vmem:[%s317 + $0x390] sm:$0xff] %v4371
          %4520 = vst [vmem:[%s317 + $0x398] sm:$0xff] %v4373
          %4521 = vst [vmem:[%s317 + $0x3a0] sm:$0xff] %v4376
          %4522 = vst [vmem:[%s317 + $0x3a8] sm:$0xff] %v4378
          %4523 = vst [vmem:[%s317 + $0x3b0] sm:$0xff] %v4381
          %4524 = vst [vmem:[%s317 + $0x3b8] sm:$0xff] %v4383
          %4525 = vst [vmem:[%s317 + $0x3c0] sm:$0xff] %v4386
          %4526 = vst [vmem:[%s317 + $0x3c8] sm:$0xff] %v4388
          %4527 = vst [vmem:[%s317 + $0x3d0] sm:$0xff] %v4391
          %4528 = vst [vmem:[%s317 + $0x3d8] sm:$0xff] %v4393
          %4529 = vst [vmem:[%s317 + $0x3e0] sm:$0xff] %v4396
          %4530 = vst [vmem:[%s317 + $0x3e8] sm:$0xff] %v4398
          %4531 = vst [vmem:[%s317 + $0x3f0] sm:$0xff] %v4401
          %4532 = vst [vmem:[%s317 + $0x3f8] sm:$0xff] %v4403
        $region48: #{tpu_custom_call.1} parent=31 // pred_fallthru
          _
        %p4533 = scmp.ge.s32.totalorder %s1896, 128
        // Predicated region
        $region49: #{tpu_custom_call.1} parent=31 // pred_check
          %p4534 = pneg %p4533
        $region50: #{tpu_custom_call.1} parent=31 // pred_check_branch
          %4536 = sbr.rel (%p4534) target = $region52
        $region51: #{tpu_custom_call.1} parent=31 // pred_region
          %4537 = vmax.xlane.f32.xlu0 %v1118
          %v4538 = vpop.xlane.xlu0 %4537
          %4539 = vmax.xlane.f32.xlu0 %v1120
          %v4540 = vpop.xlane.xlu0 %4539
          %4541 = vmax.xlane.f32.xlu0 %v1123
          %v4542 = vpop.xlane.xlu0 %4541
          %4543 = vmax.xlane.f32.xlu0 %v1125
          %v4544 = vpop.xlane.xlu0 %4543
          %4545 = vmax.xlane.f32.xlu0 %v1128
          %v4546 = vpop.xlane.xlu0 %4545
          %4547 = vmax.xlane.f32.xlu0 %v1130
          %v4548 = vpop.xlane.xlu0 %4547
          %4549 = vmax.xlane.f32.xlu0 %v1133
          %v4550 = vpop.xlane.xlu0 %4549
          %4551 = vmax.xlane.f32.xlu0 %v1135
          %v4552 = vpop.xlane.xlu0 %4551
          %4553 = vmax.xlane.f32.xlu0 %v1138
          %v4554 = vpop.xlane.xlu0 %4553
          %4555 = vmax.xlane.f32.xlu0 %v1140
          %v4556 = vpop.xlane.xlu0 %4555
          %4557 = vmax.xlane.f32.xlu0 %v1143
          %v4558 = vpop.xlane.xlu0 %4557
          %4559 = vmax.xlane.f32.xlu0 %v1145
          %v4560 = vpop.xlane.xlu0 %4559
          %4561 = vmax.xlane.f32.xlu0 %v1148
          %v4562 = vpop.xlane.xlu0 %4561
          %4563 = vmax.xlane.f32.xlu0 %v1150
          %v4564 = vpop.xlane.xlu0 %4563
          %4565 = vmax.xlane.f32.xlu0 %v1153
          %v4566 = vpop.xlane.xlu0 %4565
          %4567 = vmax.xlane.f32.xlu0 %v1155
          %v4568 = vpop.xlane.xlu0 %4567
          %4569 = vmax.xlane.f32.xlu0 %v1158
          %v4570 = vpop.xlane.xlu0 %4569
          %4571 = vmax.xlane.f32.xlu0 %v1160
          %v4572 = vpop.xlane.xlu0 %4571
          %4573 = vmax.xlane.f32.xlu0 %v1163
          %v4574 = vpop.xlane.xlu0 %4573
          %4575 = vmax.xlane.f32.xlu0 %v1165
          %v4576 = vpop.xlane.xlu0 %4575
          %4577 = vmax.xlane.f32.xlu0 %v1168
          %v4578 = vpop.xlane.xlu0 %4577
          %4579 = vmax.xlane.f32.xlu0 %v1170
          %v4580 = vpop.xlane.xlu0 %4579
          %4581 = vmax.xlane.f32.xlu0 %v1173
          %v4582 = vpop.xlane.xlu0 %4581
          %4583 = vmax.xlane.f32.xlu0 %v1175
          %v4584 = vpop.xlane.xlu0 %4583
          %4585 = vmax.xlane.f32.xlu0 %v1178
          %v4586 = vpop.xlane.xlu0 %4585
          %4587 = vmax.xlane.f32.xlu0 %v1180
          %v4588 = vpop.xlane.xlu0 %4587
          %4589 = vmax.xlane.f32.xlu0 %v1183
          %v4590 = vpop.xlane.xlu0 %4589
          %4591 = vmax.xlane.f32.xlu0 %v1185
          %v4592 = vpop.xlane.xlu0 %4591
          %4593 = vmax.xlane.f32.xlu0 %v1188
          %v4594 = vpop.xlane.xlu0 %4593
          %4595 = vmax.xlane.f32.xlu0 %v1190
          %v4596 = vpop.xlane.xlu0 %4595
          %4597 = vmax.xlane.f32.xlu0 %v1193
          %v4598 = vpop.xlane.xlu0 %4597
          %4599 = vmax.xlane.f32.xlu0 %v1195
          %v4600 = vpop.xlane.xlu0 %4599
          %4601 = vmax.xlane.f32.xlu0 %v1351
          %v4602 = vpop.xlane.xlu0 %4601
          %4603 = vmax.xlane.f32.xlu0 %v1353
          %v4604 = vpop.xlane.xlu0 %4603
          %4605 = vmax.xlane.f32.xlu0 %v1356
          %v4606 = vpop.xlane.xlu0 %4605
          %4607 = vmax.xlane.f32.xlu0 %v1358
          %v4608 = vpop.xlane.xlu0 %4607
          %4609 = vmax.xlane.f32.xlu0 %v1361
          %v4610 = vpop.xlane.xlu0 %4609
          %4611 = vmax.xlane.f32.xlu0 %v1363
          %v4612 = vpop.xlane.xlu0 %4611
          %4613 = vmax.xlane.f32.xlu0 %v1366
          %v4614 = vpop.xlane.xlu0 %4613
          %4615 = vmax.xlane.f32.xlu0 %v1368
          %v4616 = vpop.xlane.xlu0 %4615
          %4617 = vmax.xlane.f32.xlu0 %v1371
          %v4618 = vpop.xlane.xlu0 %4617
          %4619 = vmax.xlane.f32.xlu0 %v1373
          %v4620 = vpop.xlane.xlu0 %4619
          %4621 = vmax.xlane.f32.xlu0 %v1376
          %v4622 = vpop.xlane.xlu0 %4621
          %4623 = vmax.xlane.f32.xlu0 %v1378
          %v4624 = vpop.xlane.xlu0 %4623
          %4625 = vmax.xlane.f32.xlu0 %v1381
          %v4626 = vpop.xlane.xlu0 %4625
          %4627 = vmax.xlane.f32.xlu0 %v1383
          %v4628 = vpop.xlane.xlu0 %4627
          %4629 = vmax.xlane.f32.xlu0 %v1386
          %v4630 = vpop.xlane.xlu0 %4629
          %4631 = vmax.xlane.f32.xlu0 %v1388
          %v4632 = vpop.xlane.xlu0 %4631
          %4633 = vmax.xlane.f32.xlu0 %v1391
          %v4634 = vpop.xlane.xlu0 %4633
          %4635 = vmax.xlane.f32.xlu0 %v1393
          %v4636 = vpop.xlane.xlu0 %4635
          %4637 = vmax.xlane.f32.xlu0 %v1396
          %v4638 = vpop.xlane.xlu0 %4637
          %4639 = vmax.xlane.f32.xlu0 %v1398
          %v4640 = vpop.xlane.xlu0 %4639
          %4641 = vmax.xlane.f32.xlu0 %v1401
          %v4642 = vpop.xlane.xlu0 %4641
          %4643 = vmax.xlane.f32.xlu0 %v1403
          %v4644 = vpop.xlane.xlu0 %4643
          %4645 = vmax.xlane.f32.xlu0 %v1406
          %v4646 = vpop.xlane.xlu0 %4645
          %4647 = vmax.xlane.f32.xlu0 %v1408
          %v4648 = vpop.xlane.xlu0 %4647
          %4649 = vmax.xlane.f32.xlu0 %v1411
          %v4650 = vpop.xlane.xlu0 %4649
          %4651 = vmax.xlane.f32.xlu0 %v1413
          %v4652 = vpop.xlane.xlu0 %4651
          %4653 = vmax.xlane.f32.xlu0 %v1416
          %v4654 = vpop.xlane.xlu0 %4653
          %4655 = vmax.xlane.f32.xlu0 %v1418
          %v4656 = vpop.xlane.xlu0 %4655
          %4657 = vmax.xlane.f32.xlu0 %v1421
          %v4658 = vpop.xlane.xlu0 %4657
          %4659 = vmax.xlane.f32.xlu0 %v1423
          %v4660 = vpop.xlane.xlu0 %4659
          %4661 = vmax.xlane.f32.xlu0 %v1426
          %v4662 = vpop.xlane.xlu0 %4661
          %4663 = vmax.xlane.f32.xlu0 %v1428
          %v4664 = vpop.xlane.xlu0 %4663
          %4665 = vmax.xlane.f32.xlu0 %v1584
          %v4666 = vpop.xlane.xlu0 %4665
          %4667 = vmax.xlane.f32.xlu0 %v1586
          %v4668 = vpop.xlane.xlu0 %4667
          %4669 = vmax.xlane.f32.xlu0 %v1589
          %v4670 = vpop.xlane.xlu0 %4669
          %4671 = vmax.xlane.f32.xlu0 %v1591
          %v4672 = vpop.xlane.xlu0 %4671
          %4673 = vmax.xlane.f32.xlu0 %v1594
          %v4674 = vpop.xlane.xlu0 %4673
          %4675 = vmax.xlane.f32.xlu0 %v1596
          %v4676 = vpop.xlane.xlu0 %4675
          %4677 = vmax.xlane.f32.xlu0 %v1599
          %v4678 = vpop.xlane.xlu0 %4677
          %4679 = vmax.xlane.f32.xlu0 %v1601
          %v4680 = vpop.xlane.xlu0 %4679
          %4681 = vmax.xlane.f32.xlu0 %v1604
          %v4682 = vpop.xlane.xlu0 %4681
          %4683 = vmax.xlane.f32.xlu0 %v1606
          %v4684 = vpop.xlane.xlu0 %4683
          %4685 = vmax.xlane.f32.xlu0 %v1609
          %v4686 = vpop.xlane.xlu0 %4685
          %4687 = vmax.xlane.f32.xlu0 %v1611
          %v4688 = vpop.xlane.xlu0 %4687
          %4689 = vmax.xlane.f32.xlu0 %v1614
          %v4690 = vpop.xlane.xlu0 %4689
          %4691 = vmax.xlane.f32.xlu0 %v1616
          %v4692 = vpop.xlane.xlu0 %4691
          %4693 = vmax.xlane.f32.xlu0 %v1619
          %v4694 = vpop.xlane.xlu0 %4693
          %4695 = vmax.xlane.f32.xlu0 %v1621
          %v4696 = vpop.xlane.xlu0 %4695
          %4697 = vmax.xlane.f32.xlu0 %v1624
          %v4698 = vpop.xlane.xlu0 %4697
          %4699 = vmax.xlane.f32.xlu0 %v1626
          %v4700 = vpop.xlane.xlu0 %4699
          %4701 = vmax.xlane.f32.xlu0 %v1629
          %v4702 = vpop.xlane.xlu0 %4701
          %4703 = vmax.xlane.f32.xlu0 %v1631
          %v4704 = vpop.xlane.xlu0 %4703
          %4705 = vmax.xlane.f32.xlu0 %v1634
          %v4706 = vpop.xlane.xlu0 %4705
          %4707 = vmax.xlane.f32.xlu0 %v1636
          %v4708 = vpop.xlane.xlu0 %4707
          %4709 = vmax.xlane.f32.xlu0 %v1639
          %v4710 = vpop.xlane.xlu0 %4709
          %4711 = vmax.xlane.f32.xlu0 %v1641
          %v4712 = vpop.xlane.xlu0 %4711
          %4713 = vmax.xlane.f32.xlu0 %v1644
          %v4714 = vpop.xlane.xlu0 %4713
          %4715 = vmax.xlane.f32.xlu0 %v1646
          %v4716 = vpop.xlane.xlu0 %4715
          %4717 = vmax.xlane.f32.xlu0 %v1649
          %v4718 = vpop.xlane.xlu0 %4717
          %4719 = vmax.xlane.f32.xlu0 %v1651
          %v4720 = vpop.xlane.xlu0 %4719
          %4721 = vmax.xlane.f32.xlu0 %v1654
          %v4722 = vpop.xlane.xlu0 %4721
          %4723 = vmax.xlane.f32.xlu0 %v1656
          %v4724 = vpop.xlane.xlu0 %4723
          %4725 = vmax.xlane.f32.xlu0 %v1659
          %v4726 = vpop.xlane.xlu0 %4725
          %4727 = vmax.xlane.f32.xlu0 %v1661
          %v4728 = vpop.xlane.xlu0 %4727
          %4729 = vmax.xlane.f32.xlu0 %v1817
          %v4730 = vpop.xlane.xlu0 %4729
          %4731 = vmax.xlane.f32.xlu0 %v1819
          %v4732 = vpop.xlane.xlu0 %4731
          %4733 = vmax.xlane.f32.xlu0 %v1822
          %v4734 = vpop.xlane.xlu0 %4733
          %4735 = vmax.xlane.f32.xlu0 %v1824
          %v4736 = vpop.xlane.xlu0 %4735
          %4737 = vmax.xlane.f32.xlu0 %v1827
          %v4738 = vpop.xlane.xlu0 %4737
          %4739 = vmax.xlane.f32.xlu0 %v1829
          %v4740 = vpop.xlane.xlu0 %4739
          %4741 = vmax.xlane.f32.xlu0 %v1832
          %v4742 = vpop.xlane.xlu0 %4741
          %4743 = vmax.xlane.f32.xlu0 %v1834
          %v4744 = vpop.xlane.xlu0 %4743
          %4745 = vmax.xlane.f32.xlu0 %v1837
          %v4746 = vpop.xlane.xlu0 %4745
          %4747 = vmax.xlane.f32.xlu0 %v1839
          %v4748 = vpop.xlane.xlu0 %4747
          %4749 = vmax.xlane.f32.xlu0 %v1842
          %v4750 = vpop.xlane.xlu0 %4749
          %4751 = vmax.xlane.f32.xlu0 %v1844
          %v4752 = vpop.xlane.xlu0 %4751
          %4753 = vmax.xlane.f32.xlu0 %v1847
          %v4754 = vpop.xlane.xlu0 %4753
          %4755 = vmax.xlane.f32.xlu0 %v1849
          %v4756 = vpop.xlane.xlu0 %4755
          %4757 = vmax.xlane.f32.xlu0 %v1852
          %v4758 = vpop.xlane.xlu0 %4757
          %4759 = vmax.xlane.f32.xlu0 %v1854
          %v4760 = vpop.xlane.xlu0 %4759
          %4761 = vmax.xlane.f32.xlu0 %v1857
          %v4762 = vpop.xlane.xlu0 %4761
          %4763 = vmax.xlane.f32.xlu0 %v1859
          %v4764 = vpop.xlane.xlu0 %4763
          %4765 = vmax.xlane.f32.xlu0 %v1862
          %v4766 = vpop.xlane.xlu0 %4765
          %4767 = vmax.xlane.f32.xlu0 %v1864
          %v4768 = vpop.xlane.xlu0 %4767
          %4769 = vmax.xlane.f32.xlu0 %v1867
          %v4770 = vpop.xlane.xlu0 %4769
          %4771 = vmax.xlane.f32.xlu0 %v1869
          %v4772 = vpop.xlane.xlu0 %4771
          %4773 = vmax.xlane.f32.xlu0 %v1872
          %v4774 = vpop.xlane.xlu0 %4773
          %4775 = vmax.xlane.f32.xlu0 %v1874
          %v4776 = vpop.xlane.xlu0 %4775
          %4777 = vmax.xlane.f32.xlu0 %v1877
          %v4778 = vpop.xlane.xlu0 %4777
          %4779 = vmax.xlane.f32.xlu0 %v1879
          %v4780 = vpop.xlane.xlu0 %4779
          %4781 = vmax.xlane.f32.xlu0 %v1882
          %v4782 = vpop.xlane.xlu0 %4781
          %4783 = vmax.xlane.f32.xlu0 %v1884
          %v4784 = vpop.xlane.xlu0 %4783
          %4785 = vmax.xlane.f32.xlu0 %v1887
          %v4786 = vpop.xlane.xlu0 %4785
          %4787 = vmax.xlane.f32.xlu0 %v1889
          %v4788 = vpop.xlane.xlu0 %4787
          %4789 = vmax.xlane.f32.xlu0 %v1892
          %v4790 = vpop.xlane.xlu0 %4789
          %4791 = vmax.xlane.f32.xlu0 %v1894
          %v4792 = vpop.xlane.xlu0 %4791
          %v4793 = vsub.f32 %v1118, %v4538
          %v4794 = vsub.f32 %v1120, %v4540
          %v4795 = vsub.f32 %v1123, %v4542
          %v4796 = vsub.f32 %v1125, %v4544
          %v4797 = vsub.f32 %v1128, %v4546
          %v4798 = vsub.f32 %v1130, %v4548
          %v4799 = vsub.f32 %v1133, %v4550
          %v4800 = vsub.f32 %v1135, %v4552
          %v4801 = vsub.f32 %v1138, %v4554
          %v4802 = vsub.f32 %v1140, %v4556
          %v4803 = vsub.f32 %v1143, %v4558
          %v4804 = vsub.f32 %v1145, %v4560
          %v4805 = vsub.f32 %v1148, %v4562
          %v4806 = vsub.f32 %v1150, %v4564
          %v4807 = vsub.f32 %v1153, %v4566
          %v4808 = vsub.f32 %v1155, %v4568
          %v4809 = vsub.f32 %v1158, %v4570
          %v4810 = vsub.f32 %v1160, %v4572
          %v4811 = vsub.f32 %v1163, %v4574
          %v4812 = vsub.f32 %v1165, %v4576
          %v4813 = vsub.f32 %v1168, %v4578
          %v4814 = vsub.f32 %v1170, %v4580
          %v4815 = vsub.f32 %v1173, %v4582
          %v4816 = vsub.f32 %v1175, %v4584
          %v4817 = vsub.f32 %v1178, %v4586
          %v4818 = vsub.f32 %v1180, %v4588
          %v4819 = vsub.f32 %v1183, %v4590
          %v4820 = vsub.f32 %v1185, %v4592
          %v4821 = vsub.f32 %v1188, %v4594
          %v4822 = vsub.f32 %v1190, %v4596
          %v4823 = vsub.f32 %v1193, %v4598
          %v4824 = vsub.f32 %v1195, %v4600
          %v4825 = vsub.f32 %v1351, %v4602
          %v4826 = vsub.f32 %v1353, %v4604
          %v4827 = vsub.f32 %v1356, %v4606
          %v4828 = vsub.f32 %v1358, %v4608
          %v4829 = vsub.f32 %v1361, %v4610
          %v4830 = vsub.f32 %v1363, %v4612
          %v4831 = vsub.f32 %v1366, %v4614
          %v4832 = vsub.f32 %v1368, %v4616
          %v4833 = vsub.f32 %v1371, %v4618
          %v4834 = vsub.f32 %v1373, %v4620
          %v4835 = vsub.f32 %v1376, %v4622
          %v4836 = vsub.f32 %v1378, %v4624
          %v4837 = vsub.f32 %v1381, %v4626
          %v4838 = vsub.f32 %v1383, %v4628
          %v4839 = vsub.f32 %v1386, %v4630
          %v4840 = vsub.f32 %v1388, %v4632
          %v4841 = vsub.f32 %v1391, %v4634
          %v4842 = vsub.f32 %v1393, %v4636
          %v4843 = vsub.f32 %v1396, %v4638
          %v4844 = vsub.f32 %v1398, %v4640
          %v4845 = vsub.f32 %v1401, %v4642
          %v4846 = vsub.f32 %v1403, %v4644
          %v4847 = vsub.f32 %v1406, %v4646
          %v4848 = vsub.f32 %v1408, %v4648
          %v4849 = vsub.f32 %v1411, %v4650
          %v4850 = vsub.f32 %v1413, %v4652
          %v4851 = vsub.f32 %v1416, %v4654
          %v4852 = vsub.f32 %v1418, %v4656
          %v4853 = vsub.f32 %v1421, %v4658
          %v4854 = vsub.f32 %v1423, %v4660
          %v4855 = vsub.f32 %v1426, %v4662
          %v4856 = vsub.f32 %v1428, %v4664
          %v4857 = vsub.f32 %v1584, %v4666
          %v4858 = vsub.f32 %v1586, %v4668
          %v4859 = vsub.f32 %v1589, %v4670
          %v4860 = vsub.f32 %v1591, %v4672
          %v4861 = vsub.f32 %v1594, %v4674
          %v4862 = vsub.f32 %v1596, %v4676
          %v4863 = vsub.f32 %v1599, %v4678
          %v4864 = vsub.f32 %v1601, %v4680
          %v4865 = vsub.f32 %v1604, %v4682
          %v4866 = vsub.f32 %v1606, %v4684
          %v4867 = vsub.f32 %v1609, %v4686
          %v4868 = vsub.f32 %v1611, %v4688
          %v4869 = vsub.f32 %v1614, %v4690
          %v4870 = vsub.f32 %v1616, %v4692
          %v4871 = vsub.f32 %v1619, %v4694
          %v4872 = vsub.f32 %v1621, %v4696
          %v4873 = vsub.f32 %v1624, %v4698
          %v4874 = vsub.f32 %v1626, %v4700
          %v4875 = vsub.f32 %v1629, %v4702
          %v4876 = vsub.f32 %v1631, %v4704
          %v4877 = vsub.f32 %v1634, %v4706
          %v4878 = vsub.f32 %v1636, %v4708
          %v4879 = vsub.f32 %v1639, %v4710
          %v4880 = vsub.f32 %v1641, %v4712
          %v4881 = vsub.f32 %v1644, %v4714
          %v4882 = vsub.f32 %v1646, %v4716
          %v4883 = vsub.f32 %v1649, %v4718
          %v4884 = vsub.f32 %v1651, %v4720
          %v4885 = vsub.f32 %v1654, %v4722
          %v4886 = vsub.f32 %v1656, %v4724
          %v4887 = vsub.f32 %v1659, %v4726
          %v4888 = vsub.f32 %v1661, %v4728
          %v4889 = vsub.f32 %v1817, %v4730
          %v4890 = vsub.f32 %v1819, %v4732
          %v4891 = vsub.f32 %v1822, %v4734
          %v4892 = vsub.f32 %v1824, %v4736
          %v4893 = vsub.f32 %v1827, %v4738
          %v4894 = vsub.f32 %v1829, %v4740
          %v4895 = vsub.f32 %v1832, %v4742
          %v4896 = vsub.f32 %v1834, %v4744
          %v4897 = vsub.f32 %v1837, %v4746
          %v4898 = vsub.f32 %v1839, %v4748
          %v4899 = vsub.f32 %v1842, %v4750
          %v4900 = vsub.f32 %v1844, %v4752
          %v4901 = vsub.f32 %v1847, %v4754
          %v4902 = vsub.f32 %v1849, %v4756
          %v4903 = vsub.f32 %v1852, %v4758
          %v4904 = vsub.f32 %v1854, %v4760
          %v4905 = vsub.f32 %v1857, %v4762
          %v4906 = vsub.f32 %v1859, %v4764
          %v4907 = vsub.f32 %v1862, %v4766
          %v4908 = vsub.f32 %v1864, %v4768
          %v4909 = vsub.f32 %v1867, %v4770
          %v4910 = vsub.f32 %v1869, %v4772
          %v4911 = vsub.f32 %v1872, %v4774
          %v4912 = vsub.f32 %v1874, %v4776
          %v4913 = vsub.f32 %v1877, %v4778
          %v4914 = vsub.f32 %v1879, %v4780
          %v4915 = vsub.f32 %v1882, %v4782
          %v4916 = vsub.f32 %v1884, %v4784
          %v4917 = vsub.f32 %v1887, %v4786
          %v4918 = vsub.f32 %v1889, %v4788
          %v4919 = vsub.f32 %v1892, %v4790
          %v4920 = vsub.f32 %v1894, %v4792
          %v4921 = vmul.f32 %v4793, 1.442695
          %v4922 = vpow.pop %v4921
          %v4923 = vmul.f32 %v4794, 1.442695
          %v4924 = vpow.pop %v4923
          %v4925 = vmul.f32 %v4795, 1.442695
          %v4926 = vpow.pop %v4925
          %v4927 = vmul.f32 %v4796, 1.442695
          %v4928 = vpow.pop %v4927
          %v4929 = vmul.f32 %v4797, 1.442695
          %v4930 = vpow.pop %v4929
          %v4931 = vmul.f32 %v4798, 1.442695
          %v4932 = vpow.pop %v4931
          %v4933 = vmul.f32 %v4799, 1.442695
          %v4934 = vpow.pop %v4933
          %v4935 = vmul.f32 %v4800, 1.442695
          %v4936 = vpow.pop %v4935
          %v4937 = vmul.f32 %v4801, 1.442695
          %v4938 = vpow.pop %v4937
          %v4939 = vmul.f32 %v4802, 1.442695
          %v4940 = vpow.pop %v4939
          %v4941 = vmul.f32 %v4803, 1.442695
          %v4942 = vpow.pop %v4941
          %v4943 = vmul.f32 %v4804, 1.442695
          %v4944 = vpow.pop %v4943
          %v4945 = vmul.f32 %v4805, 1.442695
          %v4946 = vpow.pop %v4945
          %v4947 = vmul.f32 %v4806, 1.442695
          %v4948 = vpow.pop %v4947
          %v4949 = vmul.f32 %v4807, 1.442695
          %v4950 = vpow.pop %v4949
          %v4951 = vmul.f32 %v4808, 1.442695
          %v4952 = vpow.pop %v4951
          %v4953 = vmul.f32 %v4809, 1.442695
          %v4954 = vpow.pop %v4953
          %v4955 = vmul.f32 %v4810, 1.442695
          %v4956 = vpow.pop %v4955
          %v4957 = vmul.f32 %v4811, 1.442695
          %v4958 = vpow.pop %v4957
          %v4959 = vmul.f32 %v4812, 1.442695
          %v4960 = vpow.pop %v4959
          %v4961 = vmul.f32 %v4813, 1.442695
          %v4962 = vpow.pop %v4961
          %v4963 = vmul.f32 %v4814, 1.442695
          %v4964 = vpow.pop %v4963
          %v4965 = vmul.f32 %v4815, 1.442695
          %v4966 = vpow.pop %v4965
          %v4967 = vmul.f32 %v4816, 1.442695
          %v4968 = vpow.pop %v4967
          %v4969 = vmul.f32 %v4817, 1.442695
          %v4970 = vpow.pop %v4969
          %v4971 = vmul.f32 %v4818, 1.442695
          %v4972 = vpow.pop %v4971
          %v4973 = vmul.f32 %v4819, 1.442695
          %v4974 = vpow.pop %v4973
          %v4975 = vmul.f32 %v4820, 1.442695
          %v4976 = vpow.pop %v4975
          %v4977 = vmul.f32 %v4821, 1.442695
          %v4978 = vpow.pop %v4977
          %v4979 = vmul.f32 %v4822, 1.442695
          %v4980 = vpow.pop %v4979
          %v4981 = vmul.f32 %v4823, 1.442695
          %v4982 = vpow.pop %v4981
          %v4983 = vmul.f32 %v4824, 1.442695
          %v4984 = vpow.pop %v4983
          %v4985 = vmul.f32 %v4825, 1.442695
          %v4986 = vpow.pop %v4985
          %v4987 = vmul.f32 %v4826, 1.442695
          %v4988 = vpow.pop %v4987
          %v4989 = vmul.f32 %v4827, 1.442695
          %v4990 = vpow.pop %v4989
          %v4991 = vmul.f32 %v4828, 1.442695
          %v4992 = vpow.pop %v4991
          %v4993 = vmul.f32 %v4829, 1.442695
          %v4994 = vpow.pop %v4993
          %v4995 = vmul.f32 %v4830, 1.442695
          %v4996 = vpow.pop %v4995
          %v4997 = vmul.f32 %v4831, 1.442695
          %v4998 = vpow.pop %v4997
          %v4999 = vmul.f32 %v4832, 1.442695
          %v5000 = vpow.pop %v4999
          %v5001 = vmul.f32 %v4833, 1.442695
          %v5002 = vpow.pop %v5001
          %v5003 = vmul.f32 %v4834, 1.442695
          %v5004 = vpow.pop %v5003
          %v5005 = vmul.f32 %v4835, 1.442695
          %v5006 = vpow.pop %v5005
          %v5007 = vmul.f32 %v4836, 1.442695
          %v5008 = vpow.pop %v5007
          %v5009 = vmul.f32 %v4837, 1.442695
          %v5010 = vpow.pop %v5009
          %v5011 = vmul.f32 %v4838, 1.442695
          %v5012 = vpow.pop %v5011
          %v5013 = vmul.f32 %v4839, 1.442695
          %v5014 = vpow.pop %v5013
          %v5015 = vmul.f32 %v4840, 1.442695
          %v5016 = vpow.pop %v5015
          %v5017 = vmul.f32 %v4841, 1.442695
          %v5018 = vpow.pop %v5017
          %v5019 = vmul.f32 %v4842, 1.442695
          %v5020 = vpow.pop %v5019
          %v5021 = vmul.f32 %v4843, 1.442695
          %v5022 = vpow.pop %v5021
          %v5023 = vmul.f32 %v4844, 1.442695
          %v5024 = vpow.pop %v5023
          %v5025 = vmul.f32 %v4845, 1.442695
          %v5026 = vpow.pop %v5025
          %v5027 = vmul.f32 %v4846, 1.442695
          %v5028 = vpow.pop %v5027
          %v5029 = vmul.f32 %v4847, 1.442695
          %v5030 = vpow.pop %v5029
          %v5031 = vmul.f32 %v4848, 1.442695
          %v5032 = vpow.pop %v5031
          %v5033 = vmul.f32 %v4849, 1.442695
          %v5034 = vpow.pop %v5033
          %v5035 = vmul.f32 %v4850, 1.442695
          %v5036 = vpow.pop %v5035
          %v5037 = vmul.f32 %v4851, 1.442695
          %v5038 = vpow.pop %v5037
          %v5039 = vmul.f32 %v4852, 1.442695
          %v5040 = vpow.pop %v5039
          %v5041 = vmul.f32 %v4853, 1.442695
          %v5042 = vpow.pop %v5041
          %v5043 = vmul.f32 %v4854, 1.442695
          %v5044 = vpow.pop %v5043
          %v5045 = vmul.f32 %v4855, 1.442695
          %v5046 = vpow.pop %v5045
          %v5047 = vmul.f32 %v4856, 1.442695
          %v5048 = vpow.pop %v5047
          %v5049 = vmul.f32 %v4857, 1.442695
          %v5050 = vpow.pop %v5049
          %v5051 = vmul.f32 %v4858, 1.442695
          %v5052 = vpow.pop %v5051
          %v5053 = vmul.f32 %v4859, 1.442695
          %v5054 = vpow.pop %v5053
          %v5055 = vmul.f32 %v4860, 1.442695
          %v5056 = vpow.pop %v5055
          %v5057 = vmul.f32 %v4861, 1.442695
          %v5058 = vpow.pop %v5057
          %v5059 = vmul.f32 %v4862, 1.442695
          %v5060 = vpow.pop %v5059
          %v5061 = vmul.f32 %v4863, 1.442695
          %v5062 = vpow.pop %v5061
          %v5063 = vmul.f32 %v4864, 1.442695
          %v5064 = vpow.pop %v5063
          %v5065 = vmul.f32 %v4865, 1.442695
          %v5066 = vpow.pop %v5065
          %v5067 = vmul.f32 %v4866, 1.442695
          %v5068 = vpow.pop %v5067
          %v5069 = vmul.f32 %v4867, 1.442695
          %v5070 = vpow.pop %v5069
          %v5071 = vmul.f32 %v4868, 1.442695
          %v5072 = vpow.pop %v5071
          %v5073 = vmul.f32 %v4869, 1.442695
          %v5074 = vpow.pop %v5073
          %v5075 = vmul.f32 %v4870, 1.442695
          %v5076 = vpow.pop %v5075
          %v5077 = vmul.f32 %v4871, 1.442695
          %v5078 = vpow.pop %v5077
          %v5079 = vmul.f32 %v4872, 1.442695
          %v5080 = vpow.pop %v5079
          %v5081 = vmul.f32 %v4873, 1.442695
          %v5082 = vpow.pop %v5081
          %v5083 = vmul.f32 %v4874, 1.442695
          %v5084 = vpow.pop %v5083
          %v5085 = vmul.f32 %v4875, 1.442695
          %v5086 = vpow.pop %v5085
          %v5087 = vmul.f32 %v4876, 1.442695
          %v5088 = vpow.pop %v5087
          %v5089 = vmul.f32 %v4877, 1.442695
          %v5090 = vpow.pop %v5089
          %v5091 = vmul.f32 %v4878, 1.442695
          %v5092 = vpow.pop %v5091
          %v5093 = vmul.f32 %v4879, 1.442695
          %v5094 = vpow.pop %v5093
          %v5095 = vmul.f32 %v4880, 1.442695
          %v5096 = vpow.pop %v5095
          %v5097 = vmul.f32 %v4881, 1.442695
          %v5098 = vpow.pop %v5097
          %v5099 = vmul.f32 %v4882, 1.442695
          %v5100 = vpow.pop %v5099
          %v5101 = vmul.f32 %v4883, 1.442695
          %v5102 = vpow.pop %v5101
          %v5103 = vmul.f32 %v4884, 1.442695
          %v5104 = vpow.pop %v5103
          %v5105 = vmul.f32 %v4885, 1.442695
          %v5106 = vpow.pop %v5105
          %v5107 = vmul.f32 %v4886, 1.442695
          %v5108 = vpow.pop %v5107
          %v5109 = vmul.f32 %v4887, 1.442695
          %v5110 = vpow.pop %v5109
          %v5111 = vmul.f32 %v4888, 1.442695
          %v5112 = vpow.pop %v5111
          %v5113 = vmul.f32 %v4889, 1.442695
          %v5114 = vpow.pop %v5113
          %v5115 = vmul.f32 %v4890, 1.442695
          %v5116 = vpow.pop %v5115
          %v5117 = vmul.f32 %v4891, 1.442695
          %v5118 = vpow.pop %v5117
          %v5119 = vmul.f32 %v4892, 1.442695
          %v5120 = vpow.pop %v5119
          %v5121 = vmul.f32 %v4893, 1.442695
          %v5122 = vpow.pop %v5121
          %v5123 = vmul.f32 %v4894, 1.442695
          %v5124 = vpow.pop %v5123
          %v5125 = vmul.f32 %v4895, 1.442695
          %v5126 = vpow.pop %v5125
          %v5127 = vmul.f32 %v4896, 1.442695
          %v5128 = vpow.pop %v5127
          %v5129 = vmul.f32 %v4897, 1.442695
          %v5130 = vpow.pop %v5129
          %v5131 = vmul.f32 %v4898, 1.442695
          %v5132 = vpow.pop %v5131
          %v5133 = vmul.f32 %v4899, 1.442695
          %v5134 = vpow.pop %v5133
          %v5135 = vmul.f32 %v4900, 1.442695
          %v5136 = vpow.pop %v5135
          %v5137 = vmul.f32 %v4901, 1.442695
          %v5138 = vpow.pop %v5137
          %v5139 = vmul.f32 %v4902, 1.442695
          %v5140 = vpow.pop %v5139
          %v5141 = vmul.f32 %v4903, 1.442695
          %v5142 = vpow.pop %v5141
          %v5143 = vmul.f32 %v4904, 1.442695
          %v5144 = vpow.pop %v5143
          %v5145 = vmul.f32 %v4905, 1.442695
          %v5146 = vpow.pop %v5145
          %v5147 = vmul.f32 %v4906, 1.442695
          %v5148 = vpow.pop %v5147
          %v5149 = vmul.f32 %v4907, 1.442695
          %v5150 = vpow.pop %v5149
          %v5151 = vmul.f32 %v4908, 1.442695
          %v5152 = vpow.pop %v5151
          %v5153 = vmul.f32 %v4909, 1.442695
          %v5154 = vpow.pop %v5153
          %v5155 = vmul.f32 %v4910, 1.442695
          %v5156 = vpow.pop %v5155
          %v5157 = vmul.f32 %v4911, 1.442695
          %v5158 = vpow.pop %v5157
          %v5159 = vmul.f32 %v4912, 1.442695
          %v5160 = vpow.pop %v5159
          %v5161 = vmul.f32 %v4913, 1.442695
          %v5162 = vpow.pop %v5161
          %v5163 = vmul.f32 %v4914, 1.442695
          %v5164 = vpow.pop %v5163
          %v5165 = vmul.f32 %v4915, 1.442695
          %v5166 = vpow.pop %v5165
          %v5167 = vmul.f32 %v4916, 1.442695
          %v5168 = vpow.pop %v5167
          %v5169 = vmul.f32 %v4917, 1.442695
          %v5170 = vpow.pop %v5169
          %v5171 = vmul.f32 %v4918, 1.442695
          %v5172 = vpow.pop %v5171
          %v5173 = vmul.f32 %v4919, 1.442695
          %v5174 = vpow.pop %v5173
          %v5175 = vmul.f32 %v4920, 1.442695
          %v5176 = vpow.pop %v5175
          %5177 = vadd.xlane.f32.xlu0 %v4922
          %v5178 = vpop.xlane.xlu0 %5177
          %5179 = vadd.xlane.f32.xlu0 %v4924
          %v5180 = vpop.xlane.xlu0 %5179
          %5181 = vadd.xlane.f32.xlu0 %v4926
          %v5182 = vpop.xlane.xlu0 %5181
          %5183 = vadd.xlane.f32.xlu0 %v4928
          %v5184 = vpop.xlane.xlu0 %5183
          %5185 = vadd.xlane.f32.xlu0 %v4930
          %v5186 = vpop.xlane.xlu0 %5185
          %5187 = vadd.xlane.f32.xlu0 %v4932
          %v5188 = vpop.xlane.xlu0 %5187
          %5189 = vadd.xlane.f32.xlu0 %v4934
          %v5190 = vpop.xlane.xlu0 %5189
          %5191 = vadd.xlane.f32.xlu0 %v4936
          %v5192 = vpop.xlane.xlu0 %5191
          %5193 = vadd.xlane.f32.xlu0 %v4938
          %v5194 = vpop.xlane.xlu0 %5193
          %5195 = vadd.xlane.f32.xlu0 %v4940
          %v5196 = vpop.xlane.xlu0 %5195
          %5197 = vadd.xlane.f32.xlu0 %v4942
          %v5198 = vpop.xlane.xlu0 %5197
          %5199 = vadd.xlane.f32.xlu0 %v4944
          %v5200 = vpop.xlane.xlu0 %5199
          %5201 = vadd.xlane.f32.xlu0 %v4946
          %v5202 = vpop.xlane.xlu0 %5201
          %5203 = vadd.xlane.f32.xlu0 %v4948
          %v5204 = vpop.xlane.xlu0 %5203
          %5205 = vadd.xlane.f32.xlu0 %v4950
          %v5206 = vpop.xlane.xlu0 %5205
          %5207 = vadd.xlane.f32.xlu0 %v4952
          %v5208 = vpop.xlane.xlu0 %5207
          %5209 = vadd.xlane.f32.xlu0 %v4954
          %v5210 = vpop.xlane.xlu0 %5209
          %5211 = vadd.xlane.f32.xlu0 %v4956
          %v5212 = vpop.xlane.xlu0 %5211
          %5213 = vadd.xlane.f32.xlu0 %v4958
          %v5214 = vpop.xlane.xlu0 %5213
          %5215 = vadd.xlane.f32.xlu0 %v4960
          %v5216 = vpop.xlane.xlu0 %5215
          %5217 = vadd.xlane.f32.xlu0 %v4962
          %v5218 = vpop.xlane.xlu0 %5217
          %5219 = vadd.xlane.f32.xlu0 %v4964
          %v5220 = vpop.xlane.xlu0 %5219
          %5221 = vadd.xlane.f32.xlu0 %v4966
          %v5222 = vpop.xlane.xlu0 %5221
          %5223 = vadd.xlane.f32.xlu0 %v4968
          %v5224 = vpop.xlane.xlu0 %5223
          %5225 = vadd.xlane.f32.xlu0 %v4970
          %v5226 = vpop.xlane.xlu0 %5225
          %5227 = vadd.xlane.f32.xlu0 %v4972
          %v5228 = vpop.xlane.xlu0 %5227
          %5229 = vadd.xlane.f32.xlu0 %v4974
          %v5230 = vpop.xlane.xlu0 %5229
          %5231 = vadd.xlane.f32.xlu0 %v4976
          %v5232 = vpop.xlane.xlu0 %5231
          %5233 = vadd.xlane.f32.xlu0 %v4978
          %v5234 = vpop.xlane.xlu0 %5233
          %5235 = vadd.xlane.f32.xlu0 %v4980
          %v5236 = vpop.xlane.xlu0 %5235
          %5237 = vadd.xlane.f32.xlu0 %v4982
          %v5238 = vpop.xlane.xlu0 %5237
          %5239 = vadd.xlane.f32.xlu0 %v4984
          %v5240 = vpop.xlane.xlu0 %5239
          %5241 = vadd.xlane.f32.xlu0 %v4986
          %v5242 = vpop.xlane.xlu0 %5241
          %5243 = vadd.xlane.f32.xlu0 %v4988
          %v5244 = vpop.xlane.xlu0 %5243
          %5245 = vadd.xlane.f32.xlu0 %v4990
          %v5246 = vpop.xlane.xlu0 %5245
          %5247 = vadd.xlane.f32.xlu0 %v4992
          %v5248 = vpop.xlane.xlu0 %5247
          %5249 = vadd.xlane.f32.xlu0 %v4994
          %v5250 = vpop.xlane.xlu0 %5249
          %5251 = vadd.xlane.f32.xlu0 %v4996
          %v5252 = vpop.xlane.xlu0 %5251
          %5253 = vadd.xlane.f32.xlu0 %v4998
          %v5254 = vpop.xlane.xlu0 %5253
          %5255 = vadd.xlane.f32.xlu0 %v5000
          %v5256 = vpop.xlane.xlu0 %5255
          %5257 = vadd.xlane.f32.xlu0 %v5002
          %v5258 = vpop.xlane.xlu0 %5257
          %5259 = vadd.xlane.f32.xlu0 %v5004
          %v5260 = vpop.xlane.xlu0 %5259
          %5261 = vadd.xlane.f32.xlu0 %v5006
          %v5262 = vpop.xlane.xlu0 %5261
          %5263 = vadd.xlane.f32.xlu0 %v5008
          %v5264 = vpop.xlane.xlu0 %5263
          %5265 = vadd.xlane.f32.xlu0 %v5010
          %v5266 = vpop.xlane.xlu0 %5265
          %5267 = vadd.xlane.f32.xlu0 %v5012
          %v5268 = vpop.xlane.xlu0 %5267
          %5269 = vadd.xlane.f32.xlu0 %v5014
          %v5270 = vpop.xlane.xlu0 %5269
          %5271 = vadd.xlane.f32.xlu0 %v5016
          %v5272 = vpop.xlane.xlu0 %5271
          %5273 = vadd.xlane.f32.xlu0 %v5018
          %v5274 = vpop.xlane.xlu0 %5273
          %5275 = vadd.xlane.f32.xlu0 %v5020
          %v5276 = vpop.xlane.xlu0 %5275
          %5277 = vadd.xlane.f32.xlu0 %v5022
          %v5278 = vpop.xlane.xlu0 %5277
          %5279 = vadd.xlane.f32.xlu0 %v5024
          %v5280 = vpop.xlane.xlu0 %5279
          %5281 = vadd.xlane.f32.xlu0 %v5026
          %v5282 = vpop.xlane.xlu0 %5281
          %5283 = vadd.xlane.f32.xlu0 %v5028
          %v5284 = vpop.xlane.xlu0 %5283
          %5285 = vadd.xlane.f32.xlu0 %v5030
          %v5286 = vpop.xlane.xlu0 %5285
          %5287 = vadd.xlane.f32.xlu0 %v5032
          %v5288 = vpop.xlane.xlu0 %5287
          %5289 = vadd.xlane.f32.xlu0 %v5034
          %v5290 = vpop.xlane.xlu0 %5289
          %5291 = vadd.xlane.f32.xlu0 %v5036
          %v5292 = vpop.xlane.xlu0 %5291
          %5293 = vadd.xlane.f32.xlu0 %v5038
          %v5294 = vpop.xlane.xlu0 %5293
          %5295 = vadd.xlane.f32.xlu0 %v5040
          %v5296 = vpop.xlane.xlu0 %5295
          %5297 = vadd.xlane.f32.xlu0 %v5042
          %v5298 = vpop.xlane.xlu0 %5297
          %5299 = vadd.xlane.f32.xlu0 %v5044
          %v5300 = vpop.xlane.xlu0 %5299
          %5301 = vadd.xlane.f32.xlu0 %v5046
          %v5302 = vpop.xlane.xlu0 %5301
          %5303 = vadd.xlane.f32.xlu0 %v5048
          %v5304 = vpop.xlane.xlu0 %5303
          %5305 = vadd.xlane.f32.xlu0 %v5050
          %v5306 = vpop.xlane.xlu0 %5305
          %5307 = vadd.xlane.f32.xlu0 %v5052
          %v5308 = vpop.xlane.xlu0 %5307
          %5309 = vadd.xlane.f32.xlu0 %v5054
          %v5310 = vpop.xlane.xlu0 %5309
          %5311 = vadd.xlane.f32.xlu0 %v5056
          %v5312 = vpop.xlane.xlu0 %5311
          %5313 = vadd.xlane.f32.xlu0 %v5058
          %v5314 = vpop.xlane.xlu0 %5313
          %5315 = vadd.xlane.f32.xlu0 %v5060
          %v5316 = vpop.xlane.xlu0 %5315
          %5317 = vadd.xlane.f32.xlu0 %v5062
          %v5318 = vpop.xlane.xlu0 %5317
          %5319 = vadd.xlane.f32.xlu0 %v5064
          %v5320 = vpop.xlane.xlu0 %5319
          %5321 = vadd.xlane.f32.xlu0 %v5066
          %v5322 = vpop.xlane.xlu0 %5321
          %5323 = vadd.xlane.f32.xlu0 %v5068
          %v5324 = vpop.xlane.xlu0 %5323
          %5325 = vadd.xlane.f32.xlu0 %v5070
          %v5326 = vpop.xlane.xlu0 %5325
          %5327 = vadd.xlane.f32.xlu0 %v5072
          %v5328 = vpop.xlane.xlu0 %5327
          %5329 = vadd.xlane.f32.xlu0 %v5074
          %v5330 = vpop.xlane.xlu0 %5329
          %5331 = vadd.xlane.f32.xlu0 %v5076
          %v5332 = vpop.xlane.xlu0 %5331
          %5333 = vadd.xlane.f32.xlu0 %v5078
          %v5334 = vpop.xlane.xlu0 %5333
          %5335 = vadd.xlane.f32.xlu0 %v5080
          %v5336 = vpop.xlane.xlu0 %5335
          %5337 = vadd.xlane.f32.xlu0 %v5082
          %v5338 = vpop.xlane.xlu0 %5337
          %5339 = vadd.xlane.f32.xlu0 %v5084
          %v5340 = vpop.xlane.xlu0 %5339
          %5341 = vadd.xlane.f32.xlu0 %v5086
          %v5342 = vpop.xlane.xlu0 %5341
          %5343 = vadd.xlane.f32.xlu0 %v5088
          %v5344 = vpop.xlane.xlu0 %5343
          %5345 = vadd.xlane.f32.xlu0 %v5090
          %v5346 = vpop.xlane.xlu0 %5345
          %5347 = vadd.xlane.f32.xlu0 %v5092
          %v5348 = vpop.xlane.xlu0 %5347
          %5349 = vadd.xlane.f32.xlu0 %v5094
          %v5350 = vpop.xlane.xlu0 %5349
          %5351 = vadd.xlane.f32.xlu0 %v5096
          %v5352 = vpop.xlane.xlu0 %5351
          %5353 = vadd.xlane.f32.xlu0 %v5098
          %v5354 = vpop.xlane.xlu0 %5353
          %5355 = vadd.xlane.f32.xlu0 %v5100
          %v5356 = vpop.xlane.xlu0 %5355
          %5357 = vadd.xlane.f32.xlu0 %v5102
          %v5358 = vpop.xlane.xlu0 %5357
          %5359 = vadd.xlane.f32.xlu0 %v5104
          %v5360 = vpop.xlane.xlu0 %5359
          %5361 = vadd.xlane.f32.xlu0 %v5106
          %v5362 = vpop.xlane.xlu0 %5361
          %5363 = vadd.xlane.f32.xlu0 %v5108
          %v5364 = vpop.xlane.xlu0 %5363
          %5365 = vadd.xlane.f32.xlu0 %v5110
          %v5366 = vpop.xlane.xlu0 %5365
          %5367 = vadd.xlane.f32.xlu0 %v5112
          %v5368 = vpop.xlane.xlu0 %5367
          %5369 = vadd.xlane.f32.xlu0 %v5114
          %v5370 = vpop.xlane.xlu0 %5369
          %5371 = vadd.xlane.f32.xlu0 %v5116
          %v5372 = vpop.xlane.xlu0 %5371
          %5373 = vadd.xlane.f32.xlu0 %v5118
          %v5374 = vpop.xlane.xlu0 %5373
          %5375 = vadd.xlane.f32.xlu0 %v5120
          %v5376 = vpop.xlane.xlu0 %5375
          %5377 = vadd.xlane.f32.xlu0 %v5122
          %v5378 = vpop.xlane.xlu0 %5377
          %5379 = vadd.xlane.f32.xlu0 %v5124
          %v5380 = vpop.xlane.xlu0 %5379
          %5381 = vadd.xlane.f32.xlu0 %v5126
          %v5382 = vpop.xlane.xlu0 %5381
          %5383 = vadd.xlane.f32.xlu0 %v5128
          %v5384 = vpop.xlane.xlu0 %5383
          %5385 = vadd.xlane.f32.xlu0 %v5130
          %v5386 = vpop.xlane.xlu0 %5385
          %5387 = vadd.xlane.f32.xlu0 %v5132
          %v5388 = vpop.xlane.xlu0 %5387
          %5389 = vadd.xlane.f32.xlu0 %v5134
          %v5390 = vpop.xlane.xlu0 %5389
          %5391 = vadd.xlane.f32.xlu0 %v5136
          %v5392 = vpop.xlane.xlu0 %5391
          %5393 = vadd.xlane.f32.xlu0 %v5138
          %v5394 = vpop.xlane.xlu0 %5393
          %5395 = vadd.xlane.f32.xlu0 %v5140
          %v5396 = vpop.xlane.xlu0 %5395
          %5397 = vadd.xlane.f32.xlu0 %v5142
          %v5398 = vpop.xlane.xlu0 %5397
          %5399 = vadd.xlane.f32.xlu0 %v5144
          %v5400 = vpop.xlane.xlu0 %5399
          %5401 = vadd.xlane.f32.xlu0 %v5146
          %v5402 = vpop.xlane.xlu0 %5401
          %5403 = vadd.xlane.f32.xlu0 %v5148
          %v5404 = vpop.xlane.xlu0 %5403
          %5405 = vadd.xlane.f32.xlu0 %v5150
          %v5406 = vpop.xlane.xlu0 %5405
          %5407 = vadd.xlane.f32.xlu0 %v5152
          %v5408 = vpop.xlane.xlu0 %5407
          %5409 = vadd.xlane.f32.xlu0 %v5154
          %v5410 = vpop.xlane.xlu0 %5409
          %5411 = vadd.xlane.f32.xlu0 %v5156
          %v5412 = vpop.xlane.xlu0 %5411
          %5413 = vadd.xlane.f32.xlu0 %v5158
          %v5414 = vpop.xlane.xlu0 %5413
          %5415 = vadd.xlane.f32.xlu0 %v5160
          %v5416 = vpop.xlane.xlu0 %5415
          %5417 = vadd.xlane.f32.xlu0 %v5162
          %v5418 = vpop.xlane.xlu0 %5417
          %5419 = vadd.xlane.f32.xlu0 %v5164
          %v5420 = vpop.xlane.xlu0 %5419
          %5421 = vadd.xlane.f32.xlu0 %v5166
          %v5422 = vpop.xlane.xlu0 %5421
          %5423 = vadd.xlane.f32.xlu0 %v5168
          %v5424 = vpop.xlane.xlu0 %5423
          %5425 = vadd.xlane.f32.xlu0 %v5170
          %v5426 = vpop.xlane.xlu0 %5425
          %5427 = vadd.xlane.f32.xlu0 %v5172
          %v5428 = vpop.xlane.xlu0 %5427
          %5429 = vadd.xlane.f32.xlu0 %v5174
          %v5430 = vpop.xlane.xlu0 %5429
          %5431 = vadd.xlane.f32.xlu0 %v5176
          %v5432 = vpop.xlane.xlu0 %5431
          %v5433 = vrcp.pop %v5178
          %v5434 = vrcp.pop %v5180
          %v5435 = vrcp.pop %v5182
          %v5436 = vrcp.pop %v5184
          %v5437 = vrcp.pop %v5186
          %v5438 = vrcp.pop %v5188
          %v5439 = vrcp.pop %v5190
          %v5440 = vrcp.pop %v5192
          %v5441 = vrcp.pop %v5194
          %v5442 = vrcp.pop %v5196
          %v5443 = vrcp.pop %v5198
          %v5444 = vrcp.pop %v5200
          %v5445 = vrcp.pop %v5202
          %v5446 = vrcp.pop %v5204
          %v5447 = vrcp.pop %v5206
          %v5448 = vrcp.pop %v5208
          %v5449 = vrcp.pop %v5210
          %v5450 = vrcp.pop %v5212
          %v5451 = vrcp.pop %v5214
          %v5452 = vrcp.pop %v5216
          %v5453 = vrcp.pop %v5218
          %v5454 = vrcp.pop %v5220
          %v5455 = vrcp.pop %v5222
          %v5456 = vrcp.pop %v5224
          %v5457 = vrcp.pop %v5226
          %v5458 = vrcp.pop %v5228
          %v5459 = vrcp.pop %v5230
          %v5460 = vrcp.pop %v5232
          %v5461 = vrcp.pop %v5234
          %v5462 = vrcp.pop %v5236
          %v5463 = vrcp.pop %v5238
          %v5464 = vrcp.pop %v5240
          %v5465 = vrcp.pop %v5242
          %v5466 = vrcp.pop %v5244
          %v5467 = vrcp.pop %v5246
          %v5468 = vrcp.pop %v5248
          %v5469 = vrcp.pop %v5250
          %v5470 = vrcp.pop %v5252
          %v5471 = vrcp.pop %v5254
          %v5472 = vrcp.pop %v5256
          %v5473 = vrcp.pop %v5258
          %v5474 = vrcp.pop %v5260
          %v5475 = vrcp.pop %v5262
          %v5476 = vrcp.pop %v5264
          %v5477 = vrcp.pop %v5266
          %v5478 = vrcp.pop %v5268
          %v5479 = vrcp.pop %v5270
          %v5480 = vrcp.pop %v5272
          %v5481 = vrcp.pop %v5274
          %v5482 = vrcp.pop %v5276
          %v5483 = vrcp.pop %v5278
          %v5484 = vrcp.pop %v5280
          %v5485 = vrcp.pop %v5282
          %v5486 = vrcp.pop %v5284
          %v5487 = vrcp.pop %v5286
          %v5488 = vrcp.pop %v5288
          %v5489 = vrcp.pop %v5290
          %v5490 = vrcp.pop %v5292
          %v5491 = vrcp.pop %v5294
          %v5492 = vrcp.pop %v5296
          %v5493 = vrcp.pop %v5298
          %v5494 = vrcp.pop %v5300
          %v5495 = vrcp.pop %v5302
          %v5496 = vrcp.pop %v5304
          %v5497 = vrcp.pop %v5306
          %v5498 = vrcp.pop %v5308
          %v5499 = vrcp.pop %v5310
          %v5500 = vrcp.pop %v5312
          %v5501 = vrcp.pop %v5314
          %v5502 = vrcp.pop %v5316
          %v5503 = vrcp.pop %v5318
          %v5504 = vrcp.pop %v5320
          %v5505 = vrcp.pop %v5322
          %v5506 = vrcp.pop %v5324
          %v5507 = vrcp.pop %v5326
          %v5508 = vrcp.pop %v5328
          %v5509 = vrcp.pop %v5330
          %v5510 = vrcp.pop %v5332
          %v5511 = vrcp.pop %v5334
          %v5512 = vrcp.pop %v5336
          %v5513 = vrcp.pop %v5338
          %v5514 = vrcp.pop %v5340
          %v5515 = vrcp.pop %v5342
          %v5516 = vrcp.pop %v5344
          %v5517 = vrcp.pop %v5346
          %v5518 = vrcp.pop %v5348
          %v5519 = vrcp.pop %v5350
          %v5520 = vrcp.pop %v5352
          %v5521 = vrcp.pop %v5354
          %v5522 = vrcp.pop %v5356
          %v5523 = vrcp.pop %v5358
          %v5524 = vrcp.pop %v5360
          %v5525 = vrcp.pop %v5362
          %v5526 = vrcp.pop %v5364
          %v5527 = vrcp.pop %v5366
          %v5528 = vrcp.pop %v5368
          %v5529 = vrcp.pop %v5370
          %v5530 = vrcp.pop %v5372
          %v5531 = vrcp.pop %v5374
          %v5532 = vrcp.pop %v5376
          %v5533 = vrcp.pop %v5378
          %v5534 = vrcp.pop %v5380
          %v5535 = vrcp.pop %v5382
          %v5536 = vrcp.pop %v5384
          %v5537 = vrcp.pop %v5386
          %v5538 = vrcp.pop %v5388
          %v5539 = vrcp.pop %v5390
          %v5540 = vrcp.pop %v5392
          %v5541 = vrcp.pop %v5394
          %v5542 = vrcp.pop %v5396
          %v5543 = vrcp.pop %v5398
          %v5544 = vrcp.pop %v5400
          %v5545 = vrcp.pop %v5402
          %v5546 = vrcp.pop %v5404
          %v5547 = vrcp.pop %v5406
          %v5548 = vrcp.pop %v5408
          %v5549 = vrcp.pop %v5410
          %v5550 = vrcp.pop %v5412
          %v5551 = vrcp.pop %v5414
          %v5552 = vrcp.pop %v5416
          %v5553 = vrcp.pop %v5418
          %v5554 = vrcp.pop %v5420
          %v5555 = vrcp.pop %v5422
          %v5556 = vrcp.pop %v5424
          %v5557 = vrcp.pop %v5426
          %v5558 = vrcp.pop %v5428
          %v5559 = vrcp.pop %v5430
          %v5560 = vrcp.pop %v5432
          %v5561 = vmul.f32 %v4922, %v5433
          %v5562 = vmul.f32 %v4924, %v5434
          %v5563 = vmul.f32 %v4926, %v5435
          %v5564 = vmul.f32 %v4928, %v5436
          %v5565 = vmul.f32 %v4930, %v5437
          %v5566 = vmul.f32 %v4932, %v5438
          %v5567 = vmul.f32 %v4934, %v5439
          %v5568 = vmul.f32 %v4936, %v5440
          %v5569 = vmul.f32 %v4938, %v5441
          %v5570 = vmul.f32 %v4940, %v5442
          %v5571 = vmul.f32 %v4942, %v5443
          %v5572 = vmul.f32 %v4944, %v5444
          %v5573 = vmul.f32 %v4946, %v5445
          %v5574 = vmul.f32 %v4948, %v5446
          %v5575 = vmul.f32 %v4950, %v5447
          %v5576 = vmul.f32 %v4952, %v5448
          %v5577 = vmul.f32 %v4954, %v5449
          %v5578 = vmul.f32 %v4956, %v5450
          %v5579 = vmul.f32 %v4958, %v5451
          %v5580 = vmul.f32 %v4960, %v5452
          %v5581 = vmul.f32 %v4962, %v5453
          %v5582 = vmul.f32 %v4964, %v5454
          %v5583 = vmul.f32 %v4966, %v5455
          %v5584 = vmul.f32 %v4968, %v5456
          %v5585 = vmul.f32 %v4970, %v5457
          %v5586 = vmul.f32 %v4972, %v5458
          %v5587 = vmul.f32 %v4974, %v5459
          %v5588 = vmul.f32 %v4976, %v5460
          %v5589 = vmul.f32 %v4978, %v5461
          %v5590 = vmul.f32 %v4980, %v5462
          %v5591 = vmul.f32 %v4982, %v5463
          %v5592 = vmul.f32 %v4984, %v5464
          %v5593 = vmul.f32 %v4986, %v5465
          %v5594 = vmul.f32 %v4988, %v5466
          %v5595 = vmul.f32 %v4990, %v5467
          %v5596 = vmul.f32 %v4992, %v5468
          %v5597 = vmul.f32 %v4994, %v5469
          %v5598 = vmul.f32 %v4996, %v5470
          %v5599 = vmul.f32 %v4998, %v5471
          %v5600 = vmul.f32 %v5000, %v5472
          %v5601 = vmul.f32 %v5002, %v5473
          %v5602 = vmul.f32 %v5004, %v5474
          %v5603 = vmul.f32 %v5006, %v5475
          %v5604 = vmul.f32 %v5008, %v5476
          %v5605 = vmul.f32 %v5010, %v5477
          %v5606 = vmul.f32 %v5012, %v5478
          %v5607 = vmul.f32 %v5014, %v5479
          %v5608 = vmul.f32 %v5016, %v5480
          %v5609 = vmul.f32 %v5018, %v5481
          %v5610 = vmul.f32 %v5020, %v5482
          %v5611 = vmul.f32 %v5022, %v5483
          %v5612 = vmul.f32 %v5024, %v5484
          %v5613 = vmul.f32 %v5026, %v5485
          %v5614 = vmul.f32 %v5028, %v5486
          %v5615 = vmul.f32 %v5030, %v5487
          %v5616 = vmul.f32 %v5032, %v5488
          %v5617 = vmul.f32 %v5034, %v5489
          %v5618 = vmul.f32 %v5036, %v5490
          %v5619 = vmul.f32 %v5038, %v5491
          %v5620 = vmul.f32 %v5040, %v5492
          %v5621 = vmul.f32 %v5042, %v5493
          %v5622 = vmul.f32 %v5044, %v5494
          %v5623 = vmul.f32 %v5046, %v5495
          %v5624 = vmul.f32 %v5048, %v5496
          %v5625 = vmul.f32 %v5050, %v5497
          %v5626 = vmul.f32 %v5052, %v5498
          %v5627 = vmul.f32 %v5054, %v5499
          %v5628 = vmul.f32 %v5056, %v5500
          %v5629 = vmul.f32 %v5058, %v5501
          %v5630 = vmul.f32 %v5060, %v5502
          %v5631 = vmul.f32 %v5062, %v5503
          %v5632 = vmul.f32 %v5064, %v5504
          %v5633 = vmul.f32 %v5066, %v5505
          %v5634 = vmul.f32 %v5068, %v5506
          %v5635 = vmul.f32 %v5070, %v5507
          %v5636 = vmul.f32 %v5072, %v5508
          %v5637 = vmul.f32 %v5074, %v5509
          %v5638 = vmul.f32 %v5076, %v5510
          %v5639 = vmul.f32 %v5078, %v5511
          %v5640 = vmul.f32 %v5080, %v5512
          %v5641 = vmul.f32 %v5082, %v5513
          %v5642 = vmul.f32 %v5084, %v5514
          %v5643 = vmul.f32 %v5086, %v5515
          %v5644 = vmul.f32 %v5088, %v5516
          %v5645 = vmul.f32 %v5090, %v5517
          %v5646 = vmul.f32 %v5092, %v5518
          %v5647 = vmul.f32 %v5094, %v5519
          %v5648 = vmul.f32 %v5096, %v5520
          %v5649 = vmul.f32 %v5098, %v5521
          %v5650 = vmul.f32 %v5100, %v5522
          %v5651 = vmul.f32 %v5102, %v5523
          %v5652 = vmul.f32 %v5104, %v5524
          %v5653 = vmul.f32 %v5106, %v5525
          %v5654 = vmul.f32 %v5108, %v5526
          %v5655 = vmul.f32 %v5110, %v5527
          %v5656 = vmul.f32 %v5112, %v5528
          %v5657 = vmul.f32 %v5114, %v5529
          %v5658 = vmul.f32 %v5116, %v5530
          %v5659 = vmul.f32 %v5118, %v5531
          %v5660 = vmul.f32 %v5120, %v5532
          %v5661 = vmul.f32 %v5122, %v5533
          %v5662 = vmul.f32 %v5124, %v5534
          %v5663 = vmul.f32 %v5126, %v5535
          %v5664 = vmul.f32 %v5128, %v5536
          %v5665 = vmul.f32 %v5130, %v5537
          %v5666 = vmul.f32 %v5132, %v5538
          %v5667 = vmul.f32 %v5134, %v5539
          %v5668 = vmul.f32 %v5136, %v5540
          %v5669 = vmul.f32 %v5138, %v5541
          %v5670 = vmul.f32 %v5140, %v5542
          %v5671 = vmul.f32 %v5142, %v5543
          %v5672 = vmul.f32 %v5144, %v5544
          %v5673 = vmul.f32 %v5146, %v5545
          %v5674 = vmul.f32 %v5148, %v5546
          %v5675 = vmul.f32 %v5150, %v5547
          %v5676 = vmul.f32 %v5152, %v5548
          %v5677 = vmul.f32 %v5154, %v5549
          %v5678 = vmul.f32 %v5156, %v5550
          %v5679 = vmul.f32 %v5158, %v5551
          %v5680 = vmul.f32 %v5160, %v5552
          %v5681 = vmul.f32 %v5162, %v5553
          %v5682 = vmul.f32 %v5164, %v5554
          %v5683 = vmul.f32 %v5166, %v5555
          %v5684 = vmul.f32 %v5168, %v5556
          %v5685 = vmul.f32 %v5170, %v5557
          %v5686 = vmul.f32 %v5172, %v5558
          %v5687 = vmul.f32 %v5174, %v5559
          %v5688 = vmul.f32 %v5176, %v5560
          %v5689 = vpack.c.bf16 %v5561, %v5561
          %v5690 = vpack.c.bf16 %v5562, %v5562
          %v5691 = vpack.c.bf16 %v5563, %v5563
          %v5692 = vpack.c.bf16 %v5564, %v5564
          %v5693 = vpack.c.bf16 %v5565, %v5565
          %v5694 = vpack.c.bf16 %v5566, %v5566
          %v5695 = vpack.c.bf16 %v5567, %v5567
          %v5696 = vpack.c.bf16 %v5568, %v5568
          %v5697 = vpack.c.bf16 %v5569, %v5569
          %v5698 = vpack.c.bf16 %v5570, %v5570
          %v5699 = vpack.c.bf16 %v5571, %v5571
          %v5700 = vpack.c.bf16 %v5572, %v5572
          %v5701 = vpack.c.bf16 %v5573, %v5573
          %v5702 = vpack.c.bf16 %v5574, %v5574
          %v5703 = vpack.c.bf16 %v5575, %v5575
          %v5704 = vpack.c.bf16 %v5576, %v5576
          %v5705 = vpack.c.bf16 %v5577, %v5577
          %v5706 = vpack.c.bf16 %v5578, %v5578
          %v5707 = vpack.c.bf16 %v5579, %v5579
          %v5708 = vpack.c.bf16 %v5580, %v5580
          %v5709 = vpack.c.bf16 %v5581, %v5581
          %v5710 = vpack.c.bf16 %v5582, %v5582
          %v5711 = vpack.c.bf16 %v5583, %v5583
          %v5712 = vpack.c.bf16 %v5584, %v5584
          %v5713 = vpack.c.bf16 %v5585, %v5585
          %v5714 = vpack.c.bf16 %v5586, %v5586
          %v5715 = vpack.c.bf16 %v5587, %v5587
          %v5716 = vpack.c.bf16 %v5588, %v5588
          %v5717 = vpack.c.bf16 %v5589, %v5589
          %v5718 = vpack.c.bf16 %v5590, %v5590
          %v5719 = vpack.c.bf16 %v5591, %v5591
          %v5720 = vpack.c.bf16 %v5592, %v5592
          %v5721 = vpack.c.bf16 %v5593, %v5593
          %v5722 = vpack.c.bf16 %v5594, %v5594
          %v5723 = vpack.c.bf16 %v5595, %v5595
          %v5724 = vpack.c.bf16 %v5596, %v5596
          %v5725 = vpack.c.bf16 %v5597, %v5597
          %v5726 = vpack.c.bf16 %v5598, %v5598
          %v5727 = vpack.c.bf16 %v5599, %v5599
          %v5728 = vpack.c.bf16 %v5600, %v5600
          %v5729 = vpack.c.bf16 %v5601, %v5601
          %v5730 = vpack.c.bf16 %v5602, %v5602
          %v5731 = vpack.c.bf16 %v5603, %v5603
          %v5732 = vpack.c.bf16 %v5604, %v5604
          %v5733 = vpack.c.bf16 %v5605, %v5605
          %v5734 = vpack.c.bf16 %v5606, %v5606
          %v5735 = vpack.c.bf16 %v5607, %v5607
          %v5736 = vpack.c.bf16 %v5608, %v5608
          %v5737 = vpack.c.bf16 %v5609, %v5609
          %v5738 = vpack.c.bf16 %v5610, %v5610
          %v5739 = vpack.c.bf16 %v5611, %v5611
          %v5740 = vpack.c.bf16 %v5612, %v5612
          %v5741 = vpack.c.bf16 %v5613, %v5613
          %v5742 = vpack.c.bf16 %v5614, %v5614
          %v5743 = vpack.c.bf16 %v5615, %v5615
          %v5744 = vpack.c.bf16 %v5616, %v5616
          %v5745 = vpack.c.bf16 %v5617, %v5617
          %v5746 = vpack.c.bf16 %v5618, %v5618
          %v5747 = vpack.c.bf16 %v5619, %v5619
          %v5748 = vpack.c.bf16 %v5620, %v5620
          %v5749 = vpack.c.bf16 %v5621, %v5621
          %v5750 = vpack.c.bf16 %v5622, %v5622
          %v5751 = vpack.c.bf16 %v5623, %v5623
          %v5752 = vpack.c.bf16 %v5624, %v5624
          %v5753 = vpack.c.bf16 %v5625, %v5625
          %v5754 = vpack.c.bf16 %v5626, %v5626
          %v5755 = vpack.c.bf16 %v5627, %v5627
          %v5756 = vpack.c.bf16 %v5628, %v5628
          %v5757 = vpack.c.bf16 %v5629, %v5629
          %v5758 = vpack.c.bf16 %v5630, %v5630
          %v5759 = vpack.c.bf16 %v5631, %v5631
          %v5760 = vpack.c.bf16 %v5632, %v5632
          %v5761 = vpack.c.bf16 %v5633, %v5633
          %v5762 = vpack.c.bf16 %v5634, %v5634
          %v5763 = vpack.c.bf16 %v5635, %v5635
          %v5764 = vpack.c.bf16 %v5636, %v5636
          %v5765 = vpack.c.bf16 %v5637, %v5637
          %v5766 = vpack.c.bf16 %v5638, %v5638
          %v5767 = vpack.c.bf16 %v5639, %v5639
          %v5768 = vpack.c.bf16 %v5640, %v5640
          %v5769 = vpack.c.bf16 %v5641, %v5641
          %v5770 = vpack.c.bf16 %v5642, %v5642
          %v5771 = vpack.c.bf16 %v5643, %v5643
          %v5772 = vpack.c.bf16 %v5644, %v5644
          %v5773 = vpack.c.bf16 %v5645, %v5645
          %v5774 = vpack.c.bf16 %v5646, %v5646
          %v5775 = vpack.c.bf16 %v5647, %v5647
          %v5776 = vpack.c.bf16 %v5648, %v5648
          %v5777 = vpack.c.bf16 %v5649, %v5649
          %v5778 = vpack.c.bf16 %v5650, %v5650
          %v5779 = vpack.c.bf16 %v5651, %v5651
          %v5780 = vpack.c.bf16 %v5652, %v5652
          %v5781 = vpack.c.bf16 %v5653, %v5653
          %v5782 = vpack.c.bf16 %v5654, %v5654
          %v5783 = vpack.c.bf16 %v5655, %v5655
          %v5784 = vpack.c.bf16 %v5656, %v5656
          %v5785 = vpack.c.bf16 %v5657, %v5657
          %v5786 = vpack.c.bf16 %v5658, %v5658
          %v5787 = vpack.c.bf16 %v5659, %v5659
          %v5788 = vpack.c.bf16 %v5660, %v5660
          %v5789 = vpack.c.bf16 %v5661, %v5661
          %v5790 = vpack.c.bf16 %v5662, %v5662
          %v5791 = vpack.c.bf16 %v5663, %v5663
          %v5792 = vpack.c.bf16 %v5664, %v5664
          %v5793 = vpack.c.bf16 %v5665, %v5665
          %v5794 = vpack.c.bf16 %v5666, %v5666
          %v5795 = vpack.c.bf16 %v5667, %v5667
          %v5796 = vpack.c.bf16 %v5668, %v5668
          %v5797 = vpack.c.bf16 %v5669, %v5669
          %v5798 = vpack.c.bf16 %v5670, %v5670
          %v5799 = vpack.c.bf16 %v5671, %v5671
          %v5800 = vpack.c.bf16 %v5672, %v5672
          %v5801 = vpack.c.bf16 %v5673, %v5673
          %v5802 = vpack.c.bf16 %v5674, %v5674
          %v5803 = vpack.c.bf16 %v5675, %v5675
          %v5804 = vpack.c.bf16 %v5676, %v5676
          %v5805 = vpack.c.bf16 %v5677, %v5677
          %v5806 = vpack.c.bf16 %v5678, %v5678
          %v5807 = vpack.c.bf16 %v5679, %v5679
          %v5808 = vpack.c.bf16 %v5680, %v5680
          %v5809 = vpack.c.bf16 %v5681, %v5681
          %v5810 = vpack.c.bf16 %v5682, %v5682
          %v5811 = vpack.c.bf16 %v5683, %v5683
          %v5812 = vpack.c.bf16 %v5684, %v5684
          %v5813 = vpack.c.bf16 %v5685, %v5685
          %v5814 = vpack.c.bf16 %v5686, %v5686
          %v5815 = vpack.c.bf16 %v5687, %v5687
          %v5816 = vpack.c.bf16 %v5688, %v5688
          %v5849 = vunpack.c.l.b16 %v5689
          %v5850 = vunpack.c.l.b16 %v5690
          %v5851 = vunpack.c.l.b16 %v5691
          %v5852 = vunpack.c.l.b16 %v5692
          %v5853 = vunpack.c.l.b16 %v5693
          %v5854 = vunpack.c.l.b16 %v5694
          %v5855 = vunpack.c.l.b16 %v5695
          %v5856 = vunpack.c.l.b16 %v5696
          %v5857 = vunpack.c.l.b16 %v5697
          %v5858 = vunpack.c.l.b16 %v5698
          %v5859 = vunpack.c.l.b16 %v5699
          %v5860 = vunpack.c.l.b16 %v5700
          %v5861 = vunpack.c.l.b16 %v5701
          %v5862 = vunpack.c.l.b16 %v5702
          %v5863 = vunpack.c.l.b16 %v5703
          %v5864 = vunpack.c.l.b16 %v5704
          %v5865 = vunpack.c.l.b16 %v5705
          %v5866 = vunpack.c.l.b16 %v5706
          %v5867 = vunpack.c.l.b16 %v5707
          %v5868 = vunpack.c.l.b16 %v5708
          %v5869 = vunpack.c.l.b16 %v5709
          %v5870 = vunpack.c.l.b16 %v5710
          %v5871 = vunpack.c.l.b16 %v5711
          %v5872 = vunpack.c.l.b16 %v5712
          %v5873 = vunpack.c.l.b16 %v5713
          %v5874 = vunpack.c.l.b16 %v5714
          %v5875 = vunpack.c.l.b16 %v5715
          %v5876 = vunpack.c.l.b16 %v5716
          %v5877 = vunpack.c.l.b16 %v5717
          %v5878 = vunpack.c.l.b16 %v5718
          %v5879 = vunpack.c.l.b16 %v5719
          %v5880 = vunpack.c.l.b16 %v5720
          %v5881 = vpack.c.b16 %v5850, %v5849
          %v5882 = vpack.c.b16 %v5852, %v5851
          %v5883 = vpack.c.b16 %v5854, %v5853
          %v5884 = vpack.c.b16 %v5856, %v5855
          %v5885 = vpack.c.b16 %v5858, %v5857
          %v5886 = vpack.c.b16 %v5860, %v5859
          %v5887 = vpack.c.b16 %v5862, %v5861
          %v5888 = vpack.c.b16 %v5864, %v5863
          %v5889 = vpack.c.b16 %v5866, %v5865
          %v5890 = vpack.c.b16 %v5868, %v5867
          %v5891 = vpack.c.b16 %v5870, %v5869
          %v5892 = vpack.c.b16 %v5872, %v5871
          %v5893 = vpack.c.b16 %v5874, %v5873
          %v5894 = vpack.c.b16 %v5876, %v5875
          %v5895 = vpack.c.b16 %v5878, %v5877
          %v5896 = vpack.c.b16 %v5880, %v5879
          %v5929 = vunpack.c.l.b16 %v900
          %v5930 = vunpack.c.l.b16 %v901
          %v5931 = vunpack.c.l.b16 %v902
          %v5932 = vunpack.c.l.b16 %v903
          %v5933 = vunpack.c.l.b16 %v904
          %v5934 = vunpack.c.l.b16 %v905
          %v5935 = vunpack.c.l.b16 %v906
          %v5936 = vunpack.c.l.b16 %v907
          %v5937 = vunpack.c.l.b16 %v908
          %v5938 = vunpack.c.l.b16 %v909
          %v5939 = vunpack.c.l.b16 %v910
          %v5940 = vunpack.c.l.b16 %v911
          %v5941 = vunpack.c.l.b16 %v912
          %v5942 = vunpack.c.l.b16 %v913
          %v5943 = vunpack.c.l.b16 %v914
          %v5944 = vunpack.c.l.b16 %v915
          %v5945 = vpack.c.b16 %v5930, %v5929
          %v5946 = vpack.c.b16 %v5932, %v5931
          %v5947 = vpack.c.b16 %v5934, %v5933
          %v5948 = vpack.c.b16 %v5936, %v5935
          %v5949 = vpack.c.b16 %v5938, %v5937
          %v5950 = vpack.c.b16 %v5940, %v5939
          %v5951 = vpack.c.b16 %v5942, %v5941
          %v5952 = vpack.c.b16 %v5944, %v5943
          %5961 = vmatpush.bf16.msra.mxu0 %v5952
          %5962 = vmatpush.bf16.msra.mxu0 %v5951
          %5963 = vmatpush.bf16.msra.mxu0 %v5950
          %5964 = vmatpush.bf16.msra.mxu0 %v5949
          %5965 = vmatpush.bf16.msra.mxu0 %v5948
          %5966 = vmatpush.bf16.msra.mxu0 %v5947
          %5967 = vmatpush.bf16.msra.mxu0 %v5946
          %5968 = vmatpush.bf16.msra.mxu0 %v5945
          %5969 = vmatmul.bf16.gmra.mxu0 %v5881
          %v5970 = vpop.f32.mrf.mxu0
          %v5971 = vadd.f32 0.0, %v5970
          %v5972 = vpop.f32.mrf.mxu0
          %v5973 = vadd.f32 0.0, %v5972
          %5974 = vmatmul.bf16.gmra.mxu0 %v5882
          %v5975 = vpop.f32.mrf.mxu0
          %v5976 = vadd.f32 0.0, %v5975
          %v5977 = vpop.f32.mrf.mxu0
          %v5978 = vadd.f32 0.0, %v5977
          %5979 = vmatmul.bf16.gmra.mxu0 %v5883
          %v5980 = vpop.f32.mrf.mxu0
          %v5981 = vadd.f32 0.0, %v5980
          %v5982 = vpop.f32.mrf.mxu0
          %v5983 = vadd.f32 0.0, %v5982
          %5984 = vmatmul.bf16.gmra.mxu0 %v5884
          %v5985 = vpop.f32.mrf.mxu0
          %v5986 = vadd.f32 0.0, %v5985
          %v5987 = vpop.f32.mrf.mxu0
          %v5988 = vadd.f32 0.0, %v5987
          %5989 = vmatmul.bf16.gmra.mxu0 %v5885
          %v5990 = vpop.f32.mrf.mxu0
          %v5991 = vadd.f32 0.0, %v5990
          %v5992 = vpop.f32.mrf.mxu0
          %v5993 = vadd.f32 0.0, %v5992
          %5994 = vmatmul.bf16.gmra.mxu0 %v5886
          %v5995 = vpop.f32.mrf.mxu0
          %v5996 = vadd.f32 0.0, %v5995
          %v5997 = vpop.f32.mrf.mxu0
          %v5998 = vadd.f32 0.0, %v5997
          %5999 = vmatmul.bf16.gmra.mxu0 %v5887
          %v6000 = vpop.f32.mrf.mxu0
          %v6001 = vadd.f32 0.0, %v6000
          %v6002 = vpop.f32.mrf.mxu0
          %v6003 = vadd.f32 0.0, %v6002
          %6004 = vmatmul.bf16.gmra.mxu0 %v5888
          %v6005 = vpop.f32.mrf.mxu0
          %v6006 = vadd.f32 0.0, %v6005
          %v6007 = vpop.f32.mrf.mxu0
          %v6008 = vadd.f32 0.0, %v6007
          %6009 = vmatmul.bf16.gmra.mxu0 %v5889
          %v6010 = vpop.f32.mrf.mxu0
          %v6011 = vadd.f32 0.0, %v6010
          %v6012 = vpop.f32.mrf.mxu0
          %v6013 = vadd.f32 0.0, %v6012
          %6014 = vmatmul.bf16.gmra.mxu0 %v5890
          %v6015 = vpop.f32.mrf.mxu0
          %v6016 = vadd.f32 0.0, %v6015
          %v6017 = vpop.f32.mrf.mxu0
          %v6018 = vadd.f32 0.0, %v6017
          %6019 = vmatmul.bf16.gmra.mxu0 %v5891
          %v6020 = vpop.f32.mrf.mxu0
          %v6021 = vadd.f32 0.0, %v6020
          %v6022 = vpop.f32.mrf.mxu0
          %v6023 = vadd.f32 0.0, %v6022
          %6024 = vmatmul.bf16.gmra.mxu0 %v5892
          %v6025 = vpop.f32.mrf.mxu0
          %v6026 = vadd.f32 0.0, %v6025
          %v6027 = vpop.f32.mrf.mxu0
          %v6028 = vadd.f32 0.0, %v6027
          %6029 = vmatmul.bf16.gmra.mxu0 %v5893
          %v6030 = vpop.f32.mrf.mxu0
          %v6031 = vadd.f32 0.0, %v6030
          %v6032 = vpop.f32.mrf.mxu0
          %v6033 = vadd.f32 0.0, %v6032
          %6034 = vmatmul.bf16.gmra.mxu0 %v5894
          %v6035 = vpop.f32.mrf.mxu0
          %v6036 = vadd.f32 0.0, %v6035
          %v6037 = vpop.f32.mrf.mxu0
          %v6038 = vadd.f32 0.0, %v6037
          %6039 = vmatmul.bf16.gmra.mxu0 %v5895
          %v6040 = vpop.f32.mrf.mxu0
          %v6041 = vadd.f32 0.0, %v6040
          %v6042 = vpop.f32.mrf.mxu0
          %v6043 = vadd.f32 0.0, %v6042
          %6044 = vmatmul.bf16.gmra.mxu0 %v5896
          %v6045 = vpop.f32.mrf.mxu0
          %v6046 = vadd.f32 0.0, %v6045
          %v6047 = vpop.f32.mrf.mxu0
          %v6048 = vadd.f32 0.0, %v6047
          %6049 = vdwg.mxu0
          %v6082 = vunpack.c.l.b16 %v5721
          %v6083 = vunpack.c.l.b16 %v5722
          %v6084 = vunpack.c.l.b16 %v5723
          %v6085 = vunpack.c.l.b16 %v5724
          %v6086 = vunpack.c.l.b16 %v5725
          %v6087 = vunpack.c.l.b16 %v5726
          %v6088 = vunpack.c.l.b16 %v5727
          %v6089 = vunpack.c.l.b16 %v5728
          %v6090 = vunpack.c.l.b16 %v5729
          %v6091 = vunpack.c.l.b16 %v5730
          %v6092 = vunpack.c.l.b16 %v5731
          %v6093 = vunpack.c.l.b16 %v5732
          %v6094 = vunpack.c.l.b16 %v5733
          %v6095 = vunpack.c.l.b16 %v5734
          %v6096 = vunpack.c.l.b16 %v5735
          %v6097 = vunpack.c.l.b16 %v5736
          %v6098 = vunpack.c.l.b16 %v5737
          %v6099 = vunpack.c.l.b16 %v5738
          %v6100 = vunpack.c.l.b16 %v5739
          %v6101 = vunpack.c.l.b16 %v5740
          %v6102 = vunpack.c.l.b16 %v5741
          %v6103 = vunpack.c.l.b16 %v5742
          %v6104 = vunpack.c.l.b16 %v5743
          %v6105 = vunpack.c.l.b16 %v5744
          %v6106 = vunpack.c.l.b16 %v5745
          %v6107 = vunpack.c.l.b16 %v5746
          %v6108 = vunpack.c.l.b16 %v5747
          %v6109 = vunpack.c.l.b16 %v5748
          %v6110 = vunpack.c.l.b16 %v5749
          %v6111 = vunpack.c.l.b16 %v5750
          %v6112 = vunpack.c.l.b16 %v5751
          %v6113 = vunpack.c.l.b16 %v5752
          %v6114 = vpack.c.b16 %v6083, %v6082
          %v6115 = vpack.c.b16 %v6085, %v6084
          %v6116 = vpack.c.b16 %v6087, %v6086
          %v6117 = vpack.c.b16 %v6089, %v6088
          %v6118 = vpack.c.b16 %v6091, %v6090
          %v6119 = vpack.c.b16 %v6093, %v6092
          %v6120 = vpack.c.b16 %v6095, %v6094
          %v6121 = vpack.c.b16 %v6097, %v6096
          %v6122 = vpack.c.b16 %v6099, %v6098
          %v6123 = vpack.c.b16 %v6101, %v6100
          %v6124 = vpack.c.b16 %v6103, %v6102
          %v6125 = vpack.c.b16 %v6105, %v6104
          %v6126 = vpack.c.b16 %v6107, %v6106
          %v6127 = vpack.c.b16 %v6109, %v6108
          %v6128 = vpack.c.b16 %v6111, %v6110
          %v6129 = vpack.c.b16 %v6113, %v6112
          %v6162 = vunpack.c.l.b16 %v916
          %v6163 = vunpack.c.l.b16 %v917
          %v6164 = vunpack.c.l.b16 %v918
          %v6165 = vunpack.c.l.b16 %v919
          %v6166 = vunpack.c.l.b16 %v920
          %v6167 = vunpack.c.l.b16 %v921
          %v6168 = vunpack.c.l.b16 %v922
          %v6169 = vunpack.c.l.b16 %v923
          %v6170 = vunpack.c.l.b16 %v924
          %v6171 = vunpack.c.l.b16 %v925
          %v6172 = vunpack.c.l.b16 %v926
          %v6173 = vunpack.c.l.b16 %v927
          %v6174 = vunpack.c.l.b16 %v928
          %v6175 = vunpack.c.l.b16 %v929
          %v6176 = vunpack.c.l.b16 %v930
          %v6177 = vunpack.c.l.b16 %v931
          %v6178 = vpack.c.b16 %v6163, %v6162
          %v6179 = vpack.c.b16 %v6165, %v6164
          %v6180 = vpack.c.b16 %v6167, %v6166
          %v6181 = vpack.c.b16 %v6169, %v6168
          %v6182 = vpack.c.b16 %v6171, %v6170
          %v6183 = vpack.c.b16 %v6173, %v6172
          %v6184 = vpack.c.b16 %v6175, %v6174
          %v6185 = vpack.c.b16 %v6177, %v6176
          %6194 = vmatpush.bf16.msra.mxu0 %v6185
          %6195 = vmatpush.bf16.msra.mxu0 %v6184
          %6196 = vmatpush.bf16.msra.mxu0 %v6183
          %6197 = vmatpush.bf16.msra.mxu0 %v6182
          %6198 = vmatpush.bf16.msra.mxu0 %v6181
          %6199 = vmatpush.bf16.msra.mxu0 %v6180
          %6200 = vmatpush.bf16.msra.mxu0 %v6179
          %6201 = vmatpush.bf16.msra.mxu0 %v6178
          %6202 = vmatmul.bf16.gmra.mxu0 %v6114
          %v6203 = vpop.f32.mrf.mxu0
          %v6204 = vadd.f32 0.0, %v6203
          %v6205 = vpop.f32.mrf.mxu0
          %v6206 = vadd.f32 0.0, %v6205
          %6207 = vmatmul.bf16.gmra.mxu0 %v6115
          %v6208 = vpop.f32.mrf.mxu0
          %v6209 = vadd.f32 0.0, %v6208
          %v6210 = vpop.f32.mrf.mxu0
          %v6211 = vadd.f32 0.0, %v6210
          %6212 = vmatmul.bf16.gmra.mxu0 %v6116
          %v6213 = vpop.f32.mrf.mxu0
          %v6214 = vadd.f32 0.0, %v6213
          %v6215 = vpop.f32.mrf.mxu0
          %v6216 = vadd.f32 0.0, %v6215
          %6217 = vmatmul.bf16.gmra.mxu0 %v6117
          %v6218 = vpop.f32.mrf.mxu0
          %v6219 = vadd.f32 0.0, %v6218
          %v6220 = vpop.f32.mrf.mxu0
          %v6221 = vadd.f32 0.0, %v6220
          %6222 = vmatmul.bf16.gmra.mxu0 %v6118
          %v6223 = vpop.f32.mrf.mxu0
          %v6224 = vadd.f32 0.0, %v6223
          %v6225 = vpop.f32.mrf.mxu0
          %v6226 = vadd.f32 0.0, %v6225
          %6227 = vmatmul.bf16.gmra.mxu0 %v6119
          %v6228 = vpop.f32.mrf.mxu0
          %v6229 = vadd.f32 0.0, %v6228
          %v6230 = vpop.f32.mrf.mxu0
          %v6231 = vadd.f32 0.0, %v6230
          %6232 = vmatmul.bf16.gmra.mxu0 %v6120
          %v6233 = vpop.f32.mrf.mxu0
          %v6234 = vadd.f32 0.0, %v6233
          %v6235 = vpop.f32.mrf.mxu0
          %v6236 = vadd.f32 0.0, %v6235
          %6237 = vmatmul.bf16.gmra.mxu0 %v6121
          %v6238 = vpop.f32.mrf.mxu0
          %v6239 = vadd.f32 0.0, %v6238
          %v6240 = vpop.f32.mrf.mxu0
          %v6241 = vadd.f32 0.0, %v6240
          %6242 = vmatmul.bf16.gmra.mxu0 %v6122
          %v6243 = vpop.f32.mrf.mxu0
          %v6244 = vadd.f32 0.0, %v6243
          %v6245 = vpop.f32.mrf.mxu0
          %v6246 = vadd.f32 0.0, %v6245
          %6247 = vmatmul.bf16.gmra.mxu0 %v6123
          %v6248 = vpop.f32.mrf.mxu0
          %v6249 = vadd.f32 0.0, %v6248
          %v6250 = vpop.f32.mrf.mxu0
          %v6251 = vadd.f32 0.0, %v6250
          %6252 = vmatmul.bf16.gmra.mxu0 %v6124
          %v6253 = vpop.f32.mrf.mxu0
          %v6254 = vadd.f32 0.0, %v6253
          %v6255 = vpop.f32.mrf.mxu0
          %v6256 = vadd.f32 0.0, %v6255
          %6257 = vmatmul.bf16.gmra.mxu0 %v6125
          %v6258 = vpop.f32.mrf.mxu0
          %v6259 = vadd.f32 0.0, %v6258
          %v6260 = vpop.f32.mrf.mxu0
          %v6261 = vadd.f32 0.0, %v6260
          %6262 = vmatmul.bf16.gmra.mxu0 %v6126
          %v6263 = vpop.f32.mrf.mxu0
          %v6264 = vadd.f32 0.0, %v6263
          %v6265 = vpop.f32.mrf.mxu0
          %v6266 = vadd.f32 0.0, %v6265
          %6267 = vmatmul.bf16.gmra.mxu0 %v6127
          %v6268 = vpop.f32.mrf.mxu0
          %v6269 = vadd.f32 0.0, %v6268
          %v6270 = vpop.f32.mrf.mxu0
          %v6271 = vadd.f32 0.0, %v6270
          %6272 = vmatmul.bf16.gmra.mxu0 %v6128
          %v6273 = vpop.f32.mrf.mxu0
          %v6274 = vadd.f32 0.0, %v6273
          %v6275 = vpop.f32.mrf.mxu0
          %v6276 = vadd.f32 0.0, %v6275
          %6277 = vmatmul.bf16.gmra.mxu0 %v6129
          %v6278 = vpop.f32.mrf.mxu0
          %v6279 = vadd.f32 0.0, %v6278
          %v6280 = vpop.f32.mrf.mxu0
          %v6281 = vadd.f32 0.0, %v6280
          %6282 = vdwg.mxu0
          %v6315 = vunpack.c.l.b16 %v5753
          %v6316 = vunpack.c.l.b16 %v5754
          %v6317 = vunpack.c.l.b16 %v5755
          %v6318 = vunpack.c.l.b16 %v5756
          %v6319 = vunpack.c.l.b16 %v5757
          %v6320 = vunpack.c.l.b16 %v5758
          %v6321 = vunpack.c.l.b16 %v5759
          %v6322 = vunpack.c.l.b16 %v5760
          %v6323 = vunpack.c.l.b16 %v5761
          %v6324 = vunpack.c.l.b16 %v5762
          %v6325 = vunpack.c.l.b16 %v5763
          %v6326 = vunpack.c.l.b16 %v5764
          %v6327 = vunpack.c.l.b16 %v5765
          %v6328 = vunpack.c.l.b16 %v5766
          %v6329 = vunpack.c.l.b16 %v5767
          %v6330 = vunpack.c.l.b16 %v5768
          %v6331 = vunpack.c.l.b16 %v5769
          %v6332 = vunpack.c.l.b16 %v5770
          %v6333 = vunpack.c.l.b16 %v5771
          %v6334 = vunpack.c.l.b16 %v5772
          %v6335 = vunpack.c.l.b16 %v5773
          %v6336 = vunpack.c.l.b16 %v5774
          %v6337 = vunpack.c.l.b16 %v5775
          %v6338 = vunpack.c.l.b16 %v5776
          %v6339 = vunpack.c.l.b16 %v5777
          %v6340 = vunpack.c.l.b16 %v5778
          %v6341 = vunpack.c.l.b16 %v5779
          %v6342 = vunpack.c.l.b16 %v5780
          %v6343 = vunpack.c.l.b16 %v5781
          %v6344 = vunpack.c.l.b16 %v5782
          %v6345 = vunpack.c.l.b16 %v5783
          %v6346 = vunpack.c.l.b16 %v5784
          %v6347 = vpack.c.b16 %v6316, %v6315
          %v6348 = vpack.c.b16 %v6318, %v6317
          %v6349 = vpack.c.b16 %v6320, %v6319
          %v6350 = vpack.c.b16 %v6322, %v6321
          %v6351 = vpack.c.b16 %v6324, %v6323
          %v6352 = vpack.c.b16 %v6326, %v6325
          %v6353 = vpack.c.b16 %v6328, %v6327
          %v6354 = vpack.c.b16 %v6330, %v6329
          %v6355 = vpack.c.b16 %v6332, %v6331
          %v6356 = vpack.c.b16 %v6334, %v6333
          %v6357 = vpack.c.b16 %v6336, %v6335
          %v6358 = vpack.c.b16 %v6338, %v6337
          %v6359 = vpack.c.b16 %v6340, %v6339
          %v6360 = vpack.c.b16 %v6342, %v6341
          %v6361 = vpack.c.b16 %v6344, %v6343
          %v6362 = vpack.c.b16 %v6346, %v6345
          %v6395 = vunpack.c.l.b16 %v932
          %v6396 = vunpack.c.l.b16 %v933
          %v6397 = vunpack.c.l.b16 %v934
          %v6398 = vunpack.c.l.b16 %v935
          %v6399 = vunpack.c.l.b16 %v936
          %v6400 = vunpack.c.l.b16 %v937
          %v6401 = vunpack.c.l.b16 %v938
          %v6402 = vunpack.c.l.b16 %v939
          %v6403 = vunpack.c.l.b16 %v940
          %v6404 = vunpack.c.l.b16 %v941
          %v6405 = vunpack.c.l.b16 %v942
          %v6406 = vunpack.c.l.b16 %v943
          %v6407 = vunpack.c.l.b16 %v944
          %v6408 = vunpack.c.l.b16 %v945
          %v6409 = vunpack.c.l.b16 %v946
          %v6410 = vunpack.c.l.b16 %v947
          %v6411 = vpack.c.b16 %v6396, %v6395
          %v6412 = vpack.c.b16 %v6398, %v6397
          %v6413 = vpack.c.b16 %v6400, %v6399
          %v6414 = vpack.c.b16 %v6402, %v6401
          %v6415 = vpack.c.b16 %v6404, %v6403
          %v6416 = vpack.c.b16 %v6406, %v6405
          %v6417 = vpack.c.b16 %v6408, %v6407
          %v6418 = vpack.c.b16 %v6410, %v6409
          %6427 = vmatpush.bf16.msra.mxu0 %v6418
          %6428 = vmatpush.bf16.msra.mxu0 %v6417
          %6429 = vmatpush.bf16.msra.mxu0 %v6416
          %6430 = vmatpush.bf16.msra.mxu0 %v6415
          %6431 = vmatpush.bf16.msra.mxu0 %v6414
          %6432 = vmatpush.bf16.msra.mxu0 %v6413
          %6433 = vmatpush.bf16.msra.mxu0 %v6412
          %6434 = vmatpush.bf16.msra.mxu0 %v6411
          %6435 = vmatmul.bf16.gmra.mxu0 %v6347
          %v6436 = vpop.f32.mrf.mxu0
          %v6437 = vadd.f32 0.0, %v6436
          %v6438 = vpop.f32.mrf.mxu0
          %v6439 = vadd.f32 0.0, %v6438
          %6440 = vmatmul.bf16.gmra.mxu0 %v6348
          %v6441 = vpop.f32.mrf.mxu0
          %v6442 = vadd.f32 0.0, %v6441
          %v6443 = vpop.f32.mrf.mxu0
          %v6444 = vadd.f32 0.0, %v6443
          %6445 = vmatmul.bf16.gmra.mxu0 %v6349
          %v6446 = vpop.f32.mrf.mxu0
          %v6447 = vadd.f32 0.0, %v6446
          %v6448 = vpop.f32.mrf.mxu0
          %v6449 = vadd.f32 0.0, %v6448
          %6450 = vmatmul.bf16.gmra.mxu0 %v6350
          %v6451 = vpop.f32.mrf.mxu0
          %v6452 = vadd.f32 0.0, %v6451
          %v6453 = vpop.f32.mrf.mxu0
          %v6454 = vadd.f32 0.0, %v6453
          %6455 = vmatmul.bf16.gmra.mxu0 %v6351
          %v6456 = vpop.f32.mrf.mxu0
          %v6457 = vadd.f32 0.0, %v6456
          %v6458 = vpop.f32.mrf.mxu0
          %v6459 = vadd.f32 0.0, %v6458
          %6460 = vmatmul.bf16.gmra.mxu0 %v6352
          %v6461 = vpop.f32.mrf.mxu0
          %v6462 = vadd.f32 0.0, %v6461
          %v6463 = vpop.f32.mrf.mxu0
          %v6464 = vadd.f32 0.0, %v6463
          %6465 = vmatmul.bf16.gmra.mxu0 %v6353
          %v6466 = vpop.f32.mrf.mxu0
          %v6467 = vadd.f32 0.0, %v6466
          %v6468 = vpop.f32.mrf.mxu0
          %v6469 = vadd.f32 0.0, %v6468
          %6470 = vmatmul.bf16.gmra.mxu0 %v6354
          %v6471 = vpop.f32.mrf.mxu0
          %v6472 = vadd.f32 0.0, %v6471
          %v6473 = vpop.f32.mrf.mxu0
          %v6474 = vadd.f32 0.0, %v6473
          %6475 = vmatmul.bf16.gmra.mxu0 %v6355
          %v6476 = vpop.f32.mrf.mxu0
          %v6477 = vadd.f32 0.0, %v6476
          %v6478 = vpop.f32.mrf.mxu0
          %v6479 = vadd.f32 0.0, %v6478
          %6480 = vmatmul.bf16.gmra.mxu0 %v6356
          %v6481 = vpop.f32.mrf.mxu0
          %v6482 = vadd.f32 0.0, %v6481
          %v6483 = vpop.f32.mrf.mxu0
          %v6484 = vadd.f32 0.0, %v6483
          %6485 = vmatmul.bf16.gmra.mxu0 %v6357
          %v6486 = vpop.f32.mrf.mxu0
          %v6487 = vadd.f32 0.0, %v6486
          %v6488 = vpop.f32.mrf.mxu0
          %v6489 = vadd.f32 0.0, %v6488
          %6490 = vmatmul.bf16.gmra.mxu0 %v6358
          %v6491 = vpop.f32.mrf.mxu0
          %v6492 = vadd.f32 0.0, %v6491
          %v6493 = vpop.f32.mrf.mxu0
          %v6494 = vadd.f32 0.0, %v6493
          %6495 = vmatmul.bf16.gmra.mxu0 %v6359
          %v6496 = vpop.f32.mrf.mxu0
          %v6497 = vadd.f32 0.0, %v6496
          %v6498 = vpop.f32.mrf.mxu0
          %v6499 = vadd.f32 0.0, %v6498
          %6500 = vmatmul.bf16.gmra.mxu0 %v6360
          %v6501 = vpop.f32.mrf.mxu0
          %v6502 = vadd.f32 0.0, %v6501
          %v6503 = vpop.f32.mrf.mxu0
          %v6504 = vadd.f32 0.0, %v6503
          %6505 = vmatmul.bf16.gmra.mxu0 %v6361
          %v6506 = vpop.f32.mrf.mxu0
          %v6507 = vadd.f32 0.0, %v6506
          %v6508 = vpop.f32.mrf.mxu0
          %v6509 = vadd.f32 0.0, %v6508
          %6510 = vmatmul.bf16.gmra.mxu0 %v6362
          %v6511 = vpop.f32.mrf.mxu0
          %v6512 = vadd.f32 0.0, %v6511
          %v6513 = vpop.f32.mrf.mxu0
          %v6514 = vadd.f32 0.0, %v6513
          %6515 = vdwg.mxu0
          %v6548 = vunpack.c.l.b16 %v5785
          %v6549 = vunpack.c.l.b16 %v5786
          %v6550 = vunpack.c.l.b16 %v5787
          %v6551 = vunpack.c.l.b16 %v5788
          %v6552 = vunpack.c.l.b16 %v5789
          %v6553 = vunpack.c.l.b16 %v5790
          %v6554 = vunpack.c.l.b16 %v5791
          %v6555 = vunpack.c.l.b16 %v5792
          %v6556 = vunpack.c.l.b16 %v5793
          %v6557 = vunpack.c.l.b16 %v5794
          %v6558 = vunpack.c.l.b16 %v5795
          %v6559 = vunpack.c.l.b16 %v5796
          %v6560 = vunpack.c.l.b16 %v5797
          %v6561 = vunpack.c.l.b16 %v5798
          %v6562 = vunpack.c.l.b16 %v5799
          %v6563 = vunpack.c.l.b16 %v5800
          %v6564 = vunpack.c.l.b16 %v5801
          %v6565 = vunpack.c.l.b16 %v5802
          %v6566 = vunpack.c.l.b16 %v5803
          %v6567 = vunpack.c.l.b16 %v5804
          %v6568 = vunpack.c.l.b16 %v5805
          %v6569 = vunpack.c.l.b16 %v5806
          %v6570 = vunpack.c.l.b16 %v5807
          %v6571 = vunpack.c.l.b16 %v5808
          %v6572 = vunpack.c.l.b16 %v5809
          %v6573 = vunpack.c.l.b16 %v5810
          %v6574 = vunpack.c.l.b16 %v5811
          %v6575 = vunpack.c.l.b16 %v5812
          %v6576 = vunpack.c.l.b16 %v5813
          %v6577 = vunpack.c.l.b16 %v5814
          %v6578 = vunpack.c.l.b16 %v5815
          %v6579 = vunpack.c.l.b16 %v5816
          %v6580 = vpack.c.b16 %v6549, %v6548
          %v6581 = vpack.c.b16 %v6551, %v6550
          %v6582 = vpack.c.b16 %v6553, %v6552
          %v6583 = vpack.c.b16 %v6555, %v6554
          %v6584 = vpack.c.b16 %v6557, %v6556
          %v6585 = vpack.c.b16 %v6559, %v6558
          %v6586 = vpack.c.b16 %v6561, %v6560
          %v6587 = vpack.c.b16 %v6563, %v6562
          %v6588 = vpack.c.b16 %v6565, %v6564
          %v6589 = vpack.c.b16 %v6567, %v6566
          %v6590 = vpack.c.b16 %v6569, %v6568
          %v6591 = vpack.c.b16 %v6571, %v6570
          %v6592 = vpack.c.b16 %v6573, %v6572
          %v6593 = vpack.c.b16 %v6575, %v6574
          %v6594 = vpack.c.b16 %v6577, %v6576
          %v6595 = vpack.c.b16 %v6579, %v6578
          %v6628 = vunpack.c.l.b16 %v948
          %v6629 = vunpack.c.l.b16 %v949
          %v6630 = vunpack.c.l.b16 %v950
          %v6631 = vunpack.c.l.b16 %v951
          %v6632 = vunpack.c.l.b16 %v952
          %v6633 = vunpack.c.l.b16 %v953
          %v6634 = vunpack.c.l.b16 %v954
          %v6635 = vunpack.c.l.b16 %v955
          %v6636 = vunpack.c.l.b16 %v956
          %v6637 = vunpack.c.l.b16 %v957
          %v6638 = vunpack.c.l.b16 %v958
          %v6639 = vunpack.c.l.b16 %v959
          %v6640 = vunpack.c.l.b16 %v960
          %v6641 = vunpack.c.l.b16 %v961
          %v6642 = vunpack.c.l.b16 %v962
          %v6643 = vunpack.c.l.b16 %v963
          %v6644 = vpack.c.b16 %v6629, %v6628
          %v6645 = vpack.c.b16 %v6631, %v6630
          %v6646 = vpack.c.b16 %v6633, %v6632
          %v6647 = vpack.c.b16 %v6635, %v6634
          %v6648 = vpack.c.b16 %v6637, %v6636
          %v6649 = vpack.c.b16 %v6639, %v6638
          %v6650 = vpack.c.b16 %v6641, %v6640
          %v6651 = vpack.c.b16 %v6643, %v6642
          %6660 = vmatpush.bf16.msra.mxu0 %v6651
          %6661 = vmatpush.bf16.msra.mxu0 %v6650
          %6662 = vmatpush.bf16.msra.mxu0 %v6649
          %6663 = vmatpush.bf16.msra.mxu0 %v6648
          %6664 = vmatpush.bf16.msra.mxu0 %v6647
          %6665 = vmatpush.bf16.msra.mxu0 %v6646
          %6666 = vmatpush.bf16.msra.mxu0 %v6645
          %6667 = vmatpush.bf16.msra.mxu0 %v6644
          %6668 = vmatmul.bf16.gmra.mxu0 %v6580
          %v6669 = vpop.f32.mrf.mxu0
          %v6670 = vadd.f32 0.0, %v6669
          %v6671 = vpop.f32.mrf.mxu0
          %v6672 = vadd.f32 0.0, %v6671
          %6673 = vmatmul.bf16.gmra.mxu0 %v6581
          %v6674 = vpop.f32.mrf.mxu0
          %v6675 = vadd.f32 0.0, %v6674
          %v6676 = vpop.f32.mrf.mxu0
          %v6677 = vadd.f32 0.0, %v6676
          %6678 = vmatmul.bf16.gmra.mxu0 %v6582
          %v6679 = vpop.f32.mrf.mxu0
          %v6680 = vadd.f32 0.0, %v6679
          %v6681 = vpop.f32.mrf.mxu0
          %v6682 = vadd.f32 0.0, %v6681
          %6683 = vmatmul.bf16.gmra.mxu0 %v6583
          %v6684 = vpop.f32.mrf.mxu0
          %v6685 = vadd.f32 0.0, %v6684
          %v6686 = vpop.f32.mrf.mxu0
          %v6687 = vadd.f32 0.0, %v6686
          %6688 = vmatmul.bf16.gmra.mxu0 %v6584
          %v6689 = vpop.f32.mrf.mxu0
          %v6690 = vadd.f32 0.0, %v6689
          %v6691 = vpop.f32.mrf.mxu0
          %v6692 = vadd.f32 0.0, %v6691
          %6693 = vmatmul.bf16.gmra.mxu0 %v6585
          %v6694 = vpop.f32.mrf.mxu0
          %v6695 = vadd.f32 0.0, %v6694
          %v6696 = vpop.f32.mrf.mxu0
          %v6697 = vadd.f32 0.0, %v6696
          %6698 = vmatmul.bf16.gmra.mxu0 %v6586
          %v6699 = vpop.f32.mrf.mxu0
          %v6700 = vadd.f32 0.0, %v6699
          %v6701 = vpop.f32.mrf.mxu0
          %v6702 = vadd.f32 0.0, %v6701
          %6703 = vmatmul.bf16.gmra.mxu0 %v6587
          %v6704 = vpop.f32.mrf.mxu0
          %v6705 = vadd.f32 0.0, %v6704
          %v6706 = vpop.f32.mrf.mxu0
          %v6707 = vadd.f32 0.0, %v6706
          %6708 = vmatmul.bf16.gmra.mxu0 %v6588
          %v6709 = vpop.f32.mrf.mxu0
          %v6710 = vadd.f32 0.0, %v6709
          %v6711 = vpop.f32.mrf.mxu0
          %v6712 = vadd.f32 0.0, %v6711
          %6713 = vmatmul.bf16.gmra.mxu0 %v6589
          %v6714 = vpop.f32.mrf.mxu0
          %v6715 = vadd.f32 0.0, %v6714
          %v6716 = vpop.f32.mrf.mxu0
          %v6717 = vadd.f32 0.0, %v6716
          %6718 = vmatmul.bf16.gmra.mxu0 %v6590
          %v6719 = vpop.f32.mrf.mxu0
          %v6720 = vadd.f32 0.0, %v6719
          %v6721 = vpop.f32.mrf.mxu0
          %v6722 = vadd.f32 0.0, %v6721
          %6723 = vmatmul.bf16.gmra.mxu0 %v6591
          %v6724 = vpop.f32.mrf.mxu0
          %v6725 = vadd.f32 0.0, %v6724
          %v6726 = vpop.f32.mrf.mxu0
          %v6727 = vadd.f32 0.0, %v6726
          %6728 = vmatmul.bf16.gmra.mxu0 %v6592
          %v6729 = vpop.f32.mrf.mxu0
          %v6730 = vadd.f32 0.0, %v6729
          %v6731 = vpop.f32.mrf.mxu0
          %v6732 = vadd.f32 0.0, %v6731
          %6733 = vmatmul.bf16.gmra.mxu0 %v6593
          %v6734 = vpop.f32.mrf.mxu0
          %v6735 = vadd.f32 0.0, %v6734
          %v6736 = vpop.f32.mrf.mxu0
          %v6737 = vadd.f32 0.0, %v6736
          %6738 = vmatmul.bf16.gmra.mxu0 %v6594
          %v6739 = vpop.f32.mrf.mxu0
          %v6740 = vadd.f32 0.0, %v6739
          %v6741 = vpop.f32.mrf.mxu0
          %v6742 = vadd.f32 0.0, %v6741
          %6743 = vmatmul.bf16.gmra.mxu0 %v6595
          %v6744 = vpop.f32.mrf.mxu0
          %v6745 = vadd.f32 0.0, %v6744
          %v6746 = vpop.f32.mrf.mxu0
          %v6747 = vadd.f32 0.0, %v6746
          %6748 = vdwg.mxu0
          %6749 = vst [vmem:[%s317] sm:$0xff] %v5971
          %6750 = vst [vmem:[%s317 + $0x8] sm:$0xff] %v5973
          %6751 = vst [vmem:[%s317 + $0x10] sm:$0xff] %v5976
          %6752 = vst [vmem:[%s317 + $0x18] sm:$0xff] %v5978
          %6753 = vst [vmem:[%s317 + $0x20] sm:$0xff] %v5981
          %6754 = vst [vmem:[%s317 + $0x28] sm:$0xff] %v5983
          %6755 = vst [vmem:[%s317 + $0x30] sm:$0xff] %v5986
          %6756 = vst [vmem:[%s317 + $0x38] sm:$0xff] %v5988
          %6757 = vst [vmem:[%s317 + $0x40] sm:$0xff] %v5991
          %6758 = vst [vmem:[%s317 + $0x48] sm:$0xff] %v5993
          %6759 = vst [vmem:[%s317 + $0x50] sm:$0xff] %v5996
          %6760 = vst [vmem:[%s317 + $0x58] sm:$0xff] %v5998
          %6761 = vst [vmem:[%s317 + $0x60] sm:$0xff] %v6001
          %6762 = vst [vmem:[%s317 + $0x68] sm:$0xff] %v6003
          %6763 = vst [vmem:[%s317 + $0x70] sm:$0xff] %v6006
          %6764 = vst [vmem:[%s317 + $0x78] sm:$0xff] %v6008
          %6765 = vst [vmem:[%s317 + $0x80] sm:$0xff] %v6011
          %6766 = vst [vmem:[%s317 + $0x88] sm:$0xff] %v6013
          %6767 = vst [vmem:[%s317 + $0x90] sm:$0xff] %v6016
          %6768 = vst [vmem:[%s317 + $0x98] sm:$0xff] %v6018
          %6769 = vst [vmem:[%s317 + $0xa0] sm:$0xff] %v6021
          %6770 = vst [vmem:[%s317 + $0xa8] sm:$0xff] %v6023
          %6771 = vst [vmem:[%s317 + $0xb0] sm:$0xff] %v6026
          %6772 = vst [vmem:[%s317 + $0xb8] sm:$0xff] %v6028
          %6773 = vst [vmem:[%s317 + $0xc0] sm:$0xff] %v6031
          %6774 = vst [vmem:[%s317 + $0xc8] sm:$0xff] %v6033
          %6775 = vst [vmem:[%s317 + $0xd0] sm:$0xff] %v6036
          %6776 = vst [vmem:[%s317 + $0xd8] sm:$0xff] %v6038
          %6777 = vst [vmem:[%s317 + $0xe0] sm:$0xff] %v6041
          %6778 = vst [vmem:[%s317 + $0xe8] sm:$0xff] %v6043
          %6779 = vst [vmem:[%s317 + $0xf0] sm:$0xff] %v6046
          %6780 = vst [vmem:[%s317 + $0xf8] sm:$0xff] %v6048
          %6781 = vst [vmem:[%s317 + $0x100] sm:$0xff] %v6204
          %6782 = vst [vmem:[%s317 + $0x108] sm:$0xff] %v6206
          %6783 = vst [vmem:[%s317 + $0x110] sm:$0xff] %v6209
          %6784 = vst [vmem:[%s317 + $0x118] sm:$0xff] %v6211
          %6785 = vst [vmem:[%s317 + $0x120] sm:$0xff] %v6214
          %6786 = vst [vmem:[%s317 + $0x128] sm:$0xff] %v6216
          %6787 = vst [vmem:[%s317 + $0x130] sm:$0xff] %v6219
          %6788 = vst [vmem:[%s317 + $0x138] sm:$0xff] %v6221
          %6789 = vst [vmem:[%s317 + $0x140] sm:$0xff] %v6224
          %6790 = vst [vmem:[%s317 + $0x148] sm:$0xff] %v6226
          %6791 = vst [vmem:[%s317 + $0x150] sm:$0xff] %v6229
          %6792 = vst [vmem:[%s317 + $0x158] sm:$0xff] %v6231
          %6793 = vst [vmem:[%s317 + $0x160] sm:$0xff] %v6234
          %6794 = vst [vmem:[%s317 + $0x168] sm:$0xff] %v6236
          %6795 = vst [vmem:[%s317 + $0x170] sm:$0xff] %v6239
          %6796 = vst [vmem:[%s317 + $0x178] sm:$0xff] %v6241
          %6797 = vst [vmem:[%s317 + $0x180] sm:$0xff] %v6244
          %6798 = vst [vmem:[%s317 + $0x188] sm:$0xff] %v6246
          %6799 = vst [vmem:[%s317 + $0x190] sm:$0xff] %v6249
          %6800 = vst [vmem:[%s317 + $0x198] sm:$0xff] %v6251
          %6801 = vst [vmem:[%s317 + $0x1a0] sm:$0xff] %v6254
          %6802 = vst [vmem:[%s317 + $0x1a8] sm:$0xff] %v6256
          %6803 = vst [vmem:[%s317 + $0x1b0] sm:$0xff] %v6259
          %6804 = vst [vmem:[%s317 + $0x1b8] sm:$0xff] %v6261
          %6805 = vst [vmem:[%s317 + $0x1c0] sm:$0xff] %v6264
          %6806 = vst [vmem:[%s317 + $0x1c8] sm:$0xff] %v6266
          %6807 = vst [vmem:[%s317 + $0x1d0] sm:$0xff] %v6269
          %6808 = vst [vmem:[%s317 + $0x1d8] sm:$0xff] %v6271
          %6809 = vst [vmem:[%s317 + $0x1e0] sm:$0xff] %v6274
          %6810 = vst [vmem:[%s317 + $0x1e8] sm:$0xff] %v6276
          %6811 = vst [vmem:[%s317 + $0x1f0] sm:$0xff] %v6279
          %6812 = vst [vmem:[%s317 + $0x1f8] sm:$0xff] %v6281
          %6813 = vst [vmem:[%s317 + $0x200] sm:$0xff] %v6437
          %6814 = vst [vmem:[%s317 + $0x208] sm:$0xff] %v6439
          %6815 = vst [vmem:[%s317 + $0x210] sm:$0xff] %v6442
          %6816 = vst [vmem:[%s317 + $0x218] sm:$0xff] %v6444
          %6817 = vst [vmem:[%s317 + $0x220] sm:$0xff] %v6447
          %6818 = vst [vmem:[%s317 + $0x228] sm:$0xff] %v6449
          %6819 = vst [vmem:[%s317 + $0x230] sm:$0xff] %v6452
          %6820 = vst [vmem:[%s317 + $0x238] sm:$0xff] %v6454
          %6821 = vst [vmem:[%s317 + $0x240] sm:$0xff] %v6457
          %6822 = vst [vmem:[%s317 + $0x248] sm:$0xff] %v6459
          %6823 = vst [vmem:[%s317 + $0x250] sm:$0xff] %v6462
          %6824 = vst [vmem:[%s317 + $0x258] sm:$0xff] %v6464
          %6825 = vst [vmem:[%s317 + $0x260] sm:$0xff] %v6467
          %6826 = vst [vmem:[%s317 + $0x268] sm:$0xff] %v6469
          %6827 = vst [vmem:[%s317 + $0x270] sm:$0xff] %v6472
          %6828 = vst [vmem:[%s317 + $0x278] sm:$0xff] %v6474
          %6829 = vst [vmem:[%s317 + $0x280] sm:$0xff] %v6477
          %6830 = vst [vmem:[%s317 + $0x288] sm:$0xff] %v6479
          %6831 = vst [vmem:[%s317 + $0x290] sm:$0xff] %v6482
          %6832 = vst [vmem:[%s317 + $0x298] sm:$0xff] %v6484
          %6833 = vst [vmem:[%s317 + $0x2a0] sm:$0xff] %v6487
          %6834 = vst [vmem:[%s317 + $0x2a8] sm:$0xff] %v6489
          %6835 = vst [vmem:[%s317 + $0x2b0] sm:$0xff] %v6492
          %6836 = vst [vmem:[%s317 + $0x2b8] sm:$0xff] %v6494
          %6837 = vst [vmem:[%s317 + $0x2c0] sm:$0xff] %v6497
          %6838 = vst [vmem:[%s317 + $0x2c8] sm:$0xff] %v6499
          %6839 = vst [vmem:[%s317 + $0x2d0] sm:$0xff] %v6502
          %6840 = vst [vmem:[%s317 + $0x2d8] sm:$0xff] %v6504
          %6841 = vst [vmem:[%s317 + $0x2e0] sm:$0xff] %v6507
          %6842 = vst [vmem:[%s317 + $0x2e8] sm:$0xff] %v6509
          %6843 = vst [vmem:[%s317 + $0x2f0] sm:$0xff] %v6512
          %6844 = vst [vmem:[%s317 + $0x2f8] sm:$0xff] %v6514
          %6845 = vst [vmem:[%s317 + $0x300] sm:$0xff] %v6670
          %6846 = vst [vmem:[%s317 + $0x308] sm:$0xff] %v6672
          %6847 = vst [vmem:[%s317 + $0x310] sm:$0xff] %v6675
          %6848 = vst [vmem:[%s317 + $0x318] sm:$0xff] %v6677
          %6849 = vst [vmem:[%s317 + $0x320] sm:$0xff] %v6680
          %6850 = vst [vmem:[%s317 + $0x328] sm:$0xff] %v6682
          %6851 = vst [vmem:[%s317 + $0x330] sm:$0xff] %v6685
          %6852 = vst [vmem:[%s317 + $0x338] sm:$0xff] %v6687
          %6853 = vst [vmem:[%s317 + $0x340] sm:$0xff] %v6690
          %6854 = vst [vmem:[%s317 + $0x348] sm:$0xff] %v6692
          %6855 = vst [vmem:[%s317 + $0x350] sm:$0xff] %v6695
          %6856 = vst [vmem:[%s317 + $0x358] sm:$0xff] %v6697
          %6857 = vst [vmem:[%s317 + $0x360] sm:$0xff] %v6700
          %6858 = vst [vmem:[%s317 + $0x368] sm:$0xff] %v6702
          %6859 = vst [vmem:[%s317 + $0x370] sm:$0xff] %v6705
          %6860 = vst [vmem:[%s317 + $0x378] sm:$0xff] %v6707
          %6861 = vst [vmem:[%s317 + $0x380] sm:$0xff] %v6710
          %6862 = vst [vmem:[%s317 + $0x388] sm:$0xff] %v6712
          %6863 = vst [vmem:[%s317 + $0x390] sm:$0xff] %v6715
          %6864 = vst [vmem:[%s317 + $0x398] sm:$0xff] %v6717
          %6865 = vst [vmem:[%s317 + $0x3a0] sm:$0xff] %v6720
          %6866 = vst [vmem:[%s317 + $0x3a8] sm:$0xff] %v6722
          %6867 = vst [vmem:[%s317 + $0x3b0] sm:$0xff] %v6725
          %6868 = vst [vmem:[%s317 + $0x3b8] sm:$0xff] %v6727
          %6869 = vst [vmem:[%s317 + $0x3c0] sm:$0xff] %v6730
          %6870 = vst [vmem:[%s317 + $0x3c8] sm:$0xff] %v6732
          %6871 = vst [vmem:[%s317 + $0x3d0] sm:$0xff] %v6735
          %6872 = vst [vmem:[%s317 + $0x3d8] sm:$0xff] %v6737
          %6873 = vst [vmem:[%s317 + $0x3e0] sm:$0xff] %v6740
          %6874 = vst [vmem:[%s317 + $0x3e8] sm:$0xff] %v6742
          %6875 = vst [vmem:[%s317 + $0x3f0] sm:$0xff] %v6745
          %6876 = vst [vmem:[%s317 + $0x3f8] sm:$0xff] %v6747
        $region52: #{tpu_custom_call.1} parent=31 // pred_fallthru
          _
        %s6877 = sand.u32 %s125, 1
        %s6878 = scalar_lea.sflag [#allocation4], %s6877
        %s6879 = sand.u32 %s125, 1
        %s6880 = smul.addr %s6879, 1024
        %s6881 = scalar_lea.vmem [#allocation8], %s6880
        // Predicated region
        $region53: #{tpu_custom_call.1} parent=31 // pred_check
          %p6882 = pneg %p135
        $region54: #{tpu_custom_call.1} parent=31 // pred_check_branch
          %6884 = sbr.rel (%p6882) target = $region56
        $region55: #{tpu_custom_call.1} parent=31 // pred_region
          #allocation12 [shape = 'u32[6]{0}', space=smem, size = 0x18, scoped, tag = 'DMA stride descriptor']
          %s6885 = smul.u32 4, %s27
          %s6886 = smul.u32 32, %s28
          %6888 = vsyncadd %s6878, 0
          %s6889 = smul.addr %s6885, 64
          %s6890 = sadd.s32 %s6886, %s6889
          %s6891 = smul.addr %s6890, 8
          %s6892 = scalar_lea.hbm %s3, %s6891
          %s6894 = sshll.u32 1, 14
          %s6895 = sxor.u32 4294967295, %s6894
          %s6898 = sshll.u32 7, 18
          %s6899 = sxor.u32 4294967295, %s6898
          %s6900 = sand.u32 0, %s6899
          %s6902 = sor.u32 %s6900, 0
          %s6903 = sshll.u32 %s6881, 4
          %s6904 = int_to_ptr.vmem [resolvable:$true] %s6903
          %s6905 = sshll.u32 %s6892, 4
          %s6906 = int_to_ptr.hbm [resolvable:$true] %s6905
          %6912 = sst [smem:[#allocation12]] 4096
          %s6913 = scalar_lea.smem [#allocation12], 1
          %6914 = sst [smem:[%s6913]] 8192
          %s6915 = scalar_lea.smem [#allocation12], 2
          %6916 = sst [smem:[%s6915]] 32
          %s6917 = scalar_lea.smem [#allocation12], 3
          %6918 = sst [smem:[%s6917]] 128
          %s6919 = scalar_lea.smem [#allocation12], 4
          %6920 = sst [smem:[%s6919]] 128
          %s6921 = scalar_lea.smem [#allocation12], 5
          %6922 = sst [smem:[%s6921]] 8
          %6924 = dma.general %s6904, 16384, %s6906, %s6878, [#allocation11], [#allocation12], %s6902, 0
        $region56: #{tpu_custom_call.1} parent=31 // pred_fallthru
          _
      $region32: #{tpu_custom_call.1} parent=5 // pred_fallthru
        _
      %p6925 = scmp.le.s32.totalorder 2, %s18
      // Predicated region
      $region57: #{tpu_custom_call.1} parent=5 // pred_check
        %p6926 = pneg %p6925
      $region58: #{tpu_custom_call.1} parent=5 // pred_check_branch
        %6928 = sbr.rel (%p6926) target = $region60
      $region59: #{tpu_custom_call.1} parent=5 // pred_region
        %s6929 = ssub.s32 %s18, 2
        // Predicated region
        $region61: #{tpu_custom_call.1} parent=59 // pred_check
          %p6930 = pneg %p141
        $region62: #{tpu_custom_call.1} parent=59 // pred_check_branch
          %6932 = sbr.rel (%p6930) target = $region64
        $region63: #{tpu_custom_call.1} parent=59 // pred_region
          %s6933 = sand.u32 %s126, 1
          %s6934 = scalar_lea.sflag [#allocation4], %s6933
          %s6935 = sand.u32 %s126, 1
          %s6936 = smul.addr %s6935, 1024
          %s6937 = scalar_lea.vmem [#allocation8], %s6936
          %6939 = dma.done %s6934, 16384
        $region64: #{tpu_custom_call.1} parent=59 // pred_fallthru
          _
      $region60: #{tpu_custom_call.1} parent=5 // pred_fallthru
        _
    $region6: #{tpu_custom_call.1} parent=1 // loop_footer
      %s22 = sadd.s32 1, %s18
    $region7: #{tpu_custom_call.1} parent=1 // loop_footer_branch
      %17 = sbr.rel target = $region3
    $region8: #{tpu_custom_call.1} parent=1 // loop_exit
      _
    %6940 = vsyncpa [#allocation3], 1
    %s6941 = scalar_lea.sflag [#allocation3], 1
    %6942 = vsyncpa %s6941, 1
    %6943 = vsyncpa [#allocation6], 1
    %s6944 = scalar_lea.sflag [#allocation6], 1
    %6945 = vsyncpa %s6944, 1
    %6946 = vsyncpa [#allocation4], 1
    %s6947 = scalar_lea.sflag [#allocation4], 1
    %6948 = vsyncpa %s6947, 1

</llo_original>
